<compile_context>
chip_gen: v7x
topology: tpu7x:2x2x1
jax: 0.10.0
libtpu: 0.0.40
codegen_flags: <defaults>
</compile_context>

<pallas_src>
import functools

import jax
import jax.numpy as jnp
from jax.experimental import pallas as pl
from jax.experimental.pallas import tpu as pltpu


# --------------------------------------------------------------------------------------
# small helpers
# --------------------------------------------------------------------------------------
def _round_up(x, m):
    return -(-x // m) * m


def _padded_bytes(shape, dtype):
    """Approximate VMEM footprint: sublane dim padded to 8, lane dim padded to 128."""
    item = jnp.dtype(dtype).itemsize
    if len(shape) < 2:
        n = 1
        for d in shape:
            n *= d
        return _round_up(max(n, 1), 128) * item
    lead = 1
    for d in shape[:-2]:
        lead *= d
    return lead * _round_up(shape[-2], 8) * _round_up(shape[-1], 128) * item


@functools.lru_cache(maxsize=None)
def _vmem_budget_bytes():
    """~80% of physical VMEM (v5e/v6e 128 MiB, v7x 64 MiB); conservative fallback 64 MiB."""
    phys = 64 * 2 ** 20
    try:
        cap = getattr(pltpu.get_tpu_info(), "vmem_capacity_bytes", None)
        if cap:
            phys = int(cap)
    except Exception:
        pass
    return max(32 * 2 ** 20, int(phys * 0.8))


def _pick_tile(total, ok, fits):
    """Largest divisor of `total` passing `ok` whose footprint `fits`; best-effort fallback."""
    divs = [d for d in range(1, total + 1) if total % d == 0 and ok(d)]
    if not divs:
        return total
    fitting = [d for d in divs if fits(d)]
    return max(fitting) if fitting else min(divs)


# --------------------------------------------------------------------------------------
# pass 1: conv (deep-K matmuls) + per-tile partial BN statistics
# --------------------------------------------------------------------------------------
def _conv_stats_kernel(x_ref, w_ref, conv_ref, stats_ref, xpad_ref, col_ref):
    # x_ref:     (H, W, Cin)             one batch element (VMEM-resident across inner axes)
    # w_ref:     (KH, KW*Cin, TCout)     conv weight tile, taps pre-flattened along K
    # conv_ref:  (TH*W, TCout)           conv output block (bf16 on the default path)
    # stats_ref: (2, TCout)              row 0: partial sum, row 1: partial sum of squares
    # xpad_ref:  (TH+2*ph, W+2*pw, Cin)  zero-bordered input tile (+ halo rows) scratch
    # col_ref:   (TH+2*ph, W, KW*Cin)    partial im2col (along W) scratch
    H, W, Cin = x_ref.shape
    KH, KWCin, TCout = w_ref.shape
    KW = KWCin // Cin
    ph, pw = KH // 2, KW // 2
    THp = xpad_ref.shape[0]
    TH = THp - 2 * ph
    THW = TH * W
    cdt = xpad_ref.dtype

    i = pl.program_id(2)                 # H-tile index (innermost grid axis)
    r0 = i * TH                          # first output row of this tile
    if TH % 8 == 0:
        r0 = pl.multiple_of(r0, 8)

    # ---- 'same' padding: zero only the border strips, never the full scratch ----
    if pw > 0:
        xpad_ref[:, :pw, :] = jnp.zeros((THp, pw, Cin), cdt)
        xpad_ref[:, pw + W:, :] = jnp.zeros((THp, pw, Cin), cdt)

    # interior rows of this tile (always in-bounds, static length)
    xpad_ref[ph:ph + TH, pw:pw + W, :] = x_ref[pl.ds(r0, TH), :, :].astype(cdt)

    # halo rows: neighbouring image rows where they exist, zeros at the image edge
    for d in range(1, ph + 1):
        top = x_ref[pl.ds(jnp.maximum(r0 - d, 0), 1), :, :].astype(cdt)
        xpad_ref[ph - d:ph - d + 1, pw:pw + W, :] = jnp.where(
            r0 - d >= 0, top, jnp.zeros_like(top))

        bot = x_ref[pl.ds(jnp.minimum(r0 + TH - 1 + d, H - 1), 1), :, :].astype(cdt)
        xpad_ref[ph + TH - 1 + d:ph + TH + d, pw:pw + W, :] = jnp.where(
            r0 + TH - 1 + d < H, bot, jnp.zeros_like(bot))

    # ---- partial im2col along W: col[.., w, dw*Cin:(dw+1)*Cin] = xpad[.., w+dw, :] ----
    for dw in range(KW):
        col_ref[:, :, dw * Cin:(dw + 1) * Cin] = xpad_ref[:, dw:dw + W, :]

    # ---- KH deep-K MXU matmuls (K = KW*Cin), single SSA accumulator, one store ----
    acc = None
    for dh in range(KH):
        patch = col_ref[dh:dh + TH, :, :].reshape(THW, KWCin)
        part = jnp.dot(patch, w_ref[dh], preferred_element_type=jnp.float32)
        acc = part if acc is None else acc + part

    conv_ref[...] = acc.astype(conv_ref.dtype)

    # ---- per-tile partial BN statistics, taken from the f32 accumulator ----
    stats_ref[0:1, :] = jnp.sum(acc, axis=0, keepdims=True)
    stats_ref[1:2, :] = jnp.sum(acc * acc, axis=0, keepdims=True)


# --------------------------------------------------------------------------------------
# pass 2: y = relu(conv * a + b)
# --------------------------------------------------------------------------------------
def _bn_relu_kernel(conv_ref, ab_ref, out_ref):
    # conv_ref: (THW, TCout)  conv intermediate block (bf16 on the default path)
    # ab_ref:   (2, TCout)    row 0: a = gamma*rsqrt(var+eps), row 1: b = beta - mean*a
    # out_ref:  (THW, TCout)  final output block
    a = ab_ref[0:1, :]
    b = ab_ref[1:2, :]
    y = conv_ref[...].astype(jnp.float32) * a + b     # BN folded to one FMA per element
    out_ref[...] = jnp.maximum(y, 0.0).astype(out_ref.dtype)


# --------------------------------------------------------------------------------------
# wrapper
# --------------------------------------------------------------------------------------
def _conv_bn_relu_nhwc(x, w_hwio, gamma, beta, eps, use_bf16_mxu, h_tile, hw_tile):
    N, H, W, Cin = x.shape
    KH, KW, _, Cout = w_hwio.shape
    ph, pw = KH // 2, KW // 2
    HW = H * W
    KWCin = KW * Cin

    compute_dtype = jnp.bfloat16 if use_bf16_mxu else jnp.float32
    conv_dtype = compute_dtype                     # bf16 intermediate on the fast path
    out_dtype = x.dtype

    # bf16 operands at the kernel boundary (cast fuses into the NCHW->NHWC transpose and
    # halves the per-step x DMA); weight taps pre-flattened along K for the deep-K matmuls.
    xk = x.astype(compute_dtype)
    wk = w_hwio.reshape(KH, KWCin, Cout).astype(compute_dtype)

    # Lane-dense Cout tile when possible (multiple of 128), else the full (small) Cout.
    TCout = 128 if Cout % 128 == 0 else Cout
    n_cout = Cout // TCout

    budget = _vmem_budget_bytes()

    # ---- pass-1 H tile: largest divisor of H keeping the per-step footprint in budget ----
    def est1(th):
        thp = th + 2 * ph
        return (2 * _padded_bytes((H, W, Cin), compute_dtype)            # x block
                + 2 * _padded_bytes((KH, KWCin, TCout), compute_dtype)   # weight block
                + 2 * _padded_bytes((th * W, TCout), conv_dtype)         # conv out block
                + 2 * _padded_bytes((8, TCout), jnp.float32)             # stats block
                + _padded_bytes((thp, W + 2 * pw, Cin), compute_dtype)   # xpad scratch
                + _padded_bytes((thp, W, KWCin), compute_dtype)          # col scratch
                + 4 * _padded_bytes((th * W, TCout), jnp.float32))       # f32 acc headroom

    if h_tile is None:
        TH = _pick_tile(H, ok=lambda d: d == H or (d * W) % 8 == 0,
                        fits=lambda d: est1(d) <= budget)
    else:
        TH = int(h_tile)
        if H % TH != 0 or (TH != H and (TH * W) % 8 != 0):
            raise ValueError("h_tile must divide H and give 8-row-aligned blocks")
    n_h = H // TH

    vmem_limit1 = int(min(budget, max(32 * 2 ** 20, 2 * est1(TH))))
    cparams1 = pltpu.CompilerParams(
        dimension_semantics=("parallel", "parallel", "parallel"),
        vmem_limit_bytes=vmem_limit1)

    conv, stats = pl.pallas_call(
        _conv_stats_kernel,
        grid=(N, n_cout, n_h),
        in_specs=[
            pl.BlockSpec((None, H, W, Cin), lambda n, j, i: (n, 0, 0, 0)),
            pl.BlockSpec((KH, KWCin, TCout), lambda n, j, i: (0, 0, j)),
        ],
        out_specs=(
            pl.BlockSpec((None, TH * W, TCout), lambda n, j, i: (n, i, j)),
            pl.BlockSpec((None, 2, TCout), lambda n, j, i, _nh=n_h: (n * _nh + i, 0, j)),
        ),
        out_shape=(
            jax.ShapeDtypeStruct((N, HW, Cout), conv_dtype),
            jax.ShapeDtypeStruct((N * n_h, 2, Cout), jnp.float32),
        ),
        scratch_shapes=[
            pltpu.VMEM((TH + 2 * ph, W + 2 * pw, Cin), compute_dtype),
            pltpu.VMEM((TH + 2 * ph, W, KWCin), compute_dtype),
        ],
        compiler_params=cparams1,
    )(xk, wk)

    # ---- tiny cross-tile combine; BN folded into one per-channel affine ----
    # TODO(synk): BatchNorm running_mean/running_var buffer updates (training-side state)
    # are not emitted; only the forward normalization with batch statistics is computed.
    # NOTE: var = E[x^2] - E[x]^2 combined in f32; adequate here, switch to a centered /
    # Welford-style combine if |mean| >> std and tighter parity with PyTorch is required.
    cnt = jnp.float32(N * HW)
    mean = jnp.sum(stats[:, 0, :], axis=0) / cnt                                 # (Cout,)
    var = jnp.maximum(jnp.sum(stats[:, 1, :], axis=0) / cnt - mean * mean, 0.0)  # (Cout,)
    a = gamma.astype(jnp.float32) * jax.lax.rsqrt(var + eps)
    b = beta.astype(jnp.float32) - mean * a
    ab = jnp.stack([a, b], axis=0)                                               # (2, Cout)

    # ---- pass-2 tile over HW (mem-bound; biggest block that fits keeps it pipelined) ----
    def est2(thw):
        return (2 * _padded_bytes((thw, TCout), conv_dtype)
                + 2 * _padded_bytes((thw, TCout), out_dtype)
                + 2 * _padded_bytes((8, TCout), jnp.float32)
                + 2 * _padded_bytes((thw, TCout), jnp.float32))   # f32 compute headroom

    if hw_tile is None:
        THW = _pick_tile(HW, ok=lambda d: d == HW or d % 8 == 0,
                         fits=lambda d: est2(d) <= budget)
    else:
        THW = int(hw_tile)
        if HW % THW != 0 or (THW != HW and THW % 8 != 0):
            raise ValueError("hw_tile must divide H*W and be a multiple of 8")
    n_hw = HW // THW

    vmem_limit2 = int(min(budget, max(32 * 2 ** 20, 2 * est2(THW))))
    cparams2 = pltpu.CompilerParams(
        dimension_semantics=("parallel", "parallel", "parallel"),
        vmem_limit_bytes=vmem_limit2)

    # In-place over the conv intermediate only when dtypes match (f32 path).
    io_alias = {0: 0} if jnp.dtype(conv_dtype) == jnp.dtype(out_dtype) else {}

    y = pl.pallas_call(
        _bn_relu_kernel,
        grid=(N, n_hw, n_cout),
        in_specs=[
            pl.BlockSpec((None, THW, TCout), lambda n, i, j: (n, i, j)),
            pl.BlockSpec((2, TCout), lambda n, i, j: (0, j)),
        ],
        out_specs=pl.BlockSpec((None, THW, TCout), lambda n, i, j: (n, i, j)),
        out_shape=jax.ShapeDtypeStruct((N, HW, Cout), out_dtype),
        input_output_aliases=io_alias,
        compiler_params=cparams2,
    )(conv, ab)

    return y.reshape(N, H, W, Cout)


@functools.partial(jax.jit, static_argnames=("use_bf16_mxu", "h_tile", "hw_tile"))
def conv_bn_relu(x_nchw, w_oihw, gamma, beta, eps=1e-5, *, use_bf16_mxu=True,
                 h_tile=None, hw_tile=None):
    """PyTorch-semantics ConvBNReLU forward (ks=3, stride=1, 'same' padding, no conv bias).

    x: (N, Cin, H, W), w: (Cout, Cin, KH, KW).  Default path uses bf16 MXU operands with
    f32 accumulation and a bf16 conv intermediate; use_bf16_mxu=False is a full-f32 path.
    h_tile / hw_tile override the automatic (VMEM-budget-driven) spatial tile sizes.
    """
    x = jnp.transpose(x_nchw, (0, 2, 3, 1))          # NCHW -> NHWC (kernel is NHWC-native)
    w = jnp.transpose(w_oihw, (2, 3, 1, 0))          # OIHW -> HWIO
    out_nhwc = _conv_bn_relu_nhwc(x, w, gamma, beta, eps, use_bf16_mxu, h_tile, hw_tile)
    return jnp.transpose(out_nhwc, (0, 3, 1, 2))     # NHWC -> NCHW


if __name__ == "__main__":
    key = jax.random.PRNGKey(0)
    kx, kw = jax.random.split(key)

    N, Cin, H, W = 2, 4, 16, 16
    Cout, KS = 8, 3

    x = jax.random.normal(kx, (N, Cin, H, W), jnp.float32)

    # Conv weight: kaiming_normal_ with a=1 => std = sqrt(2/(1+1^2)/fan_in) = 1/sqrt(fan_in)
    fan_in = Cin * KS * KS
    w = jax.random.normal(kw, (Cout, Cin, KS, KS), jnp.float32) * (1.0 / jnp.sqrt(fan_in))

    # BatchNorm2d default parameters
    gamma = jnp.ones((Cout,), jnp.float32)
    beta = jnp.zeros((Cout,), jnp.float32)

    # Pure-JAX f32 reference (conv -> training-mode BN -> relu).
    conv_xla = jax.lax.conv_general_dilated(
        x, w, window_strides=(1, 1), padding="SAME",
        dimension_numbers=("NCHW", "OIHW", "NCHW"))
    mu = conv_xla.mean(axis=(0, 2, 3), keepdims=True)
    var = ((conv_xla - mu) ** 2).mean(axis=(0, 2, 3), keepdims=True)
    ref = jnp.maximum(
        (conv_xla - mu) / jnp.sqrt(var + 1e-5) * gamma.reshape(1, -1, 1, 1)
        + beta.reshape(1, -1, 1, 1), 0.0)

    # Default fast path: bf16 MXU operands + bf16 intermediate, auto tiling.
    out = jax.block_until_ready(conv_bn_relu(x, w, gamma, beta))
    assert out.shape == (N, Cout, H, W)
    err_bf16 = float(jnp.max(jnp.abs(out - ref)))
    assert err_bf16 < 5e-2, err_bf16

    # f32 path with forced spatial tiling (exercises halo rows / multi-tile code paths).
    out_f32 = jax.block_until_ready(
        conv_bn_relu(x, w, gamma, beta, use_bf16_mxu=False, h_tile=8, hw_tile=128))
    err_f32 = float(jnp.max(jnp.abs(out_f32 - ref)))
    assert jnp.allclose(out_f32, ref, atol=2e-4, rtol=2e-4), err_f32

    print("KERNEL_OK")
</pallas_src>

<mosaic_0001>
module attributes {stable_mosaic.version = 11 : i64} {
  func.func @_bn_relu_kernel(%arg0: i32, %arg1: i32, %arg2: i32, %arg3: memref<1x256x8xbf16, #tpu.memory_space<vmem>>, %arg4: memref<2x8xf32, #tpu.memory_space<vmem>>, %arg5: memref<1x256x8xf32, #tpu.memory_space<vmem>>) attributes {dimension_semantics = [#tpu.dimension_semantics<parallel>, #tpu.dimension_semantics<parallel>, #tpu.dimension_semantics<parallel>], iteration_bounds = array<i64: 2, 1, 1>, scalar_prefetch = 0 : i64, scratch_operands = 0 : i64, tpu.core_type = #tpu.core_type<tc>, window_params = [{transform_indices = @transform_0, window_bounds = array<i64: 1, 256, 8>}, {transform_indices = @transform_1, window_bounds = array<i64: 2, 8>}, {transform_indices = @transform_2, window_bounds = array<i64: 1, 256, 8>}]} {
    %c0 = arith.constant 0 : index
    %c0_0 = arith.constant 0 : index
    %0 = vector.load %arg4[%c0, %c0_0] : memref<2x8xf32, #tpu.memory_space<vmem>>, vector<1x8xf32>
    %c1 = arith.constant 1 : index
    %c0_1 = arith.constant 0 : index
    %1 = vector.load %arg4[%c1, %c0_1] : memref<2x8xf32, #tpu.memory_space<vmem>>, vector<1x8xf32>
    %c0_2 = arith.constant 0 : index
    %c0_3 = arith.constant 0 : index
    %c0_4 = arith.constant 0 : index
    %2 = vector.load %arg3[%c0_2, %c0_3, %c0_4] : memref<1x256x8xbf16, #tpu.memory_space<vmem>>, vector<1x256x8xbf16>
    %3 = vector.shape_cast %2 : vector<1x256x8xbf16> to vector<256x8xbf16>
    %4 = arith.extf %3 : vector<256x8xbf16> to vector<256x8xf32>
    %5 = vector.broadcast %0 : vector<1x8xf32> to vector<256x8xf32>
    %6 = arith.mulf %4, %5 : vector<256x8xf32>
    %7 = vector.broadcast %1 : vector<1x8xf32> to vector<256x8xf32>
    %8 = arith.addf %6, %7 : vector<256x8xf32>
    %cst = arith.constant 0.000000e+00 : f32
    %9 = vector.broadcast %cst : f32 to vector<256x8xf32>
    %10 = arith.maximumf %8, %9 : vector<256x8xf32>
    %c0_5 = arith.constant 0 : index
    %c0_6 = arith.constant 0 : index
    %c0_7 = arith.constant 0 : index
    %11 = vector.load %arg5[%c0_5, %c0_6, %c0_7] : memref<1x256x8xf32, #tpu.memory_space<vmem>>, vector<1x256x8xf32>
    %12 = vector.shape_cast %11 : vector<1x256x8xf32> to vector<256x8xf32>
    %13 = vector.shape_cast %10 : vector<256x8xf32> to vector<1x256x8xf32>
    tpu.vector_store %arg5[%c0_5, %c0_6, %c0_7], %13 {strides = array<i32>} : memref<1x256x8xf32, #tpu.memory_space<vmem>>, vector<1x256x8xf32>,
    return
  }
  func.func @transform_0(%arg0: i32, %arg1: i32, %arg2: i32) -> (i32, i32, i32) {
    %c0_i32 = arith.constant 0 : i32
    return %arg0, %arg1, %arg2 : i32, i32, i32
  }
  func.func @transform_1(%arg0: i32, %arg1: i32, %arg2: i32) -> (i32, i32) {
    %c0_i32 = arith.constant 0 : i32
    %c0_i32_0 = arith.constant 0 : i32
    return %c0_i32, %arg2 : i32, i32
  }
  func.func @transform_2(%arg0: i32, %arg1: i32, %arg2: i32) -> (i32, i32, i32) {
    %c0_i32 = arith.constant 0 : i32
    return %arg0, %arg1, %arg2 : i32, i32, i32
  }
}

module attributes {stable_mosaic.version = 11 : i64} {
  func.func @_conv_stats_kernel(%arg0: i32, %arg1: i32, %arg2: i32, %arg3: memref<1x16x16x4xbf16, #tpu.memory_space<vmem>>, %arg4: memref<3x12x8xbf16, #tpu.memory_space<vmem>>, %arg5: memref<1x256x8xbf16, #tpu.memory_space<vmem>>, %arg6: memref<1x2x8xf32, #tpu.memory_space<vmem>>, %arg7: memref<18x18x4xbf16, #tpu.memory_space<vmem>>, %arg8: memref<18x16x12xbf16, #tpu.memory_space<vmem>>) attributes {dimension_semantics = [#tpu.dimension_semantics<parallel>, #tpu.dimension_semantics<parallel>, #tpu.dimension_semantics<parallel>], iteration_bounds = array<i64: 2, 1, 1>, scalar_prefetch = 0 : i64, scratch_operands = 2 : i64, tpu.core_type = #tpu.core_type<tc>, window_params = [{transform_indices = @transform_0, window_bounds = array<i64: 1, 16, 16, 4>}, {transform_indices = @transform_1, window_bounds = array<i64: 3, 12, 8>}, {transform_indices = @transform_2, window_bounds = array<i64: 1, 256, 8>}, {transform_indices = @transform_3, window_bounds = array<i64: 1, 2, 8>}]} {
    %c16_i32 = arith.constant 16 : i32
    %0 = arith.muli %arg2, %c16_i32 : i32
    %1 = tpu.assume_multiple %0, 8 : i32
    %cst = arith.constant 0.000000e+00 : bf16
    %2 = vector.broadcast %cst : bf16 to vector<18x1x4xbf16>
    %c0 = arith.constant 0 : index
    %c0_0 = arith.constant 0 : index
    %c0_1 = arith.constant 0 : index
    %3 = vector.load %arg7[%c0, %c0_0, %c0_1] : memref<18x18x4xbf16, #tpu.memory_space<vmem>>, vector<18x1x4xbf16>
    tpu.vector_store %arg7[%c0, %c0_0, %c0_1], %2 {strides = array<i32>} : memref<18x18x4xbf16, #tpu.memory_space<vmem>>, vector<18x1x4xbf16>,
    %cst_2 = arith.constant 0.000000e+00 : bf16
    %4 = vector.broadcast %cst_2 : bf16 to vector<18x1x4xbf16>
    %c0_3 = arith.constant 0 : index
    %c17 = arith.constant 17 : index
    %c0_4 = arith.constant 0 : index
    %5 = vector.load %arg7[%c0_3, %c17, %c0_4] : memref<18x18x4xbf16, #tpu.memory_space<vmem>>, vector<18x1x4xbf16>
    tpu.vector_store %arg7[%c0_3, %c17, %c0_4], %4 {strides = array<i32>} : memref<18x18x4xbf16, #tpu.memory_space<vmem>>, vector<18x1x4xbf16>,
    %c0_5 = arith.constant 0 : index
    %6 = arith.index_cast %1 : i32 to index
    %c0_6 = arith.constant 0 : index
    %c0_7 = arith.constant 0 : index
    %7 = vector.load %arg3[%c0_5, %6, %c0_6, %c0_7] : memref<1x16x16x4xbf16, #tpu.memory_space<vmem>>, vector<1x16x16x4xbf16>
    %8 = vector.shape_cast %7 : vector<1x16x16x4xbf16> to vector<16x16x4xbf16>
    %c1 = arith.constant 1 : index
    %c1_8 = arith.constant 1 : index
    %c0_9 = arith.constant 0 : index
    %9 = vector.load %arg7[%c1, %c1_8, %c0_9] : memref<18x18x4xbf16, #tpu.memory_space<vmem>>, vector<16x16x4xbf16>
    tpu.vector_store %arg7[%c1, %c1_8, %c0_9], %8 {strides = array<i32>} : memref<18x18x4xbf16, #tpu.memory_space<vmem>>, vector<16x16x4xbf16>,
    %c1_i32 = arith.constant 1 : i32
    %10 = arith.subi %1, %c1_i32 : i32
    %c0_i32 = arith.constant 0 : i32
    %11 = arith.maxsi %10, %c0_i32 : i32
    %c0_10 = arith.constant 0 : index
    %12 = arith.index_cast %11 : i32 to index
    %c0_11 = arith.constant 0 : index
    %c0_12 = arith.constant 0 : index
    %13 = vector.load %arg3[%c0_10, %12, %c0_11, %c0_12] : memref<1x16x16x4xbf16, #tpu.memory_space<vmem>>, vector<1x1x16x4xbf16>
    %14 = vector.shape_cast %13 : vector<1x1x16x4xbf16> to vector<1x16x4xbf16>
    %c1_i32_13 = arith.constant 1 : i32
    %15 = arith.subi %1, %c1_i32_13 : i32
    %c0_i32_14 = arith.constant 0 : i32
    %16 = arith.cmpi sge, %15, %c0_i32_14 : i32
    %cst_15 = arith.constant 0.000000e+00 : bf16
    %17 = vector.broadcast %cst_15 : bf16 to vector<1x16x4xbf16>
    %18 = arith.select %16, %14, %17 : vector<1x16x4xbf16>
    %c0_16 = arith.constant 0 : index
    %c1_17 = arith.constant 1 : index
    %c0_18 = arith.constant 0 : index
    %19 = vector.load %arg7[%c0_16, %c1_17, %c0_18] : memref<18x18x4xbf16, #tpu.memory_space<vmem>>, vector<1x16x4xbf16>
    tpu.vector_store %arg7[%c0_16, %c1_17, %c0_18], %18 {strides = array<i32>} : memref<18x18x4xbf16, #tpu.memory_space<vmem>>, vector<1x16x4xbf16>,
    %c16_i32_19 = arith.constant 16 : i32
    %20 = arith.addi %1, %c16_i32_19 : i32
    %c1_i32_20 = arith.constant 1 : i32
    %21 = arith.subi %20, %c1_i32_20 : i32
    %c1_i32_21 = arith.constant 1 : i32
    %22 = arith.addi %21, %c1_i32_21 : i32
    %c15_i32 = arith.constant 15 : i32
    %23 = arith.minsi %22, %c15_i32 : i32
    %c0_22 = arith.constant 0 : index
    %24 = arith.index_cast %23 : i32 to index
    %c0_23 = arith.constant 0 : index
    %c0_24 = arith.constant 0 : index
    %25 = vector.load %arg3[%c0_22, %24, %c0_23, %c0_24] : memref<1x16x16x4xbf16, #tpu.memory_space<vmem>>, vector<1x1x16x4xbf16>
    %26 = vector.shape_cast %25 : vector<1x1x16x4xbf16> to vector<1x16x4xbf16>
    %c16_i32_25 = arith.constant 16 : i32
    %27 = arith.addi %1, %c16_i32_25 : i32
    %c1_i32_26 = arith.constant 1 : i32
    %28 = arith.subi %27, %c1_i32_26 : i32
    %c1_i32_27 = arith.constant 1 : i32
    %29 = arith.addi %28, %c1_i32_27 : i32
    %c16_i32_28 = arith.constant 16 : i32
    %30 = arith.cmpi slt, %29, %c16_i32_28 : i32
    %cst_29 = arith.constant 0.000000e+00 : bf16
    %31 = vector.broadcast %cst_29 : bf16 to vector<1x16x4xbf16>
    %32 = arith.select %30, %26, %31 : vector<1x16x4xbf16>
    %c17_30 = arith.constant 17 : index
    %c1_31 = arith.constant 1 : index
    %c0_32 = arith.constant 0 : index
    %33 = vector.load %arg7[%c17_30, %c1_31, %c0_32] : memref<18x18x4xbf16, #tpu.memory_space<vmem>>, vector<1x16x4xbf16>
    tpu.vector_store %arg7[%c17_30, %c1_31, %c0_32], %32 {strides = array<i32>} : memref<18x18x4xbf16, #tpu.memory_space<vmem>>, vector<1x16x4xbf16>,
    %c0_33 = arith.constant 0 : index
    %c0_34 = arith.constant 0 : index
    %c0_35 = arith.constant 0 : index
    %34 = vector.load %arg7[%c0_33, %c0_34, %c0_35] : memref<18x18x4xbf16, #tpu.memory_space<vmem>>, vector<18x16x4xbf16>
    %c0_36 = arith.constant 0 : index
    %c0_37 = arith.constant 0 : index
    %c0_38 = arith.constant 0 : index
    %35 = vector.load %arg8[%c0_36, %c0_37, %c0_38] : memref<18x16x12xbf16, #tpu.memory_space<vmem>>, vector<18x16x4xbf16>
    tpu.vector_store %arg8[%c0_36, %c0_37, %c0_38], %34 {strides = array<i32>} : memref<18x16x12xbf16, #tpu.memory_space<vmem>>, vector<18x16x4xbf16>,
    %c0_39 = arith.constant 0 : index
    %c1_40 = arith.constant 1 : index
    %c0_41 = arith.constant 0 : index
    %36 = vector.load %arg7[%c0_39, %c1_40, %c0_41] : memref<18x18x4xbf16, #tpu.memory_space<vmem>>, vector<18x16x4xbf16>
    %c0_42 = arith.constant 0 : index
    %c0_43 = arith.constant 0 : index
    %c4 = arith.constant 4 : index
    %37 = vector.load %arg8[%c0_42, %c0_43, %c4] : memref<18x16x12xbf16, #tpu.memory_space<vmem>>, vector<18x16x4xbf16>
    tpu.vector_store %arg8[%c0_42, %c0_43, %c4], %36 {strides = array<i32>} : memref<18x16x12xbf16, #tpu.memory_space<vmem>>, vector<18x16x4xbf16>,
    %c0_44 = arith.constant 0 : index
    %c2 = arith.constant 2 : index
    %c0_45 = arith.constant 0 : index
    %38 = vector.load %arg7[%c0_44, %c2, %c0_45] : memref<18x18x4xbf16, #tpu.memory_space<vmem>>, vector<18x16x4xbf16>
    %c0_46 = arith.constant 0 : index
    %c0_47 = arith.constant 0 : index
    %c8 = arith.constant 8 : index
    %39 = vector.load %arg8[%c0_46, %c0_47, %c8] : memref<18x16x12xbf16, #tpu.memory_space<vmem>>, vector<18x16x4xbf16>
    tpu.vector_store %arg8[%c0_46, %c0_47, %c8], %38 {strides = array<i32>} : memref<18x16x12xbf16, #tpu.memory_space<vmem>>, vector<18x16x4xbf16>,
    %c0_48 = arith.constant 0 : index
    %c0_49 = arith.constant 0 : index
    %c0_50 = arith.constant 0 : index
    %40 = vector.load %arg8[%c0_48, %c0_49, %c0_50] : memref<18x16x12xbf16, #tpu.memory_space<vmem>>, vector<16x16x12xbf16>
    %41 = vector.shape_cast %40 : vector<16x16x12xbf16> to vector<256x12xbf16>
    %c0_51 = arith.constant 0 : index
    %c0_52 = arith.constant 0 : index
    %c0_53 = arith.constant 0 : index
    %42 = vector.load %arg4[%c0_51, %c0_52, %c0_53] : memref<3x12x8xbf16, #tpu.memory_space<vmem>>, vector<1x12x8xbf16>
    %43 = vector.shape_cast %42 : vector<1x12x8xbf16> to vector<12x8xbf16>
    %cst_54 = arith.constant dense<0.000000e+00> : vector<256x8xf32>
    %44 = tpu.matmul %41, %43, %cst_54 {dimension_numbers = #tpu.dot_dimension_numbers<[1], [0], [0], [1], [0, 0, 1, 1], [], []>} : vector<256x12xbf16>, vector<12x8xbf16>, vector<256x8xf32> -> vector<256x8xf32>
    %c1_55 = arith.constant 1 : index
    %c0_56 = arith.constant 0 : index
    %c0_57 = arith.constant 0 : index
    %45 = vector.load %arg8[%c1_55, %c0_56, %c0_57] : memref<18x16x12xbf16, #tpu.memory_space<vmem>>, vector<16x16x12xbf16>
    %46 = vector.shape_cast %45 : vector<16x16x12xbf16> to vector<256x12xbf16>
    %c1_58 = arith.constant 1 : index
    %c0_59 = arith.constant 0 : index
    %c0_60 = arith.constant 0 : index
    %47 = vector.load %arg4[%c1_58, %c0_59, %c0_60] : memref<3x12x8xbf16, #tpu.memory_space<vmem>>, vector<1x12x8xbf16>
    %48 = vector.shape_cast %47 : vector<1x12x8xbf16> to vector<12x8xbf16>
    %cst_61 = arith.constant dense<0.000000e+00> : vector<256x8xf32>
    %49 = tpu.matmul %46, %48, %cst_61 {dimension_numbers = #tpu.dot_dimension_numbers<[1], [0], [0], [1], [0, 0, 1, 1], [], []>} : vector<256x12xbf16>, vector<12x8xbf16>, vector<256x8xf32> -> vector<256x8xf32>
    %50 = arith.addf %44, %49 : vector<256x8xf32>
    %c2_62 = arith.constant 2 : index
    %c0_63 = arith.constant 0 : index
    %c0_64 = arith.constant 0 : index
    %51 = vector.load %arg8[%c2_62, %c0_63, %c0_64] : memref<18x16x12xbf16, #tpu.memory_space<vmem>>, vector<16x16x12xbf16>
    %52 = vector.shape_cast %51 : vector<16x16x12xbf16> to vector<256x12xbf16>
    %c2_65 = arith.constant 2 : index
    %c0_66 = arith.constant 0 : index
    %c0_67 = arith.constant 0 : index
    %53 = vector.load %arg4[%c2_65, %c0_66, %c0_67] : memref<3x12x8xbf16, #tpu.memory_space<vmem>>, vector<1x12x8xbf16>
    %54 = vector.shape_cast %53 : vector<1x12x8xbf16> to vector<12x8xbf16>
    %cst_68 = arith.constant dense<0.000000e+00> : vector<256x8xf32>
    %55 = tpu.matmul %52, %54, %cst_68 {dimension_numbers = #tpu.dot_dimension_numbers<[1], [0], [0], [1], [0, 0, 1, 1], [], []>} : vector<256x12xbf16>, vector<12x8xbf16>, vector<256x8xf32> -> vector<256x8xf32>
    %56 = arith.addf %50, %55 : vector<256x8xf32>
    %57 = arith.truncf %56 : vector<256x8xf32> to vector<256x8xbf16>
    %c0_69 = arith.constant 0 : index
    %c0_70 = arith.constant 0 : index
    %c0_71 = arith.constant 0 : index
    %58 = vector.load %arg5[%c0_69, %c0_70, %c0_71] : memref<1x256x8xbf16, #tpu.memory_space<vmem>>, vector<1x256x8xbf16>
    %59 = vector.shape_cast %58 : vector<1x256x8xbf16> to vector<256x8xbf16>
    %60 = vector.shape_cast %57 : vector<256x8xbf16> to vector<1x256x8xbf16>
    tpu.vector_store %arg5[%c0_69, %c0_70, %c0_71], %60 {strides = array<i32>} : memref<1x256x8xbf16, #tpu.memory_space<vmem>>, vector<1x256x8xbf16>,
    %cst_72 = arith.constant dense<0.000000e+00> : vector<8xf32>
    %61 = vector.multi_reduction <add>, %56, %cst_72 [0] : vector<256x8xf32> to vector<8xf32>
    %62 = vector.shape_cast %61 : vector<8xf32> to vector<1x8xf32>
    %c0_73 = arith.constant 0 : index
    %c0_74 = arith.constant 0 : index
    %c0_75 = arith.constant 0 : index
    %63 = vector.load %arg6[%c0_73, %c0_74, %c0_75] : memref<1x2x8xf32, #tpu.memory_space<vmem>>, vector<1x1x8xf32>
    %64 = vector.shape_cast %63 : vector<1x1x8xf32> to vector<1x8xf32>
    %65 = vector.shape_cast %62 : vector<1x8xf32> to vector<1x1x8xf32>
    tpu.vector_store %arg6[%c0_73, %c0_74, %c0_75], %65 {strides = array<i32>} : memref<1x2x8xf32, #tpu.memory_space<vmem>>, vector<1x1x8xf32>,
    %66 = arith.mulf %56, %56 : vector<256x8xf32>
    %cst_76 = arith.constant dense<0.000000e+00> : vector<8xf32>
    %67 = vector.multi_reduction <add>, %66, %cst_76 [0] : vector<256x8xf32> to vector<8xf32>
    %68 = vector.shape_cast %67 : vector<8xf32> to vector<1x8xf32>
    %c0_77 = arith.constant 0 : index
    %c1_78 = arith.constant 1 : index
    %c0_79 = arith.constant 0 : index
    %69 = vector.load %arg6[%c0_77, %c1_78, %c0_79] : memref<1x2x8xf32, #tpu.memory_space<vmem>>, vector<1x1x8xf32>
    %70 = vector.shape_cast %69 : vector<1x1x8xf32> to vector<1x8xf32>
    %71 = vector.shape_cast %68 : vector<1x8xf32> to vector<1x1x8xf32>
    tpu.vector_store %arg6[%c0_77, %c1_78, %c0_79], %71 {strides = array<i32>} : memref<1x2x8xf32, #tpu.memory_space<vmem>>, vector<1x1x8xf32>,
    return
  }
  func.func @transform_0(%arg0: i32, %arg1: i32, %arg2: i32) -> (i32, i32, i32, i32) {
    %c0_i32 = arith.constant 0 : i32
    %c0_i32_0 = arith.constant 0 : i32
    %c0_i32_1 = arith.constant 0 : i32
    %c0_i32_2 = arith.constant 0 : i32
    return %arg0, %c0_i32, %c0_i32_0, %c0_i32_1 : i32, i32, i32, i32
  }
  func.func @transform_1(%arg0: i32, %arg1: i32, %arg2: i32) -> (i32, i32, i32) {
    %c0_i32 = arith.constant 0 : i32
    %c0_i32_0 = arith.constant 0 : i32
    %c0_i32_1 = arith.constant 0 : i32
    return %c0_i32, %c0_i32_0, %arg1 : i32, i32, i32
  }
  func.func @transform_2(%arg0: i32, %arg1: i32, %arg2: i32) -> (i32, i32, i32) {
    %c0_i32 = arith.constant 0 : i32
    return %arg0, %arg2, %arg1 : i32, i32, i32
  }
  func.func @transform_3(%arg0: i32, %arg1: i32, %arg2: i32) -> (i32, i32, i32) {
    %c1_i32 = arith.constant 1 : i32
    %0 = arith.muli %arg0, %c1_i32 : i32
    %1 = arith.addi %0, %arg2 : i32
    %c0_i32 = arith.constant 0 : i32
    %c0_i32_0 = arith.constant 0 : i32
    return %1, %c0_i32, %arg1 : i32, i32, i32
  }
}

</mosaic_0001>

<llo_original>
// kernel: conv_bn_relu.3
$region0: #{conv_bn_relu.3}
  #allocation0 [shape = 'u32[]', space=smem, size = 0x4, offset = 0x4, fixed_abs, tag = 'smem constant byte address 0x4 - core index']
  #allocation1 [shape = 'u32[144,128]{1,0:T(1,128)}', space=vmem, size = 0x12000, scoped, tag = 'internal scratch']
  %s0 = inlined_call_operand.vmem [shape: bf16[2,256,8], index: 0, kind: input, shape index: {}]
  %s1 = inlined_call_operand.vmem [shape: f32[2,8], index: 1, kind: input, shape index: {}]
  %s2 = inlined_call_operand.vmem [shape: f32[2,256,8], index: 2, kind: output, shape index: {}]
  %s3 = sld [smem:[#allocation0]]
  $region41: #{conv_bn_relu.3} parent=0
    _
  %s5 = ssub.s32 1, %s3
  %s6 = scalar_select 0, %s5, %s3
  loop: start=0, step=1, limit=4
  $region2: #{conv_bn_relu.3} parent=0 // loop_pre_header
    _
  $region3: #{conv_bn_relu.3} parent=0 // loop_header
    %s8 = sphi 0, %s12
    %p9 = scmp.ge.s32.totalorder %s8, 4
    %s15 = sphi 0, %s34
    %s16 = sphi 0, %s30
    %s17 = sphi 0, %s26
    %s18 = sphi 0, %s15
    %s19 = sphi 0, %s16
    %s20 = sphi 0, %s17
    %s21 = sphi 0, %s18
    %s22 = sphi 0, %s19
    %s23 = sphi 0, %s20
    %s41 = sphi 0, %s43
    %s44 = sphi 0, %s41
    %s45 = sphi 0, %s44
    %s61 = sphi 0, %s45
    %s67 = sphi 0, %s69
    %s70 = sphi 0, %s67
    %s71 = sphi 0, %s70
    %s87 = sphi 0, %s71
    %s97 = sphi 0, %s99
    %s100 = sphi 0, %s97
    %s101 = sphi 0, %s100
    %s117 = sphi 0, %s101
  $region4: #{conv_bn_relu.3} parent=0 // loop_header_branch
    %11 = sbr.rel (%p9) target = $region8
  $region5: #{conv_bn_relu.3} parent=0 // loop_body
    %s13 = ssub.s32 %s8, 1
    %s14 = ssub.s32 %s8, 2
    %s24 = sadd.s32 1, %s17
    %p25 = scmp.ge.s32.totalorder %s24, 1
    %s26 = scalar_select %p25, 0, %s24
    %s27 = sadd.s32 1, %s16
    %s28 = scalar_select %p25, %s27, %s16
    %p29 = scmp.ge.s32.totalorder %s28, 1
    %s30 = scalar_select %p29, 0, %s28
    %s31 = sadd.s32 1, %s15
    %s32 = scalar_select %p29, %s31, %s15
    %p33 = scmp.ge.s32.totalorder %s32, 2
    %s34 = scalar_select %p33, 0, %s32
    %s35 = ssub.s32 %s15, %s34
    %s36 = ssub.s32 %s16, %s30
    %s37 = sor.u32 %s35, %s36
    %s38 = ssub.s32 %s17, %s26
    %s39 = sor.u32 %s37, %s38
    %p40 = scmp.eq.s32.totalorder %s39, 0
    %s42 = sadd.s32 %s41, 1
    %s43 = scalar_select %p40, %s41, %s42
    %p46 = pneg %p40
    %p47 = scmp.eq.s32.totalorder %s8, 1
    %p48 = por %p46, %p47
    %p49 = scmp.ne.s32.totalorder %s41, %s44
    %p50 = scmp.eq.s32.totalorder %s8, 0
    %p51 = por %p49, %p50
    %p52 = scmp.ne.s32.totalorder %s41, %s44
    %p53 = scmp.eq.s32.totalorder %s13, 1
    %p54 = por %p52, %p53
    %p55 = scmp.ne.s32.totalorder %s44, %s45
    %p56 = scmp.eq.s32.totalorder %s13, 0
    %p57 = por %p55, %p56
    %p58 = scmp.ne.s32.totalorder %s44, %s45
    %p59 = scmp.eq.s32.totalorder %s14, 1
    %p60 = por %p58, %p59
    %p62 = scmp.ne.s32.totalorder %s45, %s61
    %p63 = scmp.eq.s32.totalorder %s14, 0
    %p64 = por %p62, %p63
    %s65 = ssub.s32 %s17, %s26
    %p66 = scmp.eq.s32.totalorder %s65, 0
    %s68 = sadd.s32 %s67, 1
    %s69 = scalar_select %p66, %s67, %s68
    %p72 = pneg %p66
    %p73 = scmp.eq.s32.totalorder %s8, 1
    %p74 = por %p72, %p73
    %p75 = scmp.ne.s32.totalorder %s67, %s70
    %p76 = scmp.eq.s32.totalorder %s8, 0
    %p77 = por %p75, %p76
    %p78 = scmp.ne.s32.totalorder %s67, %s70
    %p79 = scmp.eq.s32.totalorder %s13, 1
    %p80 = por %p78, %p79
    %p81 = scmp.ne.s32.totalorder %s70, %s71
    %p82 = scmp.eq.s32.totalorder %s13, 0
    %p83 = por %p81, %p82
    %p84 = scmp.ne.s32.totalorder %s70, %s71
    %p85 = scmp.eq.s32.totalorder %s14, 1
    %p86 = por %p84, %p85
    %p88 = scmp.ne.s32.totalorder %s71, %s87
    %p89 = scmp.eq.s32.totalorder %s14, 0
    %p90 = por %p88, %p89
    %s91 = ssub.s32 %s15, %s34
    %s92 = ssub.s32 %s16, %s30
    %s93 = sor.u32 %s91, %s92
    %s94 = ssub.s32 %s17, %s26
    %s95 = sor.u32 %s93, %s94
    %p96 = scmp.eq.s32.totalorder %s95, 0
    %s98 = sadd.s32 %s97, 1
    %s99 = scalar_select %p96, %s97, %s98
    %p102 = pneg %p96
    %p103 = scmp.eq.s32.totalorder %s8, 1
    %p104 = por %p102, %p103
    %p105 = scmp.ne.s32.totalorder %s97, %s100
    %p106 = scmp.eq.s32.totalorder %s8, 0
    %p107 = por %p105, %p106
    %p108 = scmp.ne.s32.totalorder %s97, %s100
    %p109 = scmp.eq.s32.totalorder %s13, 1
    %p110 = por %p108, %p109
    %p111 = scmp.ne.s32.totalorder %s100, %s101
    %p112 = scmp.eq.s32.totalorder %s13, 0
    %p113 = por %p111, %p112
    %p114 = scmp.ne.s32.totalorder %s100, %s101
    %p115 = scmp.eq.s32.totalorder %s14, 1
    %p116 = por %p114, %p115
    %p118 = scmp.ne.s32.totalorder %s101, %s117
    %p119 = scmp.eq.s32.totalorder %s14, 0
    %p120 = por %p118, %p119
    %p121 = scmp.le.s32.totalorder 1, %s8
    %p122 = scmp.lt.s32.totalorder %s8, 3
    %p123 = pnand %p121, %p122
    %p124 = pneg %p123
    // Predicated region
    $region9: #{conv_bn_relu.3} parent=5 // pred_check
      _
    $region10: #{conv_bn_relu.3} parent=5 // pred_check_branch
      %126 = sbr.rel (%p123) target = $region12
    $region11: #{conv_bn_relu.3} parent=5 // pred_region
      %s127 = ssub.s32 %s8, 1
      // Predicated region
      $region13: #{conv_bn_relu.3} parent=11 // pred_check
        %p128 = pneg %p83
      $region14: #{conv_bn_relu.3} parent=11 // pred_check_branch
        %130 = sbr.rel (%p128) target = $region16
      $region15: #{conv_bn_relu.3} parent=11 // pred_region
        %p131 = scmp.lt.s32.totalorder %s20, 0
        %s132 = scalar_select %p131, %s20, 0
        %s133 = smul.addr %s132, 2
        %s134 = scalar_lea.vmem %s1, %s133
      $region16: #{conv_bn_relu.3} parent=11 // pred_fallthru
        _
    $region12: #{conv_bn_relu.3} parent=5 // pred_fallthru
      _
    %p135 = scmp.lt.s32.totalorder %s8, 2
    // Predicated region
    $region17: #{conv_bn_relu.3} parent=5 // pred_check
      %p136 = pneg %p135
    $region18: #{conv_bn_relu.3} parent=5 // pred_check_branch
      %138 = sbr.rel (%p136) target = $region20
    $region19: #{conv_bn_relu.3} parent=5 // pred_region
      // Predicated region
      $region21: #{conv_bn_relu.3} parent=19 // pred_check
        %p139 = pneg %p51
      $region22: #{conv_bn_relu.3} parent=19 // pred_check_branch
        %141 = sbr.rel (%p139) target = $region24
      $region23: #{conv_bn_relu.3} parent=19 // pred_region
        %s142 = smul.u32 32, %s16
        %p143 = scmp.lt.s32.totalorder %s15, 1
        %s144 = scalar_select %p143, %s15, 1
        %p145 = scmp.lt.s32.totalorder %s142, 31
        %s146 = scalar_select %p145, %s142, 31
        %p147 = scmp.lt.s32.totalorder %s17, 0
        %s148 = scalar_select %p147, %s17, 0
        %s149 = sadd.s32 %s148, %s146
        %s150 = smul.addr %s144, 32
        %s151 = sadd.s32 %s149, %s150
        %s152 = smul.addr %s151, 4
        %s153 = scalar_lea.vmem %s0, %s152
        %s154 = smul.u32 32, %s16
      $region24: #{conv_bn_relu.3} parent=19 // pred_fallthru
        _
    $region20: #{conv_bn_relu.3} parent=5 // pred_fallthru
      _
    %p155 = scmp.le.s32.totalorder 1, %s8
    %p156 = scmp.lt.s32.totalorder %s8, 3
    %p157 = pnand %p155, %p156
    %p158 = pneg %p157
    // Predicated region
    $region25: #{conv_bn_relu.3} parent=5 // pred_check
      _
    $region26: #{conv_bn_relu.3} parent=5 // pred_check_branch
      %160 = sbr.rel (%p157) target = $region28
    $region27: #{conv_bn_relu.3} parent=5 // pred_region
      %s161 = ssub.s32 %s8, 1
      %s162 = smul.u32 32, %s19
      %p163 = scmp.lt.s32.totalorder %s18, 1
      %s164 = scalar_select %p163, %s18, 1
      %p165 = scmp.lt.s32.totalorder %s162, 31
      %s166 = scalar_select %p165, %s162, 31
      %p167 = scmp.lt.s32.totalorder %s20, 0
      %s168 = scalar_select %p167, %s20, 0
      %s169 = sadd.s32 %s168, %s166
      %s170 = smul.addr %s164, 32
      %s171 = sadd.s32 %s169, %s170
      %s172 = smul.addr %s171, 4
      %s173 = scalar_lea.vmem %s0, %s172
      %p174 = pneg %p57
      %p175 = pneg %p54
      %p176 = scmp.lt.s32.totalorder %s20, 0
      %s177 = scalar_select %p176, %s20, 0
      %s178 = smul.addr %s177, 2
      %s179 = scalar_lea.vmem %s1, %s178
      %p180 = pneg %p83
      %p181 = pneg %p80
      %p182 = pneg %p113
      %p183 = pneg %p110
      %s184 = smul.u32 32, %s19
      %p185 = scmp.lt.s32.totalorder %s18, 1
      %s186 = scalar_select %p185, %s18, 1
      %p187 = scmp.lt.s32.totalorder %s184, 31
      %s188 = scalar_select %p187, %s184, 31
      %p189 = scmp.lt.s32.totalorder %s20, 0
      %s190 = scalar_select %p189, %s20, 0
      %s191 = sadd.s32 %s190, %s188
      %s192 = smul.addr %s186, 32
      %s193 = sadd.s32 %s191, %s192
      %s194 = smul.addr %s193, 8
      %s195 = scalar_lea.vmem %s2, %s194
      %s196 = smul.u32 32, %s19
      %p197 = scmp.lt.s32.totalorder %s18, 1
      %s198 = scalar_select %p197, %s18, 1
      %p199 = scmp.lt.s32.totalorder %s196, 31
      %s200 = scalar_select %p199, %s196, 31
      %p201 = scmp.lt.s32.totalorder %s20, 0
      %s202 = scalar_select %p201, %s20, 0
      %s203 = sadd.s32 %s202, %s200
      %s204 = smul.addr %s198, 32
      %s205 = sadd.s32 %s203, %s204
      %s206 = smul.addr %s205, 4
      %s207 = scalar_lea.vmem %s0, %s206
      %s208 = smul.u32 32, %s19
      %p209 = scmp.lt.s32.totalorder %s20, 0
      %s210 = scalar_select %p209, %s20, 0
      %s211 = smul.addr %s210, 2
      %s212 = scalar_lea.vmem %s1, %s211
      %s213 = smul.u32 32, %s19
      %p214 = scmp.lt.s32.totalorder %s18, 1
      %s215 = scalar_select %p214, %s18, 1
      %p216 = scmp.lt.s32.totalorder %s213, 31
      %s217 = scalar_select %p216, %s213, 31
      %p218 = scmp.lt.s32.totalorder %s20, 0
      %s219 = scalar_select %p218, %s20, 0
      %s220 = sadd.s32 %s219, %s217
      %s221 = smul.addr %s215, 32
      %s222 = sadd.s32 %s220, %s221
      %s223 = smul.addr %s222, 8
      %s224 = scalar_lea.vmem %s2, %s223
      %s225 = smul.u32 32, %s19
      %v226 = vld [vmem:[%s212] sm:$0x1]
      %v227 = vld [vmem:[%s212 + $0x1] sm:$0x1]
      %v228 = vld [vmem:[%s207] sm:$0xf]
      %v229 = vld [vmem:[%s207 + $0x4] sm:$0xf]
      %v230 = vld [vmem:[%s207 + $0x8] sm:$0xf]
      %v231 = vld [vmem:[%s207 + $0xc] sm:$0xf]
      %v232 = vld [vmem:[%s207 + $0x10] sm:$0xf]
      %v233 = vld [vmem:[%s207 + $0x14] sm:$0xf]
      %v234 = vld [vmem:[%s207 + $0x18] sm:$0xf]
      %v235 = vld [vmem:[%s207 + $0x1c] sm:$0xf]
      %v236 = vld [vmem:[%s207 + $0x20] sm:$0xf]
      %v237 = vld [vmem:[%s207 + $0x24] sm:$0xf]
      %v238 = vld [vmem:[%s207 + $0x28] sm:$0xf]
      %v239 = vld [vmem:[%s207 + $0x2c] sm:$0xf]
      %v240 = vld [vmem:[%s207 + $0x30] sm:$0xf]
      %v241 = vld [vmem:[%s207 + $0x34] sm:$0xf]
      %v242 = vld [vmem:[%s207 + $0x38] sm:$0xf]
      %v243 = vld [vmem:[%s207 + $0x3c] sm:$0xf]
      %v244 = vld [vmem:[%s207 + $0x40] sm:$0xf]
      %v245 = vld [vmem:[%s207 + $0x44] sm:$0xf]
      %v246 = vld [vmem:[%s207 + $0x48] sm:$0xf]
      %v247 = vld [vmem:[%s207 + $0x4c] sm:$0xf]
      %v248 = vld [vmem:[%s207 + $0x50] sm:$0xf]
      %v249 = vld [vmem:[%s207 + $0x54] sm:$0xf]
      %v250 = vld [vmem:[%s207 + $0x58] sm:$0xf]
      %v251 = vld [vmem:[%s207 + $0x5c] sm:$0xf]
      %v252 = vld [vmem:[%s207 + $0x60] sm:$0xf]
      %v253 = vld [vmem:[%s207 + $0x64] sm:$0xf]
      %v254 = vld [vmem:[%s207 + $0x68] sm:$0xf]
      %v255 = vld [vmem:[%s207 + $0x6c] sm:$0xf]
      %v256 = vld [vmem:[%s207 + $0x70] sm:$0xf]
      %v257 = vld [vmem:[%s207 + $0x74] sm:$0xf]
      %v258 = vld [vmem:[%s207 + $0x78] sm:$0xf]
      %v259 = vld [vmem:[%s207 + $0x7c] sm:$0xf]
      %v260 = vunpack.c.l.bf16 %v228
      %v261 = vunpack.c.l.bf16 %v229
      %v262 = vunpack.c.l.bf16 %v230
      %v263 = vunpack.c.l.bf16 %v231
      %v264 = vunpack.c.l.bf16 %v232
      %v265 = vunpack.c.l.bf16 %v233
      %v266 = vunpack.c.l.bf16 %v234
      %v267 = vunpack.c.l.bf16 %v235
      %v268 = vunpack.c.l.bf16 %v236
      %v269 = vunpack.c.l.bf16 %v237
      %v270 = vunpack.c.l.bf16 %v238
      %v271 = vunpack.c.l.bf16 %v239
      %v272 = vunpack.c.l.bf16 %v240
      %v273 = vunpack.c.l.bf16 %v241
      %v274 = vunpack.c.l.bf16 %v242
      %v275 = vunpack.c.l.bf16 %v243
      %v276 = vunpack.c.l.bf16 %v244
      %v277 = vunpack.c.l.bf16 %v245
      %v278 = vunpack.c.l.bf16 %v246
      %v279 = vunpack.c.l.bf16 %v247
      %v280 = vunpack.c.l.bf16 %v248
      %v281 = vunpack.c.l.bf16 %v249
      %v282 = vunpack.c.l.bf16 %v250
      %v283 = vunpack.c.l.bf16 %v251
      %v284 = vunpack.c.l.bf16 %v252
      %v285 = vunpack.c.l.bf16 %v253
      %v286 = vunpack.c.l.bf16 %v254
      %v287 = vunpack.c.l.bf16 %v255
      %v288 = vunpack.c.l.bf16 %v256
      %v289 = vunpack.c.l.bf16 %v257
      %v290 = vunpack.c.l.bf16 %v258
      %v291 = vunpack.c.l.bf16 %v259
      %v292 = vlaneseq
      %v293 = vshrl.u32 %v292, 7
      %v294 = vsub.s32 0, %v293
      %v295 = vrot.slane %v226, %v294
      %v296 = vmul.f32 %v260, %v295
      %v297 = vmul.f32 %v261, %v295
      %v298 = vmul.f32 %v262, %v295
      %v299 = vmul.f32 %v263, %v295
      %v300 = vmul.f32 %v264, %v295
      %v301 = vmul.f32 %v265, %v295
      %v302 = vmul.f32 %v266, %v295
      %v303 = vmul.f32 %v267, %v295
      %v304 = vmul.f32 %v268, %v295
      %v305 = vmul.f32 %v269, %v295
      %v306 = vmul.f32 %v270, %v295
      %v307 = vmul.f32 %v271, %v295
      %v308 = vmul.f32 %v272, %v295
      %v309 = vmul.f32 %v273, %v295
      %v310 = vmul.f32 %v274, %v295
      %v311 = vmul.f32 %v275, %v295
      %v312 = vmul.f32 %v276, %v295
      %v313 = vmul.f32 %v277, %v295
      %v314 = vmul.f32 %v278, %v295
      %v315 = vmul.f32 %v279, %v295
      %v316 = vmul.f32 %v280, %v295
      %v317 = vmul.f32 %v281, %v295
      %v318 = vmul.f32 %v282, %v295
      %v319 = vmul.f32 %v283, %v295
      %v320 = vmul.f32 %v284, %v295
      %v321 = vmul.f32 %v285, %v295
      %v322 = vmul.f32 %v286, %v295
      %v323 = vmul.f32 %v287, %v295
      %v324 = vmul.f32 %v288, %v295
      %v325 = vmul.f32 %v289, %v295
      %v326 = vmul.f32 %v290, %v295
      %v327 = vmul.f32 %v291, %v295
      %v328 = vlaneseq
      %v329 = vshrl.u32 %v328, 7
      %v330 = vsub.s32 0, %v329
      %v331 = vrot.slane %v227, %v330
      %v332 = vadd.f32 %v296, %v331
      %v333 = vadd.f32 %v297, %v331
      %v334 = vadd.f32 %v298, %v331
      %v335 = vadd.f32 %v299, %v331
      %v336 = vadd.f32 %v300, %v331
      %v337 = vadd.f32 %v301, %v331
      %v338 = vadd.f32 %v302, %v331
      %v339 = vadd.f32 %v303, %v331
      %v340 = vadd.f32 %v304, %v331
      %v341 = vadd.f32 %v305, %v331
      %v342 = vadd.f32 %v306, %v331
      %v343 = vadd.f32 %v307, %v331
      %v344 = vadd.f32 %v308, %v331
      %v345 = vadd.f32 %v309, %v331
      %v346 = vadd.f32 %v310, %v331
      %v347 = vadd.f32 %v311, %v331
      %v348 = vadd.f32 %v312, %v331
      %v349 = vadd.f32 %v313, %v331
      %v350 = vadd.f32 %v314, %v331
      %v351 = vadd.f32 %v315, %v331
      %v352 = vadd.f32 %v316, %v331
      %v353 = vadd.f32 %v317, %v331
      %v354 = vadd.f32 %v318, %v331
      %v355 = vadd.f32 %v319, %v331
      %v356 = vadd.f32 %v320, %v331
      %v357 = vadd.f32 %v321, %v331
      %v358 = vadd.f32 %v322, %v331
      %v359 = vadd.f32 %v323, %v331
      %v360 = vadd.f32 %v324, %v331
      %v361 = vadd.f32 %v325, %v331
      %v362 = vadd.f32 %v326, %v331
      %v363 = vadd.f32 %v327, %v331
      %v364 = vmax.f32 %v332, 0.0
      %v365 = vmax.f32 %v333, 0.0
      %v366 = vmax.f32 %v334, 0.0
      %v367 = vmax.f32 %v335, 0.0
      %v368 = vmax.f32 %v336, 0.0
      %v369 = vmax.f32 %v337, 0.0
      %v370 = vmax.f32 %v338, 0.0
      %v371 = vmax.f32 %v339, 0.0
      %v372 = vmax.f32 %v340, 0.0
      %v373 = vmax.f32 %v341, 0.0
      %v374 = vmax.f32 %v342, 0.0
      %v375 = vmax.f32 %v343, 0.0
      %v376 = vmax.f32 %v344, 0.0
      %v377 = vmax.f32 %v345, 0.0
      %v378 = vmax.f32 %v346, 0.0
      %v379 = vmax.f32 %v347, 0.0
      %v380 = vmax.f32 %v348, 0.0
      %v381 = vmax.f32 %v349, 0.0
      %v382 = vmax.f32 %v350, 0.0
      %v383 = vmax.f32 %v351, 0.0
      %v384 = vmax.f32 %v352, 0.0
      %v385 = vmax.f32 %v353, 0.0
      %v386 = vmax.f32 %v354, 0.0
      %v387 = vmax.f32 %v355, 0.0
      %v388 = vmax.f32 %v356, 0.0
      %v389 = vmax.f32 %v357, 0.0
      %v390 = vmax.f32 %v358, 0.0
      %v391 = vmax.f32 %v359, 0.0
      %v392 = vmax.f32 %v360, 0.0
      %v393 = vmax.f32 %v361, 0.0
      %v394 = vmax.f32 %v362, 0.0
      %v395 = vmax.f32 %v363, 0.0
      %vm396 = vcmask 64512
      %397 = vst.msk [vmem:[%s224] sm:$0xff] %vm396, %v364
      %398 = vst.msk [vmem:[%s224 + $0x8] sm:$0xff] %vm396, %v365
      %399 = vst.msk [vmem:[%s224 + $0x10] sm:$0xff] %vm396, %v366
      %400 = vst.msk [vmem:[%s224 + $0x18] sm:$0xff] %vm396, %v367
      %401 = vst.msk [vmem:[%s224 + $0x20] sm:$0xff] %vm396, %v368
      %402 = vst.msk [vmem:[%s224 + $0x28] sm:$0xff] %vm396, %v369
      %403 = vst.msk [vmem:[%s224 + $0x30] sm:$0xff] %vm396, %v370
      %404 = vst.msk [vmem:[%s224 + $0x38] sm:$0xff] %vm396, %v371
      %405 = vst.msk [vmem:[%s224 + $0x40] sm:$0xff] %vm396, %v372
      %406 = vst.msk [vmem:[%s224 + $0x48] sm:$0xff] %vm396, %v373
      %407 = vst.msk [vmem:[%s224 + $0x50] sm:$0xff] %vm396, %v374
      %408 = vst.msk [vmem:[%s224 + $0x58] sm:$0xff] %vm396, %v375
      %409 = vst.msk [vmem:[%s224 + $0x60] sm:$0xff] %vm396, %v376
      %410 = vst.msk [vmem:[%s224 + $0x68] sm:$0xff] %vm396, %v377
      %411 = vst.msk [vmem:[%s224 + $0x70] sm:$0xff] %vm396, %v378
      %412 = vst.msk [vmem:[%s224 + $0x78] sm:$0xff] %vm396, %v379
      %413 = vst.msk [vmem:[%s224 + $0x80] sm:$0xff] %vm396, %v380
      %414 = vst.msk [vmem:[%s224 + $0x88] sm:$0xff] %vm396, %v381
      %415 = vst.msk [vmem:[%s224 + $0x90] sm:$0xff] %vm396, %v382
      %416 = vst.msk [vmem:[%s224 + $0x98] sm:$0xff] %vm396, %v383
      %417 = vst.msk [vmem:[%s224 + $0xa0] sm:$0xff] %vm396, %v384
      %418 = vst.msk [vmem:[%s224 + $0xa8] sm:$0xff] %vm396, %v385
      %419 = vst.msk [vmem:[%s224 + $0xb0] sm:$0xff] %vm396, %v386
      %420 = vst.msk [vmem:[%s224 + $0xb8] sm:$0xff] %vm396, %v387
      %421 = vst.msk [vmem:[%s224 + $0xc0] sm:$0xff] %vm396, %v388
      %422 = vst.msk [vmem:[%s224 + $0xc8] sm:$0xff] %vm396, %v389
      %423 = vst.msk [vmem:[%s224 + $0xd0] sm:$0xff] %vm396, %v390
      %424 = vst.msk [vmem:[%s224 + $0xd8] sm:$0xff] %vm396, %v391
      %425 = vst.msk [vmem:[%s224 + $0xe0] sm:$0xff] %vm396, %v392
      %426 = vst.msk [vmem:[%s224 + $0xe8] sm:$0xff] %vm396, %v393
      %427 = vst.msk [vmem:[%s224 + $0xf0] sm:$0xff] %vm396, %v394
      %428 = vst.msk [vmem:[%s224 + $0xf8] sm:$0xff] %vm396, %v395
      %s429 = smul.u32 32, %s19
      %p430 = scmp.lt.s32.totalorder %s18, 1
      %s431 = scalar_select %p430, %s18, 1
      %p432 = scmp.lt.s32.totalorder %s429, 31
      %s433 = scalar_select %p432, %s429, 31
      %p434 = scmp.lt.s32.totalorder %s20, 0
      %s435 = scalar_select %p434, %s20, 0
      %s436 = sadd.s32 %s435, %s433
      %s437 = smul.addr %s431, 32
      %s438 = sadd.s32 %s436, %s437
      %s439 = smul.addr %s438, 8
      %s440 = scalar_lea.vmem %s2, %s439
      // Predicated region
      $region29: #{conv_bn_relu.3} parent=27 // pred_check
        %p441 = pneg %p110
      $region30: #{conv_bn_relu.3} parent=27 // pred_check_branch
        %443 = sbr.rel (%p441) target = $region32
      $region31: #{conv_bn_relu.3} parent=27 // pred_region
        %s444 = smul.u32 32, %s19
      $region32: #{conv_bn_relu.3} parent=27 // pred_fallthru
        _
    $region28: #{conv_bn_relu.3} parent=5 // pred_fallthru
      _
    %p445 = scmp.le.s32.totalorder 2, %s8
    // Predicated region
    $region33: #{conv_bn_relu.3} parent=5 // pred_check
      %p446 = pneg %p445
    $region34: #{conv_bn_relu.3} parent=5 // pred_check_branch
      %448 = sbr.rel (%p446) target = $region36
    $region35: #{conv_bn_relu.3} parent=5 // pred_region
      %s449 = ssub.s32 %s8, 2
      // Predicated region
      $region37: #{conv_bn_relu.3} parent=35 // pred_check
        %p450 = pneg %p116
      $region38: #{conv_bn_relu.3} parent=35 // pred_check_branch
        %452 = sbr.rel (%p450) target = $region40
      $region39: #{conv_bn_relu.3} parent=35 // pred_region
        %s453 = smul.u32 32, %s22
        %p454 = scmp.lt.s32.totalorder %s21, 1
        %s455 = scalar_select %p454, %s21, 1
        %p456 = scmp.lt.s32.totalorder %s453, 31
        %s457 = scalar_select %p456, %s453, 31
        %p458 = scmp.lt.s32.totalorder %s23, 0
        %s459 = scalar_select %p458, %s23, 0
        %s460 = sadd.s32 %s459, %s457
        %s461 = smul.addr %s455, 32
        %s462 = sadd.s32 %s460, %s461
        %s463 = smul.addr %s462, 8
        %s464 = scalar_lea.vmem %s2, %s463
      $region40: #{conv_bn_relu.3} parent=35 // pred_fallthru
        _
    $region36: #{conv_bn_relu.3} parent=5 // pred_fallthru
      _
  $region6: #{conv_bn_relu.3} parent=0 // loop_footer
    %s12 = sadd.s32 1, %s8
  $region7: #{conv_bn_relu.3} parent=0 // loop_footer_branch
    %7 = sbr.rel target = $region3
  $region8: #{conv_bn_relu.3} parent=0 // loop_exit
    _

// kernel: conv_bn_relu.2
$region0: #{conv_bn_relu.2}
  #allocation0 [shape = 'u32[]', space=smem, size = 0x4, offset = 0x4, fixed_abs, tag = 'smem constant byte address 0x4 - core index']
  #allocation1 [shape = 'u32[144,128]{1,0:T(1,128)}', space=vmem, size = 0x12000, scoped, tag = 'internal scratch']
  #allocation2 [shape = 'bf16[18,18,4]{2,1,0:T(8,128)(2,1)}', space=vmem, size = 0x1b000, scoped, tag = 'scratch operand']
  #allocation3 [shape = 'bf16[18,16,12]{2,1,0:T(16,128)(2,1)}', space=vmem, size = 0x12000, scoped, tag = 'scratch operand']
  %s0 = inlined_call_operand.vmem [shape: bf16[2,16,16,4], index: 0, kind: input, shape index: {}]
  %s1 = inlined_call_operand.vmem [shape: bf16[3,12,8], index: 1, kind: input, shape index: {}]
  %s2 = inlined_call_operand.vmem [shape: bf16[2,256,8], index: 2, kind: output, shape index: {0}]
  %s3 = inlined_call_operand.vmem [shape: f32[2,2,8], index: 3, kind: output, shape index: {1}]
  %4 = xla_tuple %s2, %s3
  %s5 = sld [smem:[#allocation0]]
  $region49: #{conv_bn_relu.2} parent=0
    _
  %s7 = ssub.s32 1, %s5
  %s8 = scalar_select 0, %s7, %s5
  loop: start=0, step=1, limit=4
  $region2: #{conv_bn_relu.2} parent=0 // loop_pre_header
    _
  $region3: #{conv_bn_relu.2} parent=0 // loop_header
    %s10 = sphi 0, %s14
    %p11 = scmp.ge.s32.totalorder %s10, 4
    %s17 = sphi 0, %s36
    %s18 = sphi 0, %s32
    %s19 = sphi 0, %s28
    %s20 = sphi 0, %s17
    %s21 = sphi 0, %s18
    %s22 = sphi 0, %s19
    %s23 = sphi 0, %s20
    %s24 = sphi 0, %s21
    %s25 = sphi 0, %s22
    %s39 = sphi 0, %s41
    %s42 = sphi 0, %s39
    %s43 = sphi 0, %s42
    %s59 = sphi 0, %s43
    %s65 = sphi 0, %s67
    %s68 = sphi 0, %s65
    %s69 = sphi 0, %s68
    %s85 = sphi 0, %s69
    %s95 = sphi 0, %s97
    %s98 = sphi 0, %s95
    %s99 = sphi 0, %s98
    %s115 = sphi 0, %s99
    %s125 = sphi 0, %s127
    %s128 = sphi 0, %s125
    %s129 = sphi 0, %s128
    %s145 = sphi 0, %s129
  $region4: #{conv_bn_relu.2} parent=0 // loop_header_branch
    %13 = sbr.rel (%p11) target = $region8
  $region5: #{conv_bn_relu.2} parent=0 // loop_body
    %s15 = ssub.s32 %s10, 1
    %s16 = ssub.s32 %s10, 2
    %s26 = sadd.s32 1, %s19
    %p27 = scmp.ge.s32.totalorder %s26, 1
    %s28 = scalar_select %p27, 0, %s26
    %s29 = sadd.s32 1, %s18
    %s30 = scalar_select %p27, %s29, %s18
    %p31 = scmp.ge.s32.totalorder %s30, 1
    %s32 = scalar_select %p31, 0, %s30
    %s33 = sadd.s32 1, %s17
    %s34 = scalar_select %p31, %s33, %s17
    %p35 = scmp.ge.s32.totalorder %s34, 2
    %s36 = scalar_select %p35, 0, %s34
    %s37 = ssub.s32 %s17, %s36
    %p38 = scmp.eq.s32.totalorder %s37, 0
    %s40 = sadd.s32 %s39, 1
    %s41 = scalar_select %p38, %s39, %s40
    %p44 = pneg %p38
    %p45 = scmp.eq.s32.totalorder %s10, 1
    %p46 = por %p44, %p45
    %p47 = scmp.ne.s32.totalorder %s39, %s42
    %p48 = scmp.eq.s32.totalorder %s10, 0
    %p49 = por %p47, %p48
    %p50 = scmp.ne.s32.totalorder %s39, %s42
    %p51 = scmp.eq.s32.totalorder %s15, 1
    %p52 = por %p50, %p51
    %p53 = scmp.ne.s32.totalorder %s42, %s43
    %p54 = scmp.eq.s32.totalorder %s15, 0
    %p55 = por %p53, %p54
    %p56 = scmp.ne.s32.totalorder %s42, %s43
    %p57 = scmp.eq.s32.totalorder %s16, 1
    %p58 = por %p56, %p57
    %p60 = scmp.ne.s32.totalorder %s43, %s59
    %p61 = scmp.eq.s32.totalorder %s16, 0
    %p62 = por %p60, %p61
    %s63 = ssub.s32 %s18, %s32
    %p64 = scmp.eq.s32.totalorder %s63, 0
    %s66 = sadd.s32 %s65, 1
    %s67 = scalar_select %p64, %s65, %s66
    %p70 = pneg %p64
    %p71 = scmp.eq.s32.totalorder %s10, 1
    %p72 = por %p70, %p71
    %p73 = scmp.ne.s32.totalorder %s65, %s68
    %p74 = scmp.eq.s32.totalorder %s10, 0
    %p75 = por %p73, %p74
    %p76 = scmp.ne.s32.totalorder %s65, %s68
    %p77 = scmp.eq.s32.totalorder %s15, 1
    %p78 = por %p76, %p77
    %p79 = scmp.ne.s32.totalorder %s68, %s69
    %p80 = scmp.eq.s32.totalorder %s15, 0
    %p81 = por %p79, %p80
    %p82 = scmp.ne.s32.totalorder %s68, %s69
    %p83 = scmp.eq.s32.totalorder %s16, 1
    %p84 = por %p82, %p83
    %p86 = scmp.ne.s32.totalorder %s69, %s85
    %p87 = scmp.eq.s32.totalorder %s16, 0
    %p88 = por %p86, %p87
    %s89 = ssub.s32 %s17, %s36
    %s90 = ssub.s32 %s19, %s28
    %s91 = sor.u32 %s89, %s90
    %s92 = ssub.s32 %s18, %s32
    %s93 = sor.u32 %s91, %s92
    %p94 = scmp.eq.s32.totalorder %s93, 0
    %s96 = sadd.s32 %s95, 1
    %s97 = scalar_select %p94, %s95, %s96
    %p100 = pneg %p94
    %p101 = scmp.eq.s32.totalorder %s10, 1
    %p102 = por %p100, %p101
    %p103 = scmp.ne.s32.totalorder %s95, %s98
    %p104 = scmp.eq.s32.totalorder %s10, 0
    %p105 = por %p103, %p104
    %p106 = scmp.ne.s32.totalorder %s95, %s98
    %p107 = scmp.eq.s32.totalorder %s15, 1
    %p108 = por %p106, %p107
    %p109 = scmp.ne.s32.totalorder %s98, %s99
    %p110 = scmp.eq.s32.totalorder %s15, 0
    %p111 = por %p109, %p110
    %p112 = scmp.ne.s32.totalorder %s98, %s99
    %p113 = scmp.eq.s32.totalorder %s16, 1
    %p114 = por %p112, %p113
    %p116 = scmp.ne.s32.totalorder %s99, %s115
    %p117 = scmp.eq.s32.totalorder %s16, 0
    %p118 = por %p116, %p117
    %s119 = sadd.s32 %s17, %s19
    %s120 = sadd.s32 %s36, %s28
    %s121 = ssub.s32 %s119, %s120
    %s122 = ssub.s32 %s18, %s32
    %s123 = sor.u32 %s121, %s122
    %p124 = scmp.eq.s32.totalorder %s123, 0
    %s126 = sadd.s32 %s125, 1
    %s127 = scalar_select %p124, %s125, %s126
    %p130 = pneg %p124
    %p131 = scmp.eq.s32.totalorder %s10, 1
    %p132 = por %p130, %p131
    %p133 = scmp.ne.s32.totalorder %s125, %s128
    %p134 = scmp.eq.s32.totalorder %s10, 0
    %p135 = por %p133, %p134
    %p136 = scmp.ne.s32.totalorder %s125, %s128
    %p137 = scmp.eq.s32.totalorder %s15, 1
    %p138 = por %p136, %p137
    %p139 = scmp.ne.s32.totalorder %s128, %s129
    %p140 = scmp.eq.s32.totalorder %s15, 0
    %p141 = por %p139, %p140
    %p142 = scmp.ne.s32.totalorder %s128, %s129
    %p143 = scmp.eq.s32.totalorder %s16, 1
    %p144 = por %p142, %p143
    %p146 = scmp.ne.s32.totalorder %s129, %s145
    %p147 = scmp.eq.s32.totalorder %s16, 0
    %p148 = por %p146, %p147
    %p149 = scmp.le.s32.totalorder 1, %s10
    %p150 = scmp.lt.s32.totalorder %s10, 3
    %p151 = pnand %p149, %p150
    %p152 = pneg %p151
    // Predicated region
    $region9: #{conv_bn_relu.2} parent=5 // pred_check
      _
    $region10: #{conv_bn_relu.2} parent=5 // pred_check_branch
      %154 = sbr.rel (%p151) target = $region12
    $region11: #{conv_bn_relu.2} parent=5 // pred_region
      %s155 = ssub.s32 %s10, 1
      // Predicated region
      $region13: #{conv_bn_relu.2} parent=11 // pred_check
        %p156 = pneg %p81
      $region14: #{conv_bn_relu.2} parent=11 // pred_check_branch
        %158 = sbr.rel (%p156) target = $region16
      $region15: #{conv_bn_relu.2} parent=11 // pred_region
        %p159 = scmp.lt.s32.totalorder %s21, 0
        %s160 = scalar_select %p159, %s21, 0
        %s161 = smul.addr %s160, 4
        %s162 = scalar_lea.vmem %s1, %s161
      $region16: #{conv_bn_relu.2} parent=11 // pred_fallthru
        _
    $region12: #{conv_bn_relu.2} parent=5 // pred_fallthru
      _
    %p163 = scmp.lt.s32.totalorder %s10, 2
    // Predicated region
    $region17: #{conv_bn_relu.2} parent=5 // pred_check
      %p164 = pneg %p163
    $region18: #{conv_bn_relu.2} parent=5 // pred_check_branch
      %166 = sbr.rel (%p164) target = $region20
    $region19: #{conv_bn_relu.2} parent=5 // pred_region
      // Predicated region
      $region21: #{conv_bn_relu.2} parent=19 // pred_check
        %p167 = pneg %p49
      $region22: #{conv_bn_relu.2} parent=19 // pred_check_branch
        %169 = sbr.rel (%p167) target = $region24
      $region23: #{conv_bn_relu.2} parent=19 // pred_region
        %p170 = scmp.lt.s32.totalorder %s17, 1
        %s171 = scalar_select %p170, %s17, 1
        %s172 = smul.addr %s171, 32
        %s173 = smul.addr %s172, 4
        %s174 = scalar_lea.vmem %s0, %s173
      $region24: #{conv_bn_relu.2} parent=19 // pred_fallthru
        _
    $region20: #{conv_bn_relu.2} parent=5 // pred_fallthru
      _
    %p175 = scmp.le.s32.totalorder 1, %s10
    %p176 = scmp.lt.s32.totalorder %s10, 3
    %p177 = pnand %p175, %p176
    %p178 = pneg %p177
    // Predicated region
    $region25: #{conv_bn_relu.2} parent=5 // pred_check
      _
    $region26: #{conv_bn_relu.2} parent=5 // pred_check_branch
      %180 = sbr.rel (%p177) target = $region28
    $region27: #{conv_bn_relu.2} parent=5 // pred_region
      %s181 = ssub.s32 %s10, 1
      %p182 = scmp.lt.s32.totalorder %s20, 1
      %s183 = scalar_select %p182, %s20, 1
      %s184 = smul.addr %s183, 32
      %s185 = smul.addr %s184, 4
      %s186 = scalar_lea.vmem %s0, %s185
      %p187 = pneg %p55
      %p188 = pneg %p52
      %p189 = scmp.lt.s32.totalorder %s21, 0
      %s190 = scalar_select %p189, %s21, 0
      %s191 = smul.addr %s190, 4
      %s192 = scalar_lea.vmem %s1, %s191
      %p193 = pneg %p81
      %p194 = pneg %p78
      %p195 = pneg %p111
      %p196 = pneg %p108
      %s197 = smul.u32 32, %s22
      %p198 = scmp.lt.s32.totalorder %s20, 1
      %s199 = scalar_select %p198, %s20, 1
      %p200 = scmp.lt.s32.totalorder %s197, 31
      %s201 = scalar_select %p200, %s197, 31
      %p202 = scmp.lt.s32.totalorder %s21, 0
      %s203 = scalar_select %p202, %s21, 0
      %s204 = sadd.s32 %s203, %s201
      %s205 = smul.addr %s199, 32
      %s206 = sadd.s32 %s204, %s205
      %s207 = smul.addr %s206, 4
      %s208 = scalar_lea.vmem %s2, %s207
      %p209 = pneg %p141
      %p210 = pneg %p138
      %s211 = sadd.s32 %s20, %s22
      %p212 = scmp.lt.s32.totalorder %s211, 1
      %s213 = scalar_select %p212, %s211, 1
      %p214 = scmp.lt.s32.totalorder %s21, 0
      %s215 = scalar_select %p214, %s21, 0
      %s216 = sadd.s32 %s215, %s213
      %s217 = smul.addr %s216, 2
      %s218 = scalar_lea.vmem %s3, %s217
      %p219 = scmp.lt.s32.totalorder %s20, 1
      %s220 = scalar_select %p219, %s20, 1
      %s221 = smul.addr %s220, 32
      %s222 = smul.addr %s221, 4
      %s223 = scalar_lea.vmem %s0, %s222
      %p224 = scmp.lt.s32.totalorder %s21, 0
      %s225 = scalar_select %p224, %s21, 0
      %s226 = smul.addr %s225, 4
      %s227 = scalar_lea.vmem %s1, %s226
      %s228 = smul.u32 32, %s22
      %p229 = scmp.lt.s32.totalorder %s20, 1
      %s230 = scalar_select %p229, %s20, 1
      %p231 = scmp.lt.s32.totalorder %s228, 31
      %s232 = scalar_select %p231, %s228, 31
      %p233 = scmp.lt.s32.totalorder %s21, 0
      %s234 = scalar_select %p233, %s21, 0
      %s235 = sadd.s32 %s234, %s232
      %s236 = smul.addr %s230, 32
      %s237 = sadd.s32 %s235, %s236
      %s238 = smul.addr %s237, 4
      %s239 = scalar_lea.vmem %s2, %s238
      %s240 = smul.u32 32, %s22
      %s241 = sadd.s32 %s20, %s22
      %p242 = scmp.lt.s32.totalorder %s241, 1
      %s243 = scalar_select %p242, %s241, 1
      %p244 = scmp.lt.s32.totalorder %s21, 0
      %s245 = scalar_select %p244, %s21, 0
      %s246 = sadd.s32 %s245, %s243
      %s247 = smul.addr %s246, 2
      %s248 = scalar_lea.vmem %s3, %s247
      %s249 = sadd.s32 %s20, %s22
      %s251 = smul.u32 %s22, 16
      %vm252 = vcmask 24576
      %vm253 = vsmask.f32 256
      %vm254 = vmand %vm252, %vm253
      %v255 = vld [vmem:[#allocation2] sm:$0x1]
      %v256 = vsel %vm254, 0, %v255
      %257 = vst [vmem:[#allocation2] sm:$0x1] %v256
      %v258 = vld [vmem:[#allocation2 + $0xc] sm:$0x1]
      %v259 = vsel %vm254, 0, %v258
      %260 = vst [vmem:[#allocation2 + $0xc] sm:$0x1] %v259
      %v261 = vld [vmem:[#allocation2 + $0x18] sm:$0x1]
      %v262 = vsel %vm254, 0, %v261
      %263 = vst [vmem:[#allocation2 + $0x18] sm:$0x1] %v262
      %v264 = vld [vmem:[#allocation2 + $0x24] sm:$0x1]
      %v265 = vsel %vm254, 0, %v264
      %266 = vst [vmem:[#allocation2 + $0x24] sm:$0x1] %v265
      %v267 = vld [vmem:[#allocation2 + $0x30] sm:$0x1]
      %v268 = vsel %vm254, 0, %v267
      %269 = vst [vmem:[#allocation2 + $0x30] sm:$0x1] %v268
      %v270 = vld [vmem:[#allocation2 + $0x3c] sm:$0x1]
      %v271 = vsel %vm254, 0, %v270
      %272 = vst [vmem:[#allocation2 + $0x3c] sm:$0x1] %v271
      %v273 = vld [vmem:[#allocation2 + $0x48] sm:$0x1]
      %v274 = vsel %vm254, 0, %v273
      %275 = vst [vmem:[#allocation2 + $0x48] sm:$0x1] %v274
      %v276 = vld [vmem:[#allocation2 + $0x54] sm:$0x1]
      %v277 = vsel %vm254, 0, %v276
      %278 = vst [vmem:[#allocation2 + $0x54] sm:$0x1] %v277
      %v279 = vld [vmem:[#allocation2 + $0x60] sm:$0x1]
      %v280 = vsel %vm254, 0, %v279
      %281 = vst [vmem:[#allocation2 + $0x60] sm:$0x1] %v280
      %v282 = vld [vmem:[#allocation2 + $0x6c] sm:$0x1]
      %v283 = vsel %vm254, 0, %v282
      %284 = vst [vmem:[#allocation2 + $0x6c] sm:$0x1] %v283
      %v285 = vld [vmem:[#allocation2 + $0x78] sm:$0x1]
      %v286 = vsel %vm254, 0, %v285
      %287 = vst [vmem:[#allocation2 + $0x78] sm:$0x1] %v286
      %v288 = vld [vmem:[#allocation2 + $0x84] sm:$0x1]
      %v289 = vsel %vm254, 0, %v288
      %290 = vst [vmem:[#allocation2 + $0x84] sm:$0x1] %v289
      %v291 = vld [vmem:[#allocation2 + $0x90] sm:$0x1]
      %v292 = vsel %vm254, 0, %v291
      %293 = vst [vmem:[#allocation2 + $0x90] sm:$0x1] %v292
      %v294 = vld [vmem:[#allocation2 + $0x9c] sm:$0x1]
      %v295 = vsel %vm254, 0, %v294
      %296 = vst [vmem:[#allocation2 + $0x9c] sm:$0x1] %v295
      %v297 = vld [vmem:[#allocation2 + $0xa8] sm:$0x1]
      %v298 = vsel %vm254, 0, %v297
      %299 = vst [vmem:[#allocation2 + $0xa8] sm:$0x1] %v298
      %v300 = vld [vmem:[#allocation2 + $0xb4] sm:$0x1]
      %v301 = vsel %vm254, 0, %v300
      %302 = vst [vmem:[#allocation2 + $0xb4] sm:$0x1] %v301
      %v303 = vld [vmem:[#allocation2 + $0xc0] sm:$0x1]
      %v304 = vsel %vm254, 0, %v303
      %305 = vst [vmem:[#allocation2 + $0xc0] sm:$0x1] %v304
      %v306 = vld [vmem:[#allocation2 + $0xcc] sm:$0x1]
      %v307 = vsel %vm254, 0, %v306
      %308 = vst [vmem:[#allocation2 + $0xcc] sm:$0x1] %v307
      %vm309 = vsmask.f32 7938
      %vm310 = vmand %vm252, %vm309
      %v311 = vld [vmem:[#allocation2 + $0x8] sm:$0x1]
      %v312 = vsel %vm310, 0, %v311
      %313 = vst [vmem:[#allocation2 + $0x8] sm:$0x1] %v312
      %v314 = vld [vmem:[#allocation2 + $0x14] sm:$0x1]
      %v315 = vsel %vm310, 0, %v314
      %316 = vst [vmem:[#allocation2 + $0x14] sm:$0x1] %v315
      %v317 = vld [vmem:[#allocation2 + $0x20] sm:$0x1]
      %v318 = vsel %vm310, 0, %v317
      %319 = vst [vmem:[#allocation2 + $0x20] sm:$0x1] %v318
      %v320 = vld [vmem:[#allocation2 + $0x2c] sm:$0x1]
      %v321 = vsel %vm310, 0, %v320
      %322 = vst [vmem:[#allocation2 + $0x2c] sm:$0x1] %v321
      %v323 = vld [vmem:[#allocation2 + $0x38] sm:$0x1]
      %v324 = vsel %vm310, 0, %v323
      %325 = vst [vmem:[#allocation2 + $0x38] sm:$0x1] %v324
      %v326 = vld [vmem:[#allocation2 + $0x44] sm:$0x1]
      %v327 = vsel %vm310, 0, %v326
      %328 = vst [vmem:[#allocation2 + $0x44] sm:$0x1] %v327
      %v329 = vld [vmem:[#allocation2 + $0x50] sm:$0x1]
      %v330 = vsel %vm310, 0, %v329
      %331 = vst [vmem:[#allocation2 + $0x50] sm:$0x1] %v330
      %v332 = vld [vmem:[#allocation2 + $0x5c] sm:$0x1]
      %v333 = vsel %vm310, 0, %v332
      %334 = vst [vmem:[#allocation2 + $0x5c] sm:$0x1] %v333
      %v335 = vld [vmem:[#allocation2 + $0x68] sm:$0x1]
      %v336 = vsel %vm310, 0, %v335
      %337 = vst [vmem:[#allocation2 + $0x68] sm:$0x1] %v336
      %v338 = vld [vmem:[#allocation2 + $0x74] sm:$0x1]
      %v339 = vsel %vm310, 0, %v338
      %340 = vst [vmem:[#allocation2 + $0x74] sm:$0x1] %v339
      %v341 = vld [vmem:[#allocation2 + $0x80] sm:$0x1]
      %v342 = vsel %vm310, 0, %v341
      %343 = vst [vmem:[#allocation2 + $0x80] sm:$0x1] %v342
      %v344 = vld [vmem:[#allocation2 + $0x8c] sm:$0x1]
      %v345 = vsel %vm310, 0, %v344
      %346 = vst [vmem:[#allocation2 + $0x8c] sm:$0x1] %v345
      %v347 = vld [vmem:[#allocation2 + $0x98] sm:$0x1]
      %v348 = vsel %vm310, 0, %v347
      %349 = vst [vmem:[#allocation2 + $0x98] sm:$0x1] %v348
      %v350 = vld [vmem:[#allocation2 + $0xa4] sm:$0x1]
      %v351 = vsel %vm310, 0, %v350
      %352 = vst [vmem:[#allocation2 + $0xa4] sm:$0x1] %v351
      %v353 = vld [vmem:[#allocation2 + $0xb0] sm:$0x1]
      %v354 = vsel %vm310, 0, %v353
      %355 = vst [vmem:[#allocation2 + $0xb0] sm:$0x1] %v354
      %v356 = vld [vmem:[#allocation2 + $0xbc] sm:$0x1]
      %v357 = vsel %vm310, 0, %v356
      %358 = vst [vmem:[#allocation2 + $0xbc] sm:$0x1] %v357
      %v359 = vld [vmem:[#allocation2 + $0xc8] sm:$0x1]
      %v360 = vsel %vm310, 0, %v359
      %361 = vst [vmem:[#allocation2 + $0xc8] sm:$0x1] %v360
      %v362 = vld [vmem:[#allocation2 + $0xd4] sm:$0x1]
      %v363 = vsel %vm310, 0, %v362
      %364 = vst [vmem:[#allocation2 + $0xd4] sm:$0x1] %v363
      %s365 = smul.u32 %s251, 2
      %s366 = smul.addr %s365, 4
      %s367 = scalar_lea.vmem %s223, %s366
      %v368 = vld [vmem:[%s367] sm:$0xf]
      %v369 = vld [vmem:[%s367 + $0x4] sm:$0xf]
      %v370 = vld [vmem:[%s367 + $0x8] sm:$0xf]
      %v371 = vld [vmem:[%s367 + $0xc] sm:$0xf]
      %v372 = vld [vmem:[%s367 + $0x10] sm:$0xf]
      %v373 = vld [vmem:[%s367 + $0x14] sm:$0xf]
      %v374 = vld [vmem:[%s367 + $0x18] sm:$0xf]
      %v375 = vld [vmem:[%s367 + $0x1c] sm:$0xf]
      %v376 = vld [vmem:[%s367 + $0x20] sm:$0xf]
      %v377 = vld [vmem:[%s367 + $0x24] sm:$0xf]
      %v378 = vld [vmem:[%s367 + $0x28] sm:$0xf]
      %v379 = vld [vmem:[%s367 + $0x2c] sm:$0xf]
      %v380 = vld [vmem:[%s367 + $0x30] sm:$0xf]
      %v381 = vld [vmem:[%s367 + $0x34] sm:$0xf]
      %v382 = vld [vmem:[%s367 + $0x38] sm:$0xf]
      %v383 = vld [vmem:[%s367 + $0x3c] sm:$0xf]
      %v384 = vld [vmem:[%s367 + $0x40] sm:$0xf]
      %v385 = vld [vmem:[%s367 + $0x44] sm:$0xf]
      %v386 = vld [vmem:[%s367 + $0x48] sm:$0xf]
      %v387 = vld [vmem:[%s367 + $0x4c] sm:$0xf]
      %v388 = vld [vmem:[%s367 + $0x50] sm:$0xf]
      %v389 = vld [vmem:[%s367 + $0x54] sm:$0xf]
      %v390 = vld [vmem:[%s367 + $0x58] sm:$0xf]
      %v391 = vld [vmem:[%s367 + $0x5c] sm:$0xf]
      %v392 = vld [vmem:[%s367 + $0x60] sm:$0xf]
      %v393 = vld [vmem:[%s367 + $0x64] sm:$0xf]
      %v394 = vld [vmem:[%s367 + $0x68] sm:$0xf]
      %v395 = vld [vmem:[%s367 + $0x6c] sm:$0xf]
      %v396 = vld [vmem:[%s367 + $0x70] sm:$0xf]
      %v397 = vld [vmem:[%s367 + $0x74] sm:$0xf]
      %v398 = vld [vmem:[%s367 + $0x78] sm:$0xf]
      %v399 = vld [vmem:[%s367 + $0x7c] sm:$0xf]
      %vm400 = vsmask.f32 4368
      %vm401 = vmor %vm253, %vm400
      %v403 = vshrl.u32 %v368, 16
      %v405 = vrot.slane %v403, 7
      %v406 = vshll.u32 %v368, 16
      %v408 = vor.u32 %v405, %v406
      %v409 = vrot.slane %v405, 4
      %v411 = vshrl.u32 %v369, 16
      %v413 = vrot.slane %v411, 7
      %v414 = vshll.u32 %v369, 16
      %v416 = vor.u32 %v413, %v414
      %v417 = vsel %vm401, %v409, %v416
      %v418 = vrot.slane %v413, 4
      %v420 = vshrl.u32 %v370, 16
      %v422 = vrot.slane %v420, 7
      %v423 = vshll.u32 %v370, 16
      %v425 = vor.u32 %v422, %v423
      %v426 = vrot.slane %v422, 4
      %v428 = vshrl.u32 %v371, 16
      %v430 = vrot.slane %v428, 7
      %v431 = vshll.u32 %v371, 16
      %v433 = vor.u32 %v430, %v431
      %v434 = vsel %vm401, %v426, %v433
      %v435 = vrot.slane %v430, 4
      %v437 = vshrl.u32 %v372, 16
      %v439 = vrot.slane %v437, 7
      %v440 = vshll.u32 %v372, 16
      %v442 = vor.u32 %v439, %v440
      %v443 = vrot.slane %v439, 4
      %v445 = vshrl.u32 %v373, 16
      %v447 = vrot.slane %v445, 7
      %v448 = vshll.u32 %v373, 16
      %v450 = vor.u32 %v447, %v448
      %v451 = vsel %vm401, %v443, %v450
      %v452 = vrot.slane %v447, 4
      %v454 = vshrl.u32 %v374, 16
      %v456 = vrot.slane %v454, 7
      %v457 = vshll.u32 %v374, 16
      %v459 = vor.u32 %v456, %v457
      %v460 = vrot.slane %v456, 4
      %v462 = vshrl.u32 %v375, 16
      %v464 = vrot.slane %v462, 7
      %v465 = vshll.u32 %v375, 16
      %v467 = vor.u32 %v464, %v465
      %v468 = vsel %vm401, %v460, %v467
      %v469 = vrot.slane %v464, 4
      %v471 = vshrl.u32 %v376, 16
      %v473 = vrot.slane %v471, 7
      %v474 = vshll.u32 %v376, 16
      %v476 = vor.u32 %v473, %v474
      %v477 = vrot.slane %v473, 4
      %v479 = vshrl.u32 %v377, 16
      %v481 = vrot.slane %v479, 7
      %v482 = vshll.u32 %v377, 16
      %v484 = vor.u32 %v481, %v482
      %v485 = vsel %vm401, %v477, %v484
      %v486 = vrot.slane %v481, 4
      %v488 = vshrl.u32 %v378, 16
      %v490 = vrot.slane %v488, 7
      %v491 = vshll.u32 %v378, 16
      %v493 = vor.u32 %v490, %v491
      %v494 = vrot.slane %v490, 4
      %v496 = vshrl.u32 %v379, 16
      %v498 = vrot.slane %v496, 7
      %v499 = vshll.u32 %v379, 16
      %v501 = vor.u32 %v498, %v499
      %v502 = vsel %vm401, %v494, %v501
      %v503 = vrot.slane %v498, 4
      %v505 = vshrl.u32 %v380, 16
      %v507 = vrot.slane %v505, 7
      %v508 = vshll.u32 %v380, 16
      %v510 = vor.u32 %v507, %v508
      %v511 = vrot.slane %v507, 4
      %v513 = vshrl.u32 %v381, 16
      %v515 = vrot.slane %v513, 7
      %v516 = vshll.u32 %v381, 16
      %v518 = vor.u32 %v515, %v516
      %v519 = vsel %vm401, %v511, %v518
      %v520 = vrot.slane %v515, 4
      %v522 = vshrl.u32 %v382, 16
      %v524 = vrot.slane %v522, 7
      %v525 = vshll.u32 %v382, 16
      %v527 = vor.u32 %v524, %v525
      %v528 = vrot.slane %v524, 4
      %v530 = vshrl.u32 %v383, 16
      %v532 = vrot.slane %v530, 7
      %v533 = vshll.u32 %v383, 16
      %v535 = vor.u32 %v532, %v533
      %v536 = vsel %vm401, %v528, %v535
      %v537 = vrot.slane %v532, 4
      %v539 = vshrl.u32 %v384, 16
      %v541 = vrot.slane %v539, 7
      %v542 = vshll.u32 %v384, 16
      %v544 = vor.u32 %v541, %v542
      %v545 = vrot.slane %v541, 4
      %v547 = vshrl.u32 %v385, 16
      %v549 = vrot.slane %v547, 7
      %v550 = vshll.u32 %v385, 16
      %v552 = vor.u32 %v549, %v550
      %v553 = vsel %vm401, %v545, %v552
      %v554 = vrot.slane %v549, 4
      %v556 = vshrl.u32 %v386, 16
      %v558 = vrot.slane %v556, 7
      %v559 = vshll.u32 %v386, 16
      %v561 = vor.u32 %v558, %v559
      %v562 = vrot.slane %v558, 4
      %v564 = vshrl.u32 %v387, 16
      %v566 = vrot.slane %v564, 7
      %v567 = vshll.u32 %v387, 16
      %v569 = vor.u32 %v566, %v567
      %v570 = vsel %vm401, %v562, %v569
      %v571 = vrot.slane %v566, 4
      %v573 = vshrl.u32 %v388, 16
      %v575 = vrot.slane %v573, 7
      %v576 = vshll.u32 %v388, 16
      %v578 = vor.u32 %v575, %v576
      %v579 = vrot.slane %v575, 4
      %v581 = vshrl.u32 %v389, 16
      %v583 = vrot.slane %v581, 7
      %v584 = vshll.u32 %v389, 16
      %v586 = vor.u32 %v583, %v584
      %v587 = vsel %vm401, %v579, %v586
      %v588 = vrot.slane %v583, 4
      %v590 = vshrl.u32 %v390, 16
      %v592 = vrot.slane %v590, 7
      %v593 = vshll.u32 %v390, 16
      %v595 = vor.u32 %v592, %v593
      %v596 = vrot.slane %v592, 4
      %v598 = vshrl.u32 %v391, 16
      %v600 = vrot.slane %v598, 7
      %v601 = vshll.u32 %v391, 16
      %v603 = vor.u32 %v600, %v601
      %v604 = vsel %vm401, %v596, %v603
      %v605 = vrot.slane %v600, 4
      %v607 = vshrl.u32 %v392, 16
      %v609 = vrot.slane %v607, 7
      %v610 = vshll.u32 %v392, 16
      %v612 = vor.u32 %v609, %v610
      %v613 = vrot.slane %v609, 4
      %v615 = vshrl.u32 %v393, 16
      %v617 = vrot.slane %v615, 7
      %v618 = vshll.u32 %v393, 16
      %v620 = vor.u32 %v617, %v618
      %v621 = vsel %vm401, %v613, %v620
      %v622 = vrot.slane %v617, 4
      %v624 = vshrl.u32 %v394, 16
      %v626 = vrot.slane %v624, 7
      %v627 = vshll.u32 %v394, 16
      %v629 = vor.u32 %v626, %v627
      %v630 = vrot.slane %v626, 4
      %v632 = vshrl.u32 %v395, 16
      %v634 = vrot.slane %v632, 7
      %v635 = vshll.u32 %v395, 16
      %v637 = vor.u32 %v634, %v635
      %v638 = vsel %vm401, %v630, %v637
      %v639 = vrot.slane %v634, 4
      %v641 = vshrl.u32 %v396, 16
      %v643 = vrot.slane %v641, 7
      %v644 = vshll.u32 %v396, 16
      %v646 = vor.u32 %v643, %v644
      %v647 = vrot.slane %v643, 4
      %v649 = vshrl.u32 %v397, 16
      %v651 = vrot.slane %v649, 7
      %v652 = vshll.u32 %v397, 16
      %v654 = vor.u32 %v651, %v652
      %v655 = vsel %vm401, %v647, %v654
      %v656 = vrot.slane %v651, 4
      %v658 = vshrl.u32 %v398, 16
      %v660 = vrot.slane %v658, 7
      %v661 = vshll.u32 %v398, 16
      %v663 = vor.u32 %v660, %v661
      %v664 = vrot.slane %v660, 4
      %v666 = vshrl.u32 %v399, 16
      %v668 = vrot.slane %v666, 7
      %v669 = vshll.u32 %v399, 16
      %v671 = vor.u32 %v668, %v669
      %v672 = vsel %vm401, %v664, %v671
      %v673 = vrot.slane %v668, 4
      %s722 = scalar_lea.vmem [#allocation2], 12
      %vm723 = vcmask 27648
      %vm724 = vmand %vm723, %vm309
      %v725 = vld [vmem:[%s722] sm:$0xf]
      %v726 = vsel %vm724, %v408, %v725
      %727 = vst [vmem:[%s722] sm:$0xf] %v726
      %vm728 = vcmask 27648
      %729 = vst.msk [vmem:[%s722 + $0x4] sm:$0xf] %vm728, %v417
      %v730 = vld [vmem:[%s722 + $0x8] sm:$0x1]
      %v731 = vsel %vm254, %v418, %v730
      %732 = vst [vmem:[%s722 + $0x8] sm:$0x1] %v731
      %v733 = vld [vmem:[%s722 + $0xc] sm:$0xf]
      %v734 = vsel %vm724, %v425, %v733
      %735 = vst [vmem:[%s722 + $0xc] sm:$0xf] %v734
      %736 = vst.msk [vmem:[%s722 + $0x10] sm:$0xf] %vm728, %v434
      %v737 = vld [vmem:[%s722 + $0x14] sm:$0x1]
      %v738 = vsel %vm254, %v435, %v737
      %739 = vst [vmem:[%s722 + $0x14] sm:$0x1] %v738
      %v740 = vld [vmem:[%s722 + $0x18] sm:$0xf]
      %v741 = vsel %vm724, %v442, %v740
      %742 = vst [vmem:[%s722 + $0x18] sm:$0xf] %v741
      %743 = vst.msk [vmem:[%s722 + $0x1c] sm:$0xf] %vm728, %v451
      %v744 = vld [vmem:[%s722 + $0x20] sm:$0x1]
      %v745 = vsel %vm254, %v452, %v744
      %746 = vst [vmem:[%s722 + $0x20] sm:$0x1] %v745
      %v747 = vld [vmem:[%s722 + $0x24] sm:$0xf]
      %v748 = vsel %vm724, %v459, %v747
      %749 = vst [vmem:[%s722 + $0x24] sm:$0xf] %v748
      %750 = vst.msk [vmem:[%s722 + $0x28] sm:$0xf] %vm728, %v468
      %v751 = vld [vmem:[%s722 + $0x2c] sm:$0x1]
      %v752 = vsel %vm254, %v469, %v751
      %753 = vst [vmem:[%s722 + $0x2c] sm:$0x1] %v752
      %v754 = vld [vmem:[%s722 + $0x30] sm:$0xf]
      %v755 = vsel %vm724, %v476, %v754
      %756 = vst [vmem:[%s722 + $0x30] sm:$0xf] %v755
      %757 = vst.msk [vmem:[%s722 + $0x34] sm:$0xf] %vm728, %v485
      %v758 = vld [vmem:[%s722 + $0x38] sm:$0x1]
      %v759 = vsel %vm254, %v486, %v758
      %760 = vst [vmem:[%s722 + $0x38] sm:$0x1] %v759
      %v761 = vld [vmem:[%s722 + $0x3c] sm:$0xf]
      %v762 = vsel %vm724, %v493, %v761
      %763 = vst [vmem:[%s722 + $0x3c] sm:$0xf] %v762
      %764 = vst.msk [vmem:[%s722 + $0x40] sm:$0xf] %vm728, %v502
      %v765 = vld [vmem:[%s722 + $0x44] sm:$0x1]
      %v766 = vsel %vm254, %v503, %v765
      %767 = vst [vmem:[%s722 + $0x44] sm:$0x1] %v766
      %v768 = vld [vmem:[%s722 + $0x48] sm:$0xf]
      %v769 = vsel %vm724, %v510, %v768
      %770 = vst [vmem:[%s722 + $0x48] sm:$0xf] %v769
      %771 = vst.msk [vmem:[%s722 + $0x4c] sm:$0xf] %vm728, %v519
      %v772 = vld [vmem:[%s722 + $0x50] sm:$0x1]
      %v773 = vsel %vm254, %v520, %v772
      %774 = vst [vmem:[%s722 + $0x50] sm:$0x1] %v773
      %v775 = vld [vmem:[%s722 + $0x54] sm:$0xf]
      %v776 = vsel %vm724, %v527, %v775
      %777 = vst [vmem:[%s722 + $0x54] sm:$0xf] %v776
      %778 = vst.msk [vmem:[%s722 + $0x58] sm:$0xf] %vm728, %v536
      %v779 = vld [vmem:[%s722 + $0x5c] sm:$0x1]
      %v780 = vsel %vm254, %v537, %v779
      %781 = vst [vmem:[%s722 + $0x5c] sm:$0x1] %v780
      %v782 = vld [vmem:[%s722 + $0x60] sm:$0xf]
      %v783 = vsel %vm724, %v544, %v782
      %784 = vst [vmem:[%s722 + $0x60] sm:$0xf] %v783
      %785 = vst.msk [vmem:[%s722 + $0x64] sm:$0xf] %vm728, %v553
      %v786 = vld [vmem:[%s722 + $0x68] sm:$0x1]
      %v787 = vsel %vm254, %v554, %v786
      %788 = vst [vmem:[%s722 + $0x68] sm:$0x1] %v787
      %v789 = vld [vmem:[%s722 + $0x6c] sm:$0xf]
      %v790 = vsel %vm724, %v561, %v789
      %791 = vst [vmem:[%s722 + $0x6c] sm:$0xf] %v790
      %792 = vst.msk [vmem:[%s722 + $0x70] sm:$0xf] %vm728, %v570
      %v793 = vld [vmem:[%s722 + $0x74] sm:$0x1]
      %v794 = vsel %vm254, %v571, %v793
      %795 = vst [vmem:[%s722 + $0x74] sm:$0x1] %v794
      %v796 = vld [vmem:[%s722 + $0x78] sm:$0xf]
      %v797 = vsel %vm724, %v578, %v796
      %798 = vst [vmem:[%s722 + $0x78] sm:$0xf] %v797
      %799 = vst.msk [vmem:[%s722 + $0x7c] sm:$0xf] %vm728, %v587
      %v800 = vld [vmem:[%s722 + $0x80] sm:$0x1]
      %v801 = vsel %vm254, %v588, %v800
      %802 = vst [vmem:[%s722 + $0x80] sm:$0x1] %v801
      %v803 = vld [vmem:[%s722 + $0x84] sm:$0xf]
      %v804 = vsel %vm724, %v595, %v803
      %805 = vst [vmem:[%s722 + $0x84] sm:$0xf] %v804
      %806 = vst.msk [vmem:[%s722 + $0x88] sm:$0xf] %vm728, %v604
      %v807 = vld [vmem:[%s722 + $0x8c] sm:$0x1]
      %v808 = vsel %vm254, %v605, %v807
      %809 = vst [vmem:[%s722 + $0x8c] sm:$0x1] %v808
      %v810 = vld [vmem:[%s722 + $0x90] sm:$0xf]
      %v811 = vsel %vm724, %v612, %v810
      %812 = vst [vmem:[%s722 + $0x90] sm:$0xf] %v811
      %813 = vst.msk [vmem:[%s722 + $0x94] sm:$0xf] %vm728, %v621
      %v814 = vld [vmem:[%s722 + $0x98] sm:$0x1]
      %v815 = vsel %vm254, %v622, %v814
      %816 = vst [vmem:[%s722 + $0x98] sm:$0x1] %v815
      %v817 = vld [vmem:[%s722 + $0x9c] sm:$0xf]
      %v818 = vsel %vm724, %v629, %v817
      %819 = vst [vmem:[%s722 + $0x9c] sm:$0xf] %v818
      %820 = vst.msk [vmem:[%s722 + $0xa0] sm:$0xf] %vm728, %v638
      %v821 = vld [vmem:[%s722 + $0xa4] sm:$0x1]
      %v822 = vsel %vm254, %v639, %v821
      %823 = vst [vmem:[%s722 + $0xa4] sm:$0x1] %v822
      %v824 = vld [vmem:[%s722 + $0xa8] sm:$0xf]
      %v825 = vsel %vm724, %v646, %v824
      %826 = vst [vmem:[%s722 + $0xa8] sm:$0xf] %v825
      %827 = vst.msk [vmem:[%s722 + $0xac] sm:$0xf] %vm728, %v655
      %v828 = vld [vmem:[%s722 + $0xb0] sm:$0x1]
      %v829 = vsel %vm254, %v656, %v828
      %830 = vst [vmem:[%s722 + $0xb0] sm:$0x1] %v829
      %v831 = vld [vmem:[%s722 + $0xb4] sm:$0xf]
      %v832 = vsel %vm724, %v663, %v831
      %833 = vst [vmem:[%s722 + $0xb4] sm:$0xf] %v832
      %834 = vst.msk [vmem:[%s722 + $0xb8] sm:$0xf] %vm728, %v672
      %v835 = vld [vmem:[%s722 + $0xbc] sm:$0x1]
      %v836 = vsel %vm254, %v673, %v835
      %837 = vst [vmem:[%s722 + $0xbc] sm:$0x1] %v836
      %s838 = ssub.s32 %s251, 1
      %p839 = scmp.gt.s32.totalorder %s838, 0
      %s840 = scalar_select %p839, %s838, 0
      %s841 = smul.u32 %s840, 2
      %s842 = smul.addr %s841, 4
      %s843 = scalar_lea.vmem %s223, %s842
      %v844 = vld [vmem:[%s843] sm:$0xf]
      %v845 = vld [vmem:[%s843 + $0x4] sm:$0xf]
      %p846 = scmp.ge.s32.totalorder %s838, 0
      %s847 = scalar_select %p846, 1, 0
      %v848 = vstv %s847
      %vm849 = vcmp.eq.s32.totalorder %v848, 1
      %v850 = vsel %vm849, %v844, 0
      %v851 = vsel %vm849, %v845, 0
      %v853 = vshrl.u32 %v850, 16
      %v855 = vrot.slane %v853, 7
      %v856 = vshll.u32 %v850, 16
      %v858 = vor.u32 %v855, %v856
      %v859 = vrot.slane %v855, 4
      %v861 = vshrl.u32 %v851, 16
      %v863 = vrot.slane %v861, 7
      %v864 = vshll.u32 %v851, 16
      %v866 = vor.u32 %v863, %v864
      %v867 = vsel %vm401, %v859, %v866
      %v868 = vrot.slane %v863, 4
      %v872 = vld [vmem:[#allocation2] sm:$0xf]
      %v873 = vsel %vm724, %v858, %v872
      %874 = vst [vmem:[#allocation2] sm:$0xf] %v873
      %875 = vst.msk [vmem:[#allocation2 + $0x4] sm:$0xf] %vm728, %v867
      %v876 = vld [vmem:[#allocation2 + $0x8] sm:$0x1]
      %v877 = vsel %vm254, %v868, %v876
      %878 = vst [vmem:[#allocation2 + $0x8] sm:$0x1] %v877
      %s879 = sadd.s32 %s251, 16
      %p880 = scmp.lt.s32.totalorder %s879, 15
      %s881 = scalar_select %p880, %s879, 15
      %s882 = smul.u32 %s881, 2
      %s883 = smul.addr %s882, 4
      %s884 = scalar_lea.vmem %s223, %s883
      %v885 = vld [vmem:[%s884] sm:$0xf]
      %v886 = vld [vmem:[%s884 + $0x4] sm:$0xf]
      %p887 = scmp.lt.s32.totalorder %s879, 16
      %s888 = scalar_select %p887, 1, 0
      %v889 = vstv %s888
      %vm890 = vcmp.eq.s32.totalorder %v889, 1
      %v891 = vsel %vm890, %v885, 0
      %v892 = vsel %vm890, %v886, 0
      %v894 = vshrl.u32 %v891, 16
      %v896 = vrot.slane %v894, 7
      %v897 = vshll.u32 %v891, 16
      %v899 = vor.u32 %v896, %v897
      %v900 = vrot.slane %v896, 4
      %v902 = vshrl.u32 %v892, 16
      %v904 = vrot.slane %v902, 7
      %v905 = vshll.u32 %v892, 16
      %v907 = vor.u32 %v904, %v905
      %v908 = vsel %vm401, %v900, %v907
      %v909 = vrot.slane %v904, 4
      %s913 = scalar_lea.vmem [#allocation2], 204
      %v914 = vld [vmem:[%s913] sm:$0xf]
      %v915 = vsel %vm724, %v899, %v914
      %916 = vst [vmem:[%s913] sm:$0xf] %v915
      %917 = vst.msk [vmem:[%s913 + $0x4] sm:$0xf] %vm728, %v908
      %v918 = vld [vmem:[%s913 + $0x8] sm:$0x1]
      %v919 = vsel %vm254, %v909, %v918
      %920 = vst [vmem:[%s913 + $0x8] sm:$0x1] %v919
      %v921 = vld [vmem:[#allocation2] sm:$0xf]
      %v922 = vld [vmem:[#allocation2 + $0x4] sm:$0xf]
      %v923 = vld [vmem:[#allocation2 + $0xc] sm:$0xf]
      %v924 = vld [vmem:[#allocation2 + $0x10] sm:$0xf]
      %v925 = vld [vmem:[#allocation2 + $0x18] sm:$0xf]
      %v926 = vld [vmem:[#allocation2 + $0x1c] sm:$0xf]
      %v927 = vld [vmem:[#allocation2 + $0x24] sm:$0xf]
      %v928 = vld [vmem:[#allocation2 + $0x28] sm:$0xf]
      %v929 = vld [vmem:[#allocation2 + $0x30] sm:$0xf]
      %v930 = vld [vmem:[#allocation2 + $0x34] sm:$0xf]
      %v931 = vld [vmem:[#allocation2 + $0x3c] sm:$0xf]
      %v932 = vld [vmem:[#allocation2 + $0x40] sm:$0xf]
      %v933 = vld [vmem:[#allocation2 + $0x48] sm:$0xf]
      %v934 = vld [vmem:[#allocation2 + $0x4c] sm:$0xf]
      %v935 = vld [vmem:[#allocation2 + $0x54] sm:$0xf]
      %v936 = vld [vmem:[#allocation2 + $0x58] sm:$0xf]
      %v937 = vld [vmem:[#allocation2 + $0x60] sm:$0xf]
      %v938 = vld [vmem:[#allocation2 + $0x64] sm:$0xf]
      %v939 = vld [vmem:[#allocation2 + $0x6c] sm:$0xf]
      %v940 = vld [vmem:[#allocation2 + $0x70] sm:$0xf]
      %v941 = vld [vmem:[#allocation2 + $0x78] sm:$0xf]
      %v942 = vld [vmem:[#allocation2 + $0x7c] sm:$0xf]
      %v943 = vld [vmem:[#allocation2 + $0x84] sm:$0xf]
      %v944 = vld [vmem:[#allocation2 + $0x88] sm:$0xf]
      %v945 = vld [vmem:[#allocation2 + $0x90] sm:$0xf]
      %v946 = vld [vmem:[#allocation2 + $0x94] sm:$0xf]
      %v947 = vld [vmem:[#allocation2 + $0x9c] sm:$0xf]
      %v948 = vld [vmem:[#allocation2 + $0xa0] sm:$0xf]
      %v949 = vld [vmem:[#allocation2 + $0xa8] sm:$0xf]
      %v950 = vld [vmem:[#allocation2 + $0xac] sm:$0xf]
      %v951 = vld [vmem:[#allocation2 + $0xb4] sm:$0xf]
      %v952 = vld [vmem:[#allocation2 + $0xb8] sm:$0xf]
      %v953 = vld [vmem:[#allocation2 + $0xc0] sm:$0xf]
      %v954 = vld [vmem:[#allocation2 + $0xc4] sm:$0xf]
      %v955 = vld [vmem:[#allocation2 + $0xcc] sm:$0xf]
      %v956 = vld [vmem:[#allocation2 + $0xd0] sm:$0xf]
      %v993 = vunpack.c.l.b16 %v921
      %v994 = vunpack.c.l.b16 %v922
      %v995 = vunpack.c.l.b16 %v923
      %v996 = vunpack.c.l.b16 %v924
      %v997 = vunpack.c.l.b16 %v925
      %v998 = vunpack.c.l.b16 %v926
      %v999 = vunpack.c.l.b16 %v927
      %v1000 = vunpack.c.l.b16 %v928
      %v1001 = vunpack.c.l.b16 %v929
      %v1002 = vunpack.c.l.b16 %v930
      %v1003 = vunpack.c.l.b16 %v931
      %v1004 = vunpack.c.l.b16 %v932
      %v1005 = vunpack.c.l.b16 %v933
      %v1006 = vunpack.c.l.b16 %v934
      %v1007 = vunpack.c.l.b16 %v935
      %v1008 = vunpack.c.l.b16 %v936
      %v1009 = vunpack.c.l.b16 %v937
      %v1010 = vunpack.c.l.b16 %v938
      %v1011 = vunpack.c.l.b16 %v939
      %v1012 = vunpack.c.l.b16 %v940
      %v1013 = vunpack.c.l.b16 %v941
      %v1014 = vunpack.c.l.b16 %v942
      %v1015 = vunpack.c.l.b16 %v943
      %v1016 = vunpack.c.l.b16 %v944
      %v1017 = vunpack.c.l.b16 %v945
      %v1018 = vunpack.c.l.b16 %v946
      %v1019 = vunpack.c.l.b16 %v947
      %v1020 = vunpack.c.l.b16 %v948
      %v1021 = vunpack.c.l.b16 %v949
      %v1022 = vunpack.c.l.b16 %v950
      %v1023 = vunpack.c.l.b16 %v951
      %v1024 = vunpack.c.l.b16 %v952
      %v1025 = vunpack.c.l.b16 %v953
      %v1026 = vunpack.c.l.b16 %v954
      %v1027 = vunpack.c.l.b16 %v955
      %v1028 = vunpack.c.l.b16 %v956
      %v1029 = vpack.c.b16 %v994, %v993
      %v1030 = vpack.c.b16 %v996, %v995
      %v1031 = vpack.c.b16 %v998, %v997
      %v1032 = vpack.c.b16 %v1000, %v999
      %v1033 = vpack.c.b16 %v1002, %v1001
      %v1034 = vpack.c.b16 %v1004, %v1003
      %v1035 = vpack.c.b16 %v1006, %v1005
      %v1036 = vpack.c.b16 %v1008, %v1007
      %v1037 = vpack.c.b16 %v1010, %v1009
      %v1038 = vpack.c.b16 %v1012, %v1011
      %v1039 = vpack.c.b16 %v1014, %v1013
      %v1040 = vpack.c.b16 %v1016, %v1015
      %v1041 = vpack.c.b16 %v1018, %v1017
      %v1042 = vpack.c.b16 %v1020, %v1019
      %v1043 = vpack.c.b16 %v1022, %v1021
      %v1044 = vpack.c.b16 %v1024, %v1023
      %v1045 = vpack.c.b16 %v1026, %v1025
      %v1046 = vpack.c.b16 %v1028, %v1027
      %vm1065 = vcmask 31744
      %1066 = vst.msk [vmem:[#allocation3] sm:$0xff] %vm1065, %v1029
      %1067 = vst.msk [vmem:[#allocation3 + $0x8] sm:$0xff] %vm1065, %v1030
      %1068 = vst.msk [vmem:[#allocation3 + $0x10] sm:$0xff] %vm1065, %v1031
      %1069 = vst.msk [vmem:[#allocation3 + $0x18] sm:$0xff] %vm1065, %v1032
      %1070 = vst.msk [vmem:[#allocation3 + $0x20] sm:$0xff] %vm1065, %v1033
      %1071 = vst.msk [vmem:[#allocation3 + $0x28] sm:$0xff] %vm1065, %v1034
      %1072 = vst.msk [vmem:[#allocation3 + $0x30] sm:$0xff] %vm1065, %v1035
      %1073 = vst.msk [vmem:[#allocation3 + $0x38] sm:$0xff] %vm1065, %v1036
      %1074 = vst.msk [vmem:[#allocation3 + $0x40] sm:$0xff] %vm1065, %v1037
      %1075 = vst.msk [vmem:[#allocation3 + $0x48] sm:$0xff] %vm1065, %v1038
      %1076 = vst.msk [vmem:[#allocation3 + $0x50] sm:$0xff] %vm1065, %v1039
      %1077 = vst.msk [vmem:[#allocation3 + $0x58] sm:$0xff] %vm1065, %v1040
      %1078 = vst.msk [vmem:[#allocation3 + $0x60] sm:$0xff] %vm1065, %v1041
      %1079 = vst.msk [vmem:[#allocation3 + $0x68] sm:$0xff] %vm1065, %v1042
      %1080 = vst.msk [vmem:[#allocation3 + $0x70] sm:$0xff] %vm1065, %v1043
      %1081 = vst.msk [vmem:[#allocation3 + $0x78] sm:$0xff] %vm1065, %v1044
      %1082 = vst.msk [vmem:[#allocation3 + $0x80] sm:$0xff] %vm1065, %v1045
      %1083 = vst.msk [vmem:[#allocation3 + $0x88] sm:$0xff] %vm1065, %v1046
      %v1084 = vld [vmem:[#allocation2] sm:$0xf]
      %v1085 = vld [vmem:[#allocation2 + $0x4] sm:$0xf]
      %v1086 = vld [vmem:[#allocation2 + $0x8] sm:$0x1]
      %v1087 = vld [vmem:[#allocation2 + $0xc] sm:$0xf]
      %v1088 = vld [vmem:[#allocation2 + $0x10] sm:$0xf]
      %v1089 = vld [vmem:[#allocation2 + $0x14] sm:$0x1]
      %v1090 = vld [vmem:[#allocation2 + $0x18] sm:$0xf]
      %v1091 = vld [vmem:[#allocation2 + $0x1c] sm:$0xf]
      %v1092 = vld [vmem:[#allocation2 + $0x20] sm:$0x1]
      %v1093 = vld [vmem:[#allocation2 + $0x24] sm:$0xf]
      %v1094 = vld [vmem:[#allocation2 + $0x28] sm:$0xf]
      %v1095 = vld [vmem:[#allocation2 + $0x2c] sm:$0x1]
      %v1096 = vld [vmem:[#allocation2 + $0x30] sm:$0xf]
      %v1097 = vld [vmem:[#allocation2 + $0x34] sm:$0xf]
      %v1098 = vld [vmem:[#allocation2 + $0x38] sm:$0x1]
      %v1099 = vld [vmem:[#allocation2 + $0x3c] sm:$0xf]
      %v1100 = vld [vmem:[#allocation2 + $0x40] sm:$0xf]
      %v1101 = vld [vmem:[#allocation2 + $0x44] sm:$0x1]
      %v1102 = vld [vmem:[#allocation2 + $0x48] sm:$0xf]
      %v1103 = vld [vmem:[#allocation2 + $0x4c] sm:$0xf]
      %v1104 = vld [vmem:[#allocation2 + $0x50] sm:$0x1]
      %v1105 = vld [vmem:[#allocation2 + $0x54] sm:$0xf]
      %v1106 = vld [vmem:[#allocation2 + $0x58] sm:$0xf]
      %v1107 = vld [vmem:[#allocation2 + $0x5c] sm:$0x1]
      %v1108 = vld [vmem:[#allocation2 + $0x60] sm:$0xf]
      %v1109 = vld [vmem:[#allocation2 + $0x64] sm:$0xf]
      %v1110 = vld [vmem:[#allocation2 + $0x68] sm:$0x1]
      %v1111 = vld [vmem:[#allocation2 + $0x6c] sm:$0xf]
      %v1112 = vld [vmem:[#allocation2 + $0x70] sm:$0xf]
      %v1113 = vld [vmem:[#allocation2 + $0x74] sm:$0x1]
      %v1114 = vld [vmem:[#allocation2 + $0x78] sm:$0xf]
      %v1115 = vld [vmem:[#allocation2 + $0x7c] sm:$0xf]
      %v1116 = vld [vmem:[#allocation2 + $0x80] sm:$0x1]
      %v1117 = vld [vmem:[#allocation2 + $0x84] sm:$0xf]
      %v1118 = vld [vmem:[#allocation2 + $0x88] sm:$0xf]
      %v1119 = vld [vmem:[#allocation2 + $0x8c] sm:$0x1]
      %v1120 = vld [vmem:[#allocation2 + $0x90] sm:$0xf]
      %v1121 = vld [vmem:[#allocation2 + $0x94] sm:$0xf]
      %v1122 = vld [vmem:[#allocation2 + $0x98] sm:$0x1]
      %v1123 = vld [vmem:[#allocation2 + $0x9c] sm:$0xf]
      %v1124 = vld [vmem:[#allocation2 + $0xa0] sm:$0xf]
      %v1125 = vld [vmem:[#allocation2 + $0xa4] sm:$0x1]
      %v1126 = vld [vmem:[#allocation2 + $0xa8] sm:$0xf]
      %v1127 = vld [vmem:[#allocation2 + $0xac] sm:$0xf]
      %v1128 = vld [vmem:[#allocation2 + $0xb0] sm:$0x1]
      %v1129 = vld [vmem:[#allocation2 + $0xb4] sm:$0xf]
      %v1130 = vld [vmem:[#allocation2 + $0xb8] sm:$0xf]
      %v1131 = vld [vmem:[#allocation2 + $0xbc] sm:$0x1]
      %v1132 = vld [vmem:[#allocation2 + $0xc0] sm:$0xf]
      %v1133 = vld [vmem:[#allocation2 + $0xc4] sm:$0xf]
      %v1134 = vld [vmem:[#allocation2 + $0xc8] sm:$0x1]
      %v1135 = vld [vmem:[#allocation2 + $0xcc] sm:$0xf]
      %v1136 = vld [vmem:[#allocation2 + $0xd0] sm:$0xf]
      %v1137 = vld [vmem:[#allocation2 + $0xd4] sm:$0x1]
      %v1192 = vunpack.c.l.b16 %v1084
      %v1193 = vunpack.c.l.b16 %v1085
      %v1194 = vunpack.c.l.b16 %v1086
      %v1195 = vunpack.c.l.b16 %v1087
      %v1196 = vunpack.c.l.b16 %v1088
      %v1197 = vunpack.c.l.b16 %v1089
      %v1198 = vunpack.c.l.b16 %v1090
      %v1199 = vunpack.c.l.b16 %v1091
      %v1200 = vunpack.c.l.b16 %v1092
      %v1201 = vunpack.c.l.b16 %v1093
      %v1202 = vunpack.c.l.b16 %v1094
      %v1203 = vunpack.c.l.b16 %v1095
      %v1204 = vunpack.c.l.b16 %v1096
      %v1205 = vunpack.c.l.b16 %v1097
      %v1206 = vunpack.c.l.b16 %v1098
      %v1207 = vunpack.c.l.b16 %v1099
      %v1208 = vunpack.c.l.b16 %v1100
      %v1209 = vunpack.c.l.b16 %v1101
      %v1210 = vunpack.c.l.b16 %v1102
      %v1211 = vunpack.c.l.b16 %v1103
      %v1212 = vunpack.c.l.b16 %v1104
      %v1213 = vunpack.c.l.b16 %v1105
      %v1214 = vunpack.c.l.b16 %v1106
      %v1215 = vunpack.c.l.b16 %v1107
      %v1216 = vunpack.c.l.b16 %v1108
      %v1217 = vunpack.c.l.b16 %v1109
      %v1218 = vunpack.c.l.b16 %v1110
      %v1219 = vunpack.c.l.b16 %v1111
      %v1220 = vunpack.c.l.b16 %v1112
      %v1221 = vunpack.c.l.b16 %v1113
      %v1222 = vunpack.c.l.b16 %v1114
      %v1223 = vunpack.c.l.b16 %v1115
      %v1224 = vunpack.c.l.b16 %v1116
      %v1225 = vunpack.c.l.b16 %v1117
      %v1226 = vunpack.c.l.b16 %v1118
      %v1227 = vunpack.c.l.b16 %v1119
      %v1228 = vunpack.c.l.b16 %v1120
      %v1229 = vunpack.c.l.b16 %v1121
      %v1230 = vunpack.c.l.b16 %v1122
      %v1231 = vunpack.c.l.b16 %v1123
      %v1232 = vunpack.c.l.b16 %v1124
      %v1233 = vunpack.c.l.b16 %v1125
      %v1234 = vunpack.c.l.b16 %v1126
      %v1235 = vunpack.c.l.b16 %v1127
      %v1236 = vunpack.c.l.b16 %v1128
      %v1237 = vunpack.c.l.b16 %v1129
      %v1238 = vunpack.c.l.b16 %v1130
      %v1239 = vunpack.c.l.b16 %v1131
      %v1240 = vunpack.c.l.b16 %v1132
      %v1241 = vunpack.c.l.b16 %v1133
      %v1242 = vunpack.c.l.b16 %v1134
      %v1243 = vunpack.c.l.b16 %v1135
      %v1244 = vunpack.c.l.b16 %v1136
      %v1245 = vunpack.c.l.b16 %v1137
      %v1246 = vpack.c.b16 %v1193, %v1192
      %v1247 = vpack.c.b16 %v1194, %v1194
      %v1248 = vpack.c.b16 %v1196, %v1195
      %v1249 = vpack.c.b16 %v1197, %v1197
      %v1250 = vpack.c.b16 %v1199, %v1198
      %v1251 = vpack.c.b16 %v1200, %v1200
      %v1252 = vpack.c.b16 %v1202, %v1201
      %v1253 = vpack.c.b16 %v1203, %v1203
      %v1254 = vpack.c.b16 %v1205, %v1204
      %v1255 = vpack.c.b16 %v1206, %v1206
      %v1256 = vpack.c.b16 %v1208, %v1207
      %v1257 = vpack.c.b16 %v1209, %v1209
      %v1258 = vpack.c.b16 %v1211, %v1210
      %v1259 = vpack.c.b16 %v1212, %v1212
      %v1260 = vpack.c.b16 %v1214, %v1213
      %v1261 = vpack.c.b16 %v1215, %v1215
      %v1262 = vpack.c.b16 %v1217, %v1216
      %v1263 = vpack.c.b16 %v1218, %v1218
      %v1264 = vpack.c.b16 %v1220, %v1219
      %v1265 = vpack.c.b16 %v1221, %v1221
      %v1266 = vpack.c.b16 %v1223, %v1222
      %v1267 = vpack.c.b16 %v1224, %v1224
      %v1268 = vpack.c.b16 %v1226, %v1225
      %v1269 = vpack.c.b16 %v1227, %v1227
      %v1270 = vpack.c.b16 %v1229, %v1228
      %v1271 = vpack.c.b16 %v1230, %v1230
      %v1272 = vpack.c.b16 %v1232, %v1231
      %v1273 = vpack.c.b16 %v1233, %v1233
      %v1274 = vpack.c.b16 %v1235, %v1234
      %v1275 = vpack.c.b16 %v1236, %v1236
      %v1276 = vpack.c.b16 %v1238, %v1237
      %v1277 = vpack.c.b16 %v1239, %v1239
      %v1278 = vpack.c.b16 %v1241, %v1240
      %v1279 = vpack.c.b16 %v1242, %v1242
      %v1280 = vpack.c.b16 %v1244, %v1243
      %v1281 = vpack.c.b16 %v1245, %v1245
      %vm1282 = vsmask.f32 7424
      %v1284 = vshrl.u32 %v1246, 16
      %v1286 = vshll.u32 %v1246, 16
      %v1288 = vrot.slane %v1286, 1
      %v1289 = vor.u32 %v1284, %v1288
      %v1291 = vshll.u32 %v1247, 16
      %v1293 = vrot.slane %v1291, 1
      %v1294 = vsel %vm1282, %v1289, %v1293
      %v1296 = vshrl.u32 %v1248, 16
      %v1298 = vshll.u32 %v1248, 16
      %v1300 = vrot.slane %v1298, 1
      %v1301 = vor.u32 %v1296, %v1300
      %v1303 = vshll.u32 %v1249, 16
      %v1305 = vrot.slane %v1303, 1
      %v1306 = vsel %vm1282, %v1301, %v1305
      %v1308 = vshrl.u32 %v1250, 16
      %v1310 = vshll.u32 %v1250, 16
      %v1312 = vrot.slane %v1310, 1
      %v1313 = vor.u32 %v1308, %v1312
      %v1315 = vshll.u32 %v1251, 16
      %v1317 = vrot.slane %v1315, 1
      %v1318 = vsel %vm1282, %v1313, %v1317
      %v1320 = vshrl.u32 %v1252, 16
      %v1322 = vshll.u32 %v1252, 16
      %v1324 = vrot.slane %v1322, 1
      %v1325 = vor.u32 %v1320, %v1324
      %v1327 = vshll.u32 %v1253, 16
      %v1329 = vrot.slane %v1327, 1
      %v1330 = vsel %vm1282, %v1325, %v1329
      %v1332 = vshrl.u32 %v1254, 16
      %v1334 = vshll.u32 %v1254, 16
      %v1336 = vrot.slane %v1334, 1
      %v1337 = vor.u32 %v1332, %v1336
      %v1339 = vshll.u32 %v1255, 16
      %v1341 = vrot.slane %v1339, 1
      %v1342 = vsel %vm1282, %v1337, %v1341
      %v1344 = vshrl.u32 %v1256, 16
      %v1346 = vshll.u32 %v1256, 16
      %v1348 = vrot.slane %v1346, 1
      %v1349 = vor.u32 %v1344, %v1348
      %v1351 = vshll.u32 %v1257, 16
      %v1353 = vrot.slane %v1351, 1
      %v1354 = vsel %vm1282, %v1349, %v1353
      %v1356 = vshrl.u32 %v1258, 16
      %v1358 = vshll.u32 %v1258, 16
      %v1360 = vrot.slane %v1358, 1
      %v1361 = vor.u32 %v1356, %v1360
      %v1363 = vshll.u32 %v1259, 16
      %v1365 = vrot.slane %v1363, 1
      %v1366 = vsel %vm1282, %v1361, %v1365
      %v1368 = vshrl.u32 %v1260, 16
      %v1370 = vshll.u32 %v1260, 16
      %v1372 = vrot.slane %v1370, 1
      %v1373 = vor.u32 %v1368, %v1372
      %v1375 = vshll.u32 %v1261, 16
      %v1377 = vrot.slane %v1375, 1
      %v1378 = vsel %vm1282, %v1373, %v1377
      %v1380 = vshrl.u32 %v1262, 16
      %v1382 = vshll.u32 %v1262, 16
      %v1384 = vrot.slane %v1382, 1
      %v1385 = vor.u32 %v1380, %v1384
      %v1387 = vshll.u32 %v1263, 16
      %v1389 = vrot.slane %v1387, 1
      %v1390 = vsel %vm1282, %v1385, %v1389
      %v1392 = vshrl.u32 %v1264, 16
      %v1394 = vshll.u32 %v1264, 16
      %v1396 = vrot.slane %v1394, 1
      %v1397 = vor.u32 %v1392, %v1396
      %v1399 = vshll.u32 %v1265, 16
      %v1401 = vrot.slane %v1399, 1
      %v1402 = vsel %vm1282, %v1397, %v1401
      %v1404 = vshrl.u32 %v1266, 16
      %v1406 = vshll.u32 %v1266, 16
      %v1408 = vrot.slane %v1406, 1
      %v1409 = vor.u32 %v1404, %v1408
      %v1411 = vshll.u32 %v1267, 16
      %v1413 = vrot.slane %v1411, 1
      %v1414 = vsel %vm1282, %v1409, %v1413
      %v1416 = vshrl.u32 %v1268, 16
      %v1418 = vshll.u32 %v1268, 16
      %v1420 = vrot.slane %v1418, 1
      %v1421 = vor.u32 %v1416, %v1420
      %v1423 = vshll.u32 %v1269, 16
      %v1425 = vrot.slane %v1423, 1
      %v1426 = vsel %vm1282, %v1421, %v1425
      %v1428 = vshrl.u32 %v1270, 16
      %v1430 = vshll.u32 %v1270, 16
      %v1432 = vrot.slane %v1430, 1
      %v1433 = vor.u32 %v1428, %v1432
      %v1435 = vshll.u32 %v1271, 16
      %v1437 = vrot.slane %v1435, 1
      %v1438 = vsel %vm1282, %v1433, %v1437
      %v1440 = vshrl.u32 %v1272, 16
      %v1442 = vshll.u32 %v1272, 16
      %v1444 = vrot.slane %v1442, 1
      %v1445 = vor.u32 %v1440, %v1444
      %v1447 = vshll.u32 %v1273, 16
      %v1449 = vrot.slane %v1447, 1
      %v1450 = vsel %vm1282, %v1445, %v1449
      %v1452 = vshrl.u32 %v1274, 16
      %v1454 = vshll.u32 %v1274, 16
      %v1456 = vrot.slane %v1454, 1
      %v1457 = vor.u32 %v1452, %v1456
      %v1459 = vshll.u32 %v1275, 16
      %v1461 = vrot.slane %v1459, 1
      %v1462 = vsel %vm1282, %v1457, %v1461
      %v1464 = vshrl.u32 %v1276, 16
      %v1466 = vshll.u32 %v1276, 16
      %v1468 = vrot.slane %v1466, 1
      %v1469 = vor.u32 %v1464, %v1468
      %v1471 = vshll.u32 %v1277, 16
      %v1473 = vrot.slane %v1471, 1
      %v1474 = vsel %vm1282, %v1469, %v1473
      %v1476 = vshrl.u32 %v1278, 16
      %v1478 = vshll.u32 %v1278, 16
      %v1480 = vrot.slane %v1478, 1
      %v1481 = vor.u32 %v1476, %v1480
      %v1483 = vshll.u32 %v1279, 16
      %v1485 = vrot.slane %v1483, 1
      %v1486 = vsel %vm1282, %v1481, %v1485
      %v1488 = vshrl.u32 %v1280, 16
      %v1490 = vshll.u32 %v1280, 16
      %v1492 = vrot.slane %v1490, 1
      %v1493 = vor.u32 %v1488, %v1492
      %v1495 = vshll.u32 %v1281, 16
      %v1497 = vrot.slane %v1495, 1
      %v1498 = vsel %vm1282, %v1493, %v1497
      %1499 = vrot.lane.b32.xlu0 %v1294, 4
      %v1500 = vpop.permute.xlu0 %1499
      %1501 = vrot.lane.b32.xlu0 %v1306, 4
      %v1502 = vpop.permute.xlu0 %1501
      %1503 = vrot.lane.b32.xlu0 %v1318, 4
      %v1504 = vpop.permute.xlu0 %1503
      %1505 = vrot.lane.b32.xlu0 %v1330, 4
      %v1506 = vpop.permute.xlu0 %1505
      %1507 = vrot.lane.b32.xlu0 %v1342, 4
      %v1508 = vpop.permute.xlu0 %1507
      %1509 = vrot.lane.b32.xlu0 %v1354, 4
      %v1510 = vpop.permute.xlu0 %1509
      %1511 = vrot.lane.b32.xlu0 %v1366, 4
      %v1512 = vpop.permute.xlu0 %1511
      %1513 = vrot.lane.b32.xlu0 %v1378, 4
      %v1514 = vpop.permute.xlu0 %1513
      %1515 = vrot.lane.b32.xlu0 %v1390, 4
      %v1516 = vpop.permute.xlu0 %1515
      %1517 = vrot.lane.b32.xlu0 %v1402, 4
      %v1518 = vpop.permute.xlu0 %1517
      %1519 = vrot.lane.b32.xlu0 %v1414, 4
      %v1520 = vpop.permute.xlu0 %1519
      %1521 = vrot.lane.b32.xlu0 %v1426, 4
      %v1522 = vpop.permute.xlu0 %1521
      %1523 = vrot.lane.b32.xlu0 %v1438, 4
      %v1524 = vpop.permute.xlu0 %1523
      %1525 = vrot.lane.b32.xlu0 %v1450, 4
      %v1526 = vpop.permute.xlu0 %1525
      %1527 = vrot.lane.b32.xlu0 %v1462, 4
      %v1528 = vpop.permute.xlu0 %1527
      %1529 = vrot.lane.b32.xlu0 %v1474, 4
      %v1530 = vpop.permute.xlu0 %1529
      %1531 = vrot.lane.b32.xlu0 %v1486, 4
      %v1532 = vpop.permute.xlu0 %1531
      %1533 = vrot.lane.b32.xlu0 %v1498, 4
      %v1534 = vpop.permute.xlu0 %1533
      %vm1553 = vcmask 64544
      %1554 = vst.msk [vmem:[#allocation3] sm:$0xff] %vm1553, %v1500
      %1555 = vst.msk [vmem:[#allocation3 + $0x8] sm:$0xff] %vm1553, %v1502
      %1556 = vst.msk [vmem:[#allocation3 + $0x10] sm:$0xff] %vm1553, %v1504
      %1557 = vst.msk [vmem:[#allocation3 + $0x18] sm:$0xff] %vm1553, %v1506
      %1558 = vst.msk [vmem:[#allocation3 + $0x20] sm:$0xff] %vm1553, %v1508
      %1559 = vst.msk [vmem:[#allocation3 + $0x28] sm:$0xff] %vm1553, %v1510
      %1560 = vst.msk [vmem:[#allocation3 + $0x30] sm:$0xff] %vm1553, %v1512
      %1561 = vst.msk [vmem:[#allocation3 + $0x38] sm:$0xff] %vm1553, %v1514
      %1562 = vst.msk [vmem:[#allocation3 + $0x40] sm:$0xff] %vm1553, %v1516
      %1563 = vst.msk [vmem:[#allocation3 + $0x48] sm:$0xff] %vm1553, %v1518
      %1564 = vst.msk [vmem:[#allocation3 + $0x50] sm:$0xff] %vm1553, %v1520
      %1565 = vst.msk [vmem:[#allocation3 + $0x58] sm:$0xff] %vm1553, %v1522
      %1566 = vst.msk [vmem:[#allocation3 + $0x60] sm:$0xff] %vm1553, %v1524
      %1567 = vst.msk [vmem:[#allocation3 + $0x68] sm:$0xff] %vm1553, %v1526
      %1568 = vst.msk [vmem:[#allocation3 + $0x70] sm:$0xff] %vm1553, %v1528
      %1569 = vst.msk [vmem:[#allocation3 + $0x78] sm:$0xff] %vm1553, %v1530
      %1570 = vst.msk [vmem:[#allocation3 + $0x80] sm:$0xff] %vm1553, %v1532
      %1571 = vst.msk [vmem:[#allocation3 + $0x88] sm:$0xff] %vm1553, %v1534
      %v1572 = vld [vmem:[#allocation2] sm:$0xe]
      %v1573 = vld [vmem:[#allocation2 + $0x4] sm:$0xf]
      %v1574 = vld [vmem:[#allocation2 + $0x8] sm:$0x1]
      %v1575 = vld [vmem:[#allocation2 + $0xc] sm:$0xe]
      %v1576 = vld [vmem:[#allocation2 + $0x10] sm:$0xf]
      %v1577 = vld [vmem:[#allocation2 + $0x14] sm:$0x1]
      %v1578 = vld [vmem:[#allocation2 + $0x18] sm:$0xe]
      %v1579 = vld [vmem:[#allocation2 + $0x1c] sm:$0xf]
      %v1580 = vld [vmem:[#allocation2 + $0x20] sm:$0x1]
      %v1581 = vld [vmem:[#allocation2 + $0x24] sm:$0xe]
      %v1582 = vld [vmem:[#allocation2 + $0x28] sm:$0xf]
      %v1583 = vld [vmem:[#allocation2 + $0x2c] sm:$0x1]
      %v1584 = vld [vmem:[#allocation2 + $0x30] sm:$0xe]
      %v1585 = vld [vmem:[#allocation2 + $0x34] sm:$0xf]
      %v1586 = vld [vmem:[#allocation2 + $0x38] sm:$0x1]
      %v1587 = vld [vmem:[#allocation2 + $0x3c] sm:$0xe]
      %v1588 = vld [vmem:[#allocation2 + $0x40] sm:$0xf]
      %v1589 = vld [vmem:[#allocation2 + $0x44] sm:$0x1]
      %v1590 = vld [vmem:[#allocation2 + $0x48] sm:$0xe]
      %v1591 = vld [vmem:[#allocation2 + $0x4c] sm:$0xf]
      %v1592 = vld [vmem:[#allocation2 + $0x50] sm:$0x1]
      %v1593 = vld [vmem:[#allocation2 + $0x54] sm:$0xe]
      %v1594 = vld [vmem:[#allocation2 + $0x58] sm:$0xf]
      %v1595 = vld [vmem:[#allocation2 + $0x5c] sm:$0x1]
      %v1596 = vld [vmem:[#allocation2 + $0x60] sm:$0xe]
      %v1597 = vld [vmem:[#allocation2 + $0x64] sm:$0xf]
      %v1598 = vld [vmem:[#allocation2 + $0x68] sm:$0x1]
      %v1599 = vld [vmem:[#allocation2 + $0x6c] sm:$0xe]
      %v1600 = vld [vmem:[#allocation2 + $0x70] sm:$0xf]
      %v1601 = vld [vmem:[#allocation2 + $0x74] sm:$0x1]
      %v1602 = vld [vmem:[#allocation2 + $0x78] sm:$0xe]
      %v1603 = vld [vmem:[#allocation2 + $0x7c] sm:$0xf]
      %v1604 = vld [vmem:[#allocation2 + $0x80] sm:$0x1]
      %v1605 = vld [vmem:[#allocation2 + $0x84] sm:$0xe]
      %v1606 = vld [vmem:[#allocation2 + $0x88] sm:$0xf]
      %v1607 = vld [vmem:[#allocation2 + $0x8c] sm:$0x1]
      %v1608 = vld [vmem:[#allocation2 + $0x90] sm:$0xe]
      %v1609 = vld [vmem:[#allocation2 + $0x94] sm:$0xf]
      %v1610 = vld [vmem:[#allocation2 + $0x98] sm:$0x1]
      %v1611 = vld [vmem:[#allocation2 + $0x9c] sm:$0xe]
      %v1612 = vld [vmem:[#allocation2 + $0xa0] sm:$0xf]
      %v1613 = vld [vmem:[#allocation2 + $0xa4] sm:$0x1]
      %v1614 = vld [vmem:[#allocation2 + $0xa8] sm:$0xe]
      %v1615 = vld [vmem:[#allocation2 + $0xac] sm:$0xf]
      %v1616 = vld [vmem:[#allocation2 + $0xb0] sm:$0x1]
      %v1617 = vld [vmem:[#allocation2 + $0xb4] sm:$0xe]
      %v1618 = vld [vmem:[#allocation2 + $0xb8] sm:$0xf]
      %v1619 = vld [vmem:[#allocation2 + $0xbc] sm:$0x1]
      %v1620 = vld [vmem:[#allocation2 + $0xc0] sm:$0xe]
      %v1621 = vld [vmem:[#allocation2 + $0xc4] sm:$0xf]
      %v1622 = vld [vmem:[#allocation2 + $0xc8] sm:$0x1]
      %v1623 = vld [vmem:[#allocation2 + $0xcc] sm:$0xe]
      %v1624 = vld [vmem:[#allocation2 + $0xd0] sm:$0xf]
      %v1625 = vld [vmem:[#allocation2 + $0xd4] sm:$0x1]
      %v1680 = vunpack.c.l.b16 %v1572
      %v1681 = vunpack.c.l.b16 %v1573
      %v1682 = vunpack.c.l.b16 %v1574
      %v1683 = vunpack.c.l.b16 %v1575
      %v1684 = vunpack.c.l.b16 %v1576
      %v1685 = vunpack.c.l.b16 %v1577
      %v1686 = vunpack.c.l.b16 %v1578
      %v1687 = vunpack.c.l.b16 %v1579
      %v1688 = vunpack.c.l.b16 %v1580
      %v1689 = vunpack.c.l.b16 %v1581
      %v1690 = vunpack.c.l.b16 %v1582
      %v1691 = vunpack.c.l.b16 %v1583
      %v1692 = vunpack.c.l.b16 %v1584
      %v1693 = vunpack.c.l.b16 %v1585
      %v1694 = vunpack.c.l.b16 %v1586
      %v1695 = vunpack.c.l.b16 %v1587
      %v1696 = vunpack.c.l.b16 %v1588
      %v1697 = vunpack.c.l.b16 %v1589
      %v1698 = vunpack.c.l.b16 %v1590
      %v1699 = vunpack.c.l.b16 %v1591
      %v1700 = vunpack.c.l.b16 %v1592
      %v1701 = vunpack.c.l.b16 %v1593
      %v1702 = vunpack.c.l.b16 %v1594
      %v1703 = vunpack.c.l.b16 %v1595
      %v1704 = vunpack.c.l.b16 %v1596
      %v1705 = vunpack.c.l.b16 %v1597
      %v1706 = vunpack.c.l.b16 %v1598
      %v1707 = vunpack.c.l.b16 %v1599
      %v1708 = vunpack.c.l.b16 %v1600
      %v1709 = vunpack.c.l.b16 %v1601
      %v1710 = vunpack.c.l.b16 %v1602
      %v1711 = vunpack.c.l.b16 %v1603
      %v1712 = vunpack.c.l.b16 %v1604
      %v1713 = vunpack.c.l.b16 %v1605
      %v1714 = vunpack.c.l.b16 %v1606
      %v1715 = vunpack.c.l.b16 %v1607
      %v1716 = vunpack.c.l.b16 %v1608
      %v1717 = vunpack.c.l.b16 %v1609
      %v1718 = vunpack.c.l.b16 %v1610
      %v1719 = vunpack.c.l.b16 %v1611
      %v1720 = vunpack.c.l.b16 %v1612
      %v1721 = vunpack.c.l.b16 %v1613
      %v1722 = vunpack.c.l.b16 %v1614
      %v1723 = vunpack.c.l.b16 %v1615
      %v1724 = vunpack.c.l.b16 %v1616
      %v1725 = vunpack.c.l.b16 %v1617
      %v1726 = vunpack.c.l.b16 %v1618
      %v1727 = vunpack.c.l.b16 %v1619
      %v1728 = vunpack.c.l.b16 %v1620
      %v1729 = vunpack.c.l.b16 %v1621
      %v1730 = vunpack.c.l.b16 %v1622
      %v1731 = vunpack.c.l.b16 %v1623
      %v1732 = vunpack.c.l.b16 %v1624
      %v1733 = vunpack.c.l.b16 %v1625
      %v1734 = vpack.c.b16 %v1681, %v1680
      %v1735 = vpack.c.b16 %v1682, %v1682
      %v1736 = vpack.c.b16 %v1684, %v1683
      %v1737 = vpack.c.b16 %v1685, %v1685
      %v1738 = vpack.c.b16 %v1687, %v1686
      %v1739 = vpack.c.b16 %v1688, %v1688
      %v1740 = vpack.c.b16 %v1690, %v1689
      %v1741 = vpack.c.b16 %v1691, %v1691
      %v1742 = vpack.c.b16 %v1693, %v1692
      %v1743 = vpack.c.b16 %v1694, %v1694
      %v1744 = vpack.c.b16 %v1696, %v1695
      %v1745 = vpack.c.b16 %v1697, %v1697
      %v1746 = vpack.c.b16 %v1699, %v1698
      %v1747 = vpack.c.b16 %v1700, %v1700
      %v1748 = vpack.c.b16 %v1702, %v1701
      %v1749 = vpack.c.b16 %v1703, %v1703
      %v1750 = vpack.c.b16 %v1705, %v1704
      %v1751 = vpack.c.b16 %v1706, %v1706
      %v1752 = vpack.c.b16 %v1708, %v1707
      %v1753 = vpack.c.b16 %v1709, %v1709
      %v1754 = vpack.c.b16 %v1711, %v1710
      %v1755 = vpack.c.b16 %v1712, %v1712
      %v1756 = vpack.c.b16 %v1714, %v1713
      %v1757 = vpack.c.b16 %v1715, %v1715
      %v1758 = vpack.c.b16 %v1717, %v1716
      %v1759 = vpack.c.b16 %v1718, %v1718
      %v1760 = vpack.c.b16 %v1720, %v1719
      %v1761 = vpack.c.b16 %v1721, %v1721
      %v1762 = vpack.c.b16 %v1723, %v1722
      %v1763 = vpack.c.b16 %v1724, %v1724
      %v1764 = vpack.c.b16 %v1726, %v1725
      %v1765 = vpack.c.b16 %v1727, %v1727
      %v1766 = vpack.c.b16 %v1729, %v1728
      %v1767 = vpack.c.b16 %v1730, %v1730
      %v1768 = vpack.c.b16 %v1732, %v1731
      %v1769 = vpack.c.b16 %v1733, %v1733
      %vm1770 = vcmask 1046528
      %v1771 = vrot.slane %v1734, 1
      %v1772 = vrot.slane %v1735, 1
      %v1773 = vsel %vm1770, %v1771, %v1772
      %v1774 = vrot.slane %v1736, 1
      %v1775 = vrot.slane %v1737, 1
      %v1776 = vsel %vm1770, %v1774, %v1775
      %v1777 = vrot.slane %v1738, 1
      %v1778 = vrot.slane %v1739, 1
      %v1779 = vsel %vm1770, %v1777, %v1778
      %v1780 = vrot.slane %v1740, 1
      %v1781 = vrot.slane %v1741, 1
      %v1782 = vsel %vm1770, %v1780, %v1781
      %v1783 = vrot.slane %v1742, 1
      %v1784 = vrot.slane %v1743, 1
      %v1785 = vsel %vm1770, %v1783, %v1784
      %v1786 = vrot.slane %v1744, 1
      %v1787 = vrot.slane %v1745, 1
      %v1788 = vsel %vm1770, %v1786, %v1787
      %v1789 = vrot.slane %v1746, 1
      %v1790 = vrot.slane %v1747, 1
      %v1791 = vsel %vm1770, %v1789, %v1790
      %v1792 = vrot.slane %v1748, 1
      %v1793 = vrot.slane %v1749, 1
      %v1794 = vsel %vm1770, %v1792, %v1793
      %v1795 = vrot.slane %v1750, 1
      %v1796 = vrot.slane %v1751, 1
      %v1797 = vsel %vm1770, %v1795, %v1796
      %v1798 = vrot.slane %v1752, 1
      %v1799 = vrot.slane %v1753, 1
      %v1800 = vsel %vm1770, %v1798, %v1799
      %v1801 = vrot.slane %v1754, 1
      %v1802 = vrot.slane %v1755, 1
      %v1803 = vsel %vm1770, %v1801, %v1802
      %v1804 = vrot.slane %v1756, 1
      %v1805 = vrot.slane %v1757, 1
      %v1806 = vsel %vm1770, %v1804, %v1805
      %v1807 = vrot.slane %v1758, 1
      %v1808 = vrot.slane %v1759, 1
      %v1809 = vsel %vm1770, %v1807, %v1808
      %v1810 = vrot.slane %v1760, 1
      %v1811 = vrot.slane %v1761, 1
      %v1812 = vsel %vm1770, %v1810, %v1811
      %v1813 = vrot.slane %v1762, 1
      %v1814 = vrot.slane %v1763, 1
      %v1815 = vsel %vm1770, %v1813, %v1814
      %v1816 = vrot.slane %v1764, 1
      %v1817 = vrot.slane %v1765, 1
      %v1818 = vsel %vm1770, %v1816, %v1817
      %v1819 = vrot.slane %v1766, 1
      %v1820 = vrot.slane %v1767, 1
      %v1821 = vsel %vm1770, %v1819, %v1820
      %v1822 = vrot.slane %v1768, 1
      %v1823 = vrot.slane %v1769, 1
      %v1824 = vsel %vm1770, %v1822, %v1823
      %1825 = vrot.lane.b32.xlu0 %v1773, 8
      %v1826 = vpop.permute.xlu0 %1825
      %1827 = vrot.lane.b32.xlu0 %v1776, 8
      %v1828 = vpop.permute.xlu0 %1827
      %1829 = vrot.lane.b32.xlu0 %v1779, 8
      %v1830 = vpop.permute.xlu0 %1829
      %1831 = vrot.lane.b32.xlu0 %v1782, 8
      %v1832 = vpop.permute.xlu0 %1831
      %1833 = vrot.lane.b32.xlu0 %v1785, 8
      %v1834 = vpop.permute.xlu0 %1833
      %1835 = vrot.lane.b32.xlu0 %v1788, 8
      %v1836 = vpop.permute.xlu0 %1835
      %1837 = vrot.lane.b32.xlu0 %v1791, 8
      %v1838 = vpop.permute.xlu0 %1837
      %1839 = vrot.lane.b32.xlu0 %v1794, 8
      %v1840 = vpop.permute.xlu0 %1839
      %1841 = vrot.lane.b32.xlu0 %v1797, 8
      %v1842 = vpop.permute.xlu0 %1841
      %1843 = vrot.lane.b32.xlu0 %v1800, 8
      %v1844 = vpop.permute.xlu0 %1843
      %1845 = vrot.lane.b32.xlu0 %v1803, 8
      %v1846 = vpop.permute.xlu0 %1845
      %1847 = vrot.lane.b32.xlu0 %v1806, 8
      %v1848 = vpop.permute.xlu0 %1847
      %1849 = vrot.lane.b32.xlu0 %v1809, 8
      %v1850 = vpop.permute.xlu0 %1849
      %1851 = vrot.lane.b32.xlu0 %v1812, 8
      %v1852 = vpop.permute.xlu0 %1851
      %1853 = vrot.lane.b32.xlu0 %v1815, 8
      %v1854 = vpop.permute.xlu0 %1853
      %1855 = vrot.lane.b32.xlu0 %v1818, 8
      %v1856 = vpop.permute.xlu0 %1855
      %1857 = vrot.lane.b32.xlu0 %v1821, 8
      %v1858 = vpop.permute.xlu0 %1857
      %1859 = vrot.lane.b32.xlu0 %v1824, 8
      %v1860 = vpop.permute.xlu0 %1859
      %vm1879 = vcmask 97344
      %1880 = vst.msk [vmem:[#allocation3] sm:$0xff] %vm1879, %v1826
      %1881 = vst.msk [vmem:[#allocation3 + $0x8] sm:$0xff] %vm1879, %v1828
      %1882 = vst.msk [vmem:[#allocation3 + $0x10] sm:$0xff] %vm1879, %v1830
      %1883 = vst.msk [vmem:[#allocation3 + $0x18] sm:$0xff] %vm1879, %v1832
      %1884 = vst.msk [vmem:[#allocation3 + $0x20] sm:$0xff] %vm1879, %v1834
      %1885 = vst.msk [vmem:[#allocation3 + $0x28] sm:$0xff] %vm1879, %v1836
      %1886 = vst.msk [vmem:[#allocation3 + $0x30] sm:$0xff] %vm1879, %v1838
      %1887 = vst.msk [vmem:[#allocation3 + $0x38] sm:$0xff] %vm1879, %v1840
      %1888 = vst.msk [vmem:[#allocation3 + $0x40] sm:$0xff] %vm1879, %v1842
      %1889 = vst.msk [vmem:[#allocation3 + $0x48] sm:$0xff] %vm1879, %v1844
      %1890 = vst.msk [vmem:[#allocation3 + $0x50] sm:$0xff] %vm1879, %v1846
      %1891 = vst.msk [vmem:[#allocation3 + $0x58] sm:$0xff] %vm1879, %v1848
      %1892 = vst.msk [vmem:[#allocation3 + $0x60] sm:$0xff] %vm1879, %v1850
      %1893 = vst.msk [vmem:[#allocation3 + $0x68] sm:$0xff] %vm1879, %v1852
      %1894 = vst.msk [vmem:[#allocation3 + $0x70] sm:$0xff] %vm1879, %v1854
      %1895 = vst.msk [vmem:[#allocation3 + $0x78] sm:$0xff] %vm1879, %v1856
      %1896 = vst.msk [vmem:[#allocation3 + $0x80] sm:$0xff] %vm1879, %v1858
      %1897 = vst.msk [vmem:[#allocation3 + $0x88] sm:$0xff] %vm1879, %v1860
      %v1898 = vld [vmem:[#allocation3] sm:$0xff]
      %v1899 = vld [vmem:[#allocation3 + $0x8] sm:$0xff]
      %v1900 = vld [vmem:[#allocation3 + $0x10] sm:$0xff]
      %v1901 = vld [vmem:[#allocation3 + $0x18] sm:$0xff]
      %v1902 = vld [vmem:[#allocation3 + $0x20] sm:$0xff]
      %v1903 = vld [vmem:[#allocation3 + $0x28] sm:$0xff]
      %v1904 = vld [vmem:[#allocation3 + $0x30] sm:$0xff]
      %v1905 = vld [vmem:[#allocation3 + $0x38] sm:$0xff]
      %v1906 = vld [vmem:[#allocation3 + $0x40] sm:$0xff]
      %v1907 = vld [vmem:[#allocation3 + $0x48] sm:$0xff]
      %v1908 = vld [vmem:[#allocation3 + $0x50] sm:$0xff]
      %v1909 = vld [vmem:[#allocation3 + $0x58] sm:$0xff]
      %v1910 = vld [vmem:[#allocation3 + $0x60] sm:$0xff]
      %v1911 = vld [vmem:[#allocation3 + $0x68] sm:$0xff]
      %v1912 = vld [vmem:[#allocation3 + $0x70] sm:$0xff]
      %v1913 = vld [vmem:[#allocation3 + $0x78] sm:$0xff]
      %v1914 = vld [vmem:[%s227] sm:$0xf]
      %v1915 = vld [vmem:[%s227 + $0x4] sm:$0x3]
      %s1916 = scalar_lea.vmem [#allocation3], 8
      %v1917 = vld [vmem:[%s1916] sm:$0xff]
      %v1918 = vld [vmem:[%s1916 + $0x8] sm:$0xff]
      %v1919 = vld [vmem:[%s1916 + $0x10] sm:$0xff]
      %v1920 = vld [vmem:[%s1916 + $0x18] sm:$0xff]
      %v1921 = vld [vmem:[%s1916 + $0x20] sm:$0xff]
      %v1922 = vld [vmem:[%s1916 + $0x28] sm:$0xff]
      %v1923 = vld [vmem:[%s1916 + $0x30] sm:$0xff]
      %v1924 = vld [vmem:[%s1916 + $0x38] sm:$0xff]
      %v1925 = vld [vmem:[%s1916 + $0x40] sm:$0xff]
      %v1926 = vld [vmem:[%s1916 + $0x48] sm:$0xff]
      %v1927 = vld [vmem:[%s1916 + $0x50] sm:$0xff]
      %v1928 = vld [vmem:[%s1916 + $0x58] sm:$0xff]
      %v1929 = vld [vmem:[%s1916 + $0x60] sm:$0xff]
      %v1930 = vld [vmem:[%s1916 + $0x68] sm:$0xff]
      %v1931 = vld [vmem:[%s1916 + $0x70] sm:$0xff]
      %v1932 = vld [vmem:[%s1916 + $0x78] sm:$0xff]
      %s1933 = scalar_lea.vmem %s227, 8
      %v1934 = vld [vmem:[%s1933] sm:$0xf]
      %v1935 = vld [vmem:[%s1933 + $0x4] sm:$0x3]
      %v1938 = vunpack.c.l.b16 %v1934
      %v1939 = vunpack.c.l.b16 %v1935
      %v1940 = vpack.c.b16 %v1939, %v1938
      %vm1941 = vcmask 97280
      %v1943 = vsel %vm1941, %v1917, 0
      %v1946 = vsel %vm1941, %v1918, 0
      %v1949 = vsel %vm1941, %v1919, 0
      %v1952 = vsel %vm1941, %v1920, 0
      %v1955 = vsel %vm1941, %v1921, 0
      %v1958 = vsel %vm1941, %v1922, 0
      %v1961 = vsel %vm1941, %v1923, 0
      %v1964 = vsel %vm1941, %v1924, 0
      %v1967 = vsel %vm1941, %v1925, 0
      %v1970 = vsel %vm1941, %v1926, 0
      %v1973 = vsel %vm1941, %v1927, 0
      %v1976 = vsel %vm1941, %v1928, 0
      %v1979 = vsel %vm1941, %v1929, 0
      %v1982 = vsel %vm1941, %v1930, 0
      %v1985 = vsel %vm1941, %v1931, 0
      %v1988 = vsel %vm1941, %v1932, 0
      %vm1990 = vcmask 1045504
      %v1992 = vsel %vm1990, %v1940, 0
      %1994 = vmatprep.subr.bf16.mxu0 0
      %1995 = vmatpush1.bf16.msra.mxu0 %v1992
      %1996 = vmatprep.subr.bf16.mxu0 0
      %1997 = vmatpush1.bf16.msra.mxu0 0
      %1998 = vmatprep.subr.bf16.mxu0 0
      %1999 = vmatpush1.bf16.msra.mxu0 0
      %2000 = vmatprep.subr.bf16.mxu0 0
      %2001 = vmatpush1.bf16.msra.mxu0 0
      %2002 = vmatprep.subr.bf16.mxu0 0
      %2003 = vmatpush1.bf16.msra.mxu0 0
      %2004 = vmatprep.subr.bf16.mxu0 0
      %2005 = vmatpush1.bf16.msra.mxu0 0
      %2006 = vmatprep.subr.bf16.mxu0 0
      %2007 = vmatpush1.bf16.msra.mxu0 0
      %2008 = vmatprep.subr.bf16.mxu0 0
      %2009 = vmatpush1.bf16.msra.mxu0 0
      %2010 = vmatprep.subr.bf16.mxu0 0
      %2011 = vmatpush1.bf16.msra.mxu0 0
      %2012 = vmatprep.subr.bf16.mxu0 0
      %2013 = vmatpush1.bf16.msra.mxu0 0
      %2014 = vmatprep.subr.bf16.mxu0 0
      %2015 = vmatpush1.bf16.msra.mxu0 0
      %2016 = vmatprep.subr.bf16.mxu0 0
      %2017 = vmatpush1.bf16.msra.mxu0 0
      %2018 = vmatprep.subr.bf16.mxu0 0
      %2019 = vmatpush1.bf16.msra.mxu0 0
      %2020 = vmatprep.subr.bf16.mxu0 0
      %2021 = vmatpush1.bf16.msra.mxu0 0
      %2022 = vmatprep.subr.bf16.mxu0 0
      %2023 = vmatpush1.bf16.msra.mxu0 0
      %2024 = vmatprep.subr.bf16.mxu0 0
      %2025 = vmatpush1.bf16.msra.mxu0 0
      %2026 = vmatprep.mubr.bf16.mxu0 0
      %2027 = vmatmul.mubr.bf16.gmra.mrb[0].mxu0 %v1943
      %v2028 = vpop.f32.mrb[0].mxu0
      %v2029 = vadd.f32 0.0, %v2028
      %v2030 = vpop.f32.mrb[0].mxu0
      %v2031 = vpop.f32.mrb[0].mxu0
      %v2032 = vadd.f32 0.0, %v2031
      %v2033 = vpop.f32.mrb[0].mxu0
      %2034 = vmatprep.mubr.bf16.mxu0 0
      %2035 = vmatmul.mubr.bf16.gmra.mrb[0].mxu0 %v1946
      %v2036 = vpop.f32.mrb[0].mxu0
      %v2037 = vadd.f32 0.0, %v2036
      %v2038 = vpop.f32.mrb[0].mxu0
      %v2039 = vpop.f32.mrb[0].mxu0
      %v2040 = vadd.f32 0.0, %v2039
      %v2041 = vpop.f32.mrb[0].mxu0
      %2042 = vmatprep.mubr.bf16.mxu0 0
      %2043 = vmatmul.mubr.bf16.gmra.mrb[0].mxu0 %v1949
      %v2044 = vpop.f32.mrb[0].mxu0
      %v2045 = vadd.f32 0.0, %v2044
      %v2046 = vpop.f32.mrb[0].mxu0
      %v2047 = vpop.f32.mrb[0].mxu0
      %v2048 = vadd.f32 0.0, %v2047
      %v2049 = vpop.f32.mrb[0].mxu0
      %2050 = vmatprep.mubr.bf16.mxu0 0
      %2051 = vmatmul.mubr.bf16.gmra.mrb[0].mxu0 %v1952
      %v2052 = vpop.f32.mrb[0].mxu0
      %v2053 = vadd.f32 0.0, %v2052
      %v2054 = vpop.f32.mrb[0].mxu0
      %v2055 = vpop.f32.mrb[0].mxu0
      %v2056 = vadd.f32 0.0, %v2055
      %v2057 = vpop.f32.mrb[0].mxu0
      %2058 = vmatprep.mubr.bf16.mxu0 0
      %2059 = vmatmul.mubr.bf16.gmra.mrb[0].mxu0 %v1955
      %v2060 = vpop.f32.mrb[0].mxu0
      %v2061 = vadd.f32 0.0, %v2060
      %v2062 = vpop.f32.mrb[0].mxu0
      %v2063 = vpop.f32.mrb[0].mxu0
      %v2064 = vadd.f32 0.0, %v2063
      %v2065 = vpop.f32.mrb[0].mxu0
      %2066 = vmatprep.mubr.bf16.mxu0 0
      %2067 = vmatmul.mubr.bf16.gmra.mrb[0].mxu0 %v1958
      %v2068 = vpop.f32.mrb[0].mxu0
      %v2069 = vadd.f32 0.0, %v2068
      %v2070 = vpop.f32.mrb[0].mxu0
      %v2071 = vpop.f32.mrb[0].mxu0
      %v2072 = vadd.f32 0.0, %v2071
      %v2073 = vpop.f32.mrb[0].mxu0
      %2074 = vmatprep.mubr.bf16.mxu0 0
      %2075 = vmatmul.mubr.bf16.gmra.mrb[0].mxu0 %v1961
      %v2076 = vpop.f32.mrb[0].mxu0
      %v2077 = vadd.f32 0.0, %v2076
      %v2078 = vpop.f32.mrb[0].mxu0
      %v2079 = vpop.f32.mrb[0].mxu0
      %v2080 = vadd.f32 0.0, %v2079
      %v2081 = vpop.f32.mrb[0].mxu0
      %2082 = vmatprep.mubr.bf16.mxu0 0
      %2083 = vmatmul.mubr.bf16.gmra.mrb[0].mxu0 %v1964
      %v2084 = vpop.f32.mrb[0].mxu0
      %v2085 = vadd.f32 0.0, %v2084
      %v2086 = vpop.f32.mrb[0].mxu0
      %v2087 = vpop.f32.mrb[0].mxu0
      %v2088 = vadd.f32 0.0, %v2087
      %v2089 = vpop.f32.mrb[0].mxu0
      %2090 = vmatprep.mubr.bf16.mxu0 0
      %2091 = vmatmul.mubr.bf16.gmra.mrb[0].mxu0 %v1967
      %v2092 = vpop.f32.mrb[0].mxu0
      %v2093 = vadd.f32 0.0, %v2092
      %v2094 = vpop.f32.mrb[0].mxu0
      %v2095 = vpop.f32.mrb[0].mxu0
      %v2096 = vadd.f32 0.0, %v2095
      %v2097 = vpop.f32.mrb[0].mxu0
      %2098 = vmatprep.mubr.bf16.mxu0 0
      %2099 = vmatmul.mubr.bf16.gmra.mrb[0].mxu0 %v1970
      %v2100 = vpop.f32.mrb[0].mxu0
      %v2101 = vadd.f32 0.0, %v2100
      %v2102 = vpop.f32.mrb[0].mxu0
      %v2103 = vpop.f32.mrb[0].mxu0
      %v2104 = vadd.f32 0.0, %v2103
      %v2105 = vpop.f32.mrb[0].mxu0
      %2106 = vmatprep.mubr.bf16.mxu0 0
      %2107 = vmatmul.mubr.bf16.gmra.mrb[0].mxu0 %v1973
      %v2108 = vpop.f32.mrb[0].mxu0
      %v2109 = vadd.f32 0.0, %v2108
      %v2110 = vpop.f32.mrb[0].mxu0
      %v2111 = vpop.f32.mrb[0].mxu0
      %v2112 = vadd.f32 0.0, %v2111
      %v2113 = vpop.f32.mrb[0].mxu0
      %2114 = vmatprep.mubr.bf16.mxu0 0
      %2115 = vmatmul.mubr.bf16.gmra.mrb[0].mxu0 %v1976
      %v2116 = vpop.f32.mrb[0].mxu0
      %v2117 = vadd.f32 0.0, %v2116
      %v2118 = vpop.f32.mrb[0].mxu0
      %v2119 = vpop.f32.mrb[0].mxu0
      %v2120 = vadd.f32 0.0, %v2119
      %v2121 = vpop.f32.mrb[0].mxu0
      %2122 = vmatprep.mubr.bf16.mxu0 0
      %2123 = vmatmul.mubr.bf16.gmra.mrb[0].mxu0 %v1979
      %v2124 = vpop.f32.mrb[0].mxu0
      %v2125 = vadd.f32 0.0, %v2124
      %v2126 = vpop.f32.mrb[0].mxu0
      %v2127 = vpop.f32.mrb[0].mxu0
      %v2128 = vadd.f32 0.0, %v2127
      %v2129 = vpop.f32.mrb[0].mxu0
      %2130 = vmatprep.mubr.bf16.mxu0 0
      %2131 = vmatmul.mubr.bf16.gmra.mrb[0].mxu0 %v1982
      %v2132 = vpop.f32.mrb[0].mxu0
      %v2133 = vadd.f32 0.0, %v2132
      %v2134 = vpop.f32.mrb[0].mxu0
      %v2135 = vpop.f32.mrb[0].mxu0
      %v2136 = vadd.f32 0.0, %v2135
      %v2137 = vpop.f32.mrb[0].mxu0
      %2138 = vmatprep.mubr.bf16.mxu0 0
      %2139 = vmatmul.mubr.bf16.gmra.mrb[0].mxu0 %v1985
      %v2140 = vpop.f32.mrb[0].mxu0
      %v2141 = vadd.f32 0.0, %v2140
      %v2142 = vpop.f32.mrb[0].mxu0
      %v2143 = vpop.f32.mrb[0].mxu0
      %v2144 = vadd.f32 0.0, %v2143
      %v2145 = vpop.f32.mrb[0].mxu0
      %2146 = vmatprep.mubr.bf16.mxu0 0
      %2147 = vmatmul.mubr.bf16.gmra.mrb[0].mxu0 %v1988
      %v2148 = vpop.f32.mrb[0].mxu0
      %v2149 = vadd.f32 0.0, %v2148
      %v2150 = vpop.f32.mrb[0].mxu0
      %v2151 = vpop.f32.mrb[0].mxu0
      %v2152 = vadd.f32 0.0, %v2151
      %v2153 = vpop.f32.mrb[0].mxu0
      %2154 = vdwg.mxu0
      %v2157 = vunpack.c.l.b16 %v1914
      %v2158 = vunpack.c.l.b16 %v1915
      %v2159 = vpack.c.b16 %v2158, %v2157
      %v2161 = vsel %vm1941, %v1898, 0
      %v2164 = vsel %vm1941, %v1899, 0
      %v2167 = vsel %vm1941, %v1900, 0
      %v2170 = vsel %vm1941, %v1901, 0
      %v2173 = vsel %vm1941, %v1902, 0
      %v2176 = vsel %vm1941, %v1903, 0
      %v2179 = vsel %vm1941, %v1904, 0
      %v2182 = vsel %vm1941, %v1905, 0
      %v2185 = vsel %vm1941, %v1906, 0
      %v2188 = vsel %vm1941, %v1907, 0
      %v2191 = vsel %vm1941, %v1908, 0
      %v2194 = vsel %vm1941, %v1909, 0
      %v2197 = vsel %vm1941, %v1910, 0
      %v2200 = vsel %vm1941, %v1911, 0
      %v2203 = vsel %vm1941, %v1912, 0
      %v2206 = vsel %vm1941, %v1913, 0
      %v2209 = vsel %vm1990, %v2159, 0
      %2211 = vmatprep.subr.bf16.mxu0 0
      %2212 = vmatpush1.bf16.msra.mxu0 %v2209
      %2213 = vmatprep.subr.bf16.mxu0 0
      %2214 = vmatpush1.bf16.msra.mxu0 0
      %2215 = vmatprep.subr.bf16.mxu0 0
      %2216 = vmatpush1.bf16.msra.mxu0 0
      %2217 = vmatprep.subr.bf16.mxu0 0
      %2218 = vmatpush1.bf16.msra.mxu0 0
      %2219 = vmatprep.subr.bf16.mxu0 0
      %2220 = vmatpush1.bf16.msra.mxu0 0
      %2221 = vmatprep.subr.bf16.mxu0 0
      %2222 = vmatpush1.bf16.msra.mxu0 0
      %2223 = vmatprep.subr.bf16.mxu0 0
      %2224 = vmatpush1.bf16.msra.mxu0 0
      %2225 = vmatprep.subr.bf16.mxu0 0
      %2226 = vmatpush1.bf16.msra.mxu0 0
      %2227 = vmatprep.subr.bf16.mxu0 0
      %2228 = vmatpush1.bf16.msra.mxu0 0
      %2229 = vmatprep.subr.bf16.mxu0 0
      %2230 = vmatpush1.bf16.msra.mxu0 0
      %2231 = vmatprep.subr.bf16.mxu0 0
      %2232 = vmatpush1.bf16.msra.mxu0 0
      %2233 = vmatprep.subr.bf16.mxu0 0
      %2234 = vmatpush1.bf16.msra.mxu0 0
      %2235 = vmatprep.subr.bf16.mxu0 0
      %2236 = vmatpush1.bf16.msra.mxu0 0
      %2237 = vmatprep.subr.bf16.mxu0 0
      %2238 = vmatpush1.bf16.msra.mxu0 0
      %2239 = vmatprep.subr.bf16.mxu0 0
      %2240 = vmatpush1.bf16.msra.mxu0 0
      %2241 = vmatprep.subr.bf16.mxu0 0
      %2242 = vmatpush1.bf16.msra.mxu0 0
      %2243 = vmatprep.mubr.bf16.mxu0 0
      %2244 = vmatmul.mubr.bf16.gmra.mrb[0].mxu0 %v2161
      %v2245 = vpop.f32.mrb[0].mxu0
      %v2246 = vadd.f32 %v2029, %v2245
      %v2247 = vpop.f32.mrb[0].mxu0
      %v2248 = vpop.f32.mrb[0].mxu0
      %v2249 = vadd.f32 %v2032, %v2248
      %v2250 = vpop.f32.mrb[0].mxu0
      %2251 = vmatprep.mubr.bf16.mxu0 0
      %2252 = vmatmul.mubr.bf16.gmra.mrb[0].mxu0 %v2164
      %v2253 = vpop.f32.mrb[0].mxu0
      %v2254 = vadd.f32 %v2037, %v2253
      %v2255 = vpop.f32.mrb[0].mxu0
      %v2256 = vpop.f32.mrb[0].mxu0
      %v2257 = vadd.f32 %v2040, %v2256
      %v2258 = vpop.f32.mrb[0].mxu0
      %2259 = vmatprep.mubr.bf16.mxu0 0
      %2260 = vmatmul.mubr.bf16.gmra.mrb[0].mxu0 %v2167
      %v2261 = vpop.f32.mrb[0].mxu0
      %v2262 = vadd.f32 %v2045, %v2261
      %v2263 = vpop.f32.mrb[0].mxu0
      %v2264 = vpop.f32.mrb[0].mxu0
      %v2265 = vadd.f32 %v2048, %v2264
      %v2266 = vpop.f32.mrb[0].mxu0
      %2267 = vmatprep.mubr.bf16.mxu0 0
      %2268 = vmatmul.mubr.bf16.gmra.mrb[0].mxu0 %v2170
      %v2269 = vpop.f32.mrb[0].mxu0
      %v2270 = vadd.f32 %v2053, %v2269
      %v2271 = vpop.f32.mrb[0].mxu0
      %v2272 = vpop.f32.mrb[0].mxu0
      %v2273 = vadd.f32 %v2056, %v2272
      %v2274 = vpop.f32.mrb[0].mxu0
      %2275 = vmatprep.mubr.bf16.mxu0 0
      %2276 = vmatmul.mubr.bf16.gmra.mrb[0].mxu0 %v2173
      %v2277 = vpop.f32.mrb[0].mxu0
      %v2278 = vadd.f32 %v2061, %v2277
      %v2279 = vpop.f32.mrb[0].mxu0
      %v2280 = vpop.f32.mrb[0].mxu0
      %v2281 = vadd.f32 %v2064, %v2280
      %v2282 = vpop.f32.mrb[0].mxu0
      %2283 = vmatprep.mubr.bf16.mxu0 0
      %2284 = vmatmul.mubr.bf16.gmra.mrb[0].mxu0 %v2176
      %v2285 = vpop.f32.mrb[0].mxu0
      %v2286 = vadd.f32 %v2069, %v2285
      %v2287 = vpop.f32.mrb[0].mxu0
      %v2288 = vpop.f32.mrb[0].mxu0
      %v2289 = vadd.f32 %v2072, %v2288
      %v2290 = vpop.f32.mrb[0].mxu0
      %2291 = vmatprep.mubr.bf16.mxu0 0
      %2292 = vmatmul.mubr.bf16.gmra.mrb[0].mxu0 %v2179
      %v2293 = vpop.f32.mrb[0].mxu0
      %v2294 = vadd.f32 %v2077, %v2293
      %v2295 = vpop.f32.mrb[0].mxu0
      %v2296 = vpop.f32.mrb[0].mxu0
      %v2297 = vadd.f32 %v2080, %v2296
      %v2298 = vpop.f32.mrb[0].mxu0
      %2299 = vmatprep.mubr.bf16.mxu0 0
      %2300 = vmatmul.mubr.bf16.gmra.mrb[0].mxu0 %v2182
      %v2301 = vpop.f32.mrb[0].mxu0
      %v2302 = vadd.f32 %v2085, %v2301
      %v2303 = vpop.f32.mrb[0].mxu0
      %v2304 = vpop.f32.mrb[0].mxu0
      %v2305 = vadd.f32 %v2088, %v2304
      %v2306 = vpop.f32.mrb[0].mxu0
      %2307 = vmatprep.mubr.bf16.mxu0 0
      %2308 = vmatmul.mubr.bf16.gmra.mrb[0].mxu0 %v2185
      %v2309 = vpop.f32.mrb[0].mxu0
      %v2310 = vadd.f32 %v2093, %v2309
      %v2311 = vpop.f32.mrb[0].mxu0
      %v2312 = vpop.f32.mrb[0].mxu0
      %v2313 = vadd.f32 %v2096, %v2312
      %v2314 = vpop.f32.mrb[0].mxu0
      %2315 = vmatprep.mubr.bf16.mxu0 0
      %2316 = vmatmul.mubr.bf16.gmra.mrb[0].mxu0 %v2188
      %v2317 = vpop.f32.mrb[0].mxu0
      %v2318 = vadd.f32 %v2101, %v2317
      %v2319 = vpop.f32.mrb[0].mxu0
      %v2320 = vpop.f32.mrb[0].mxu0
      %v2321 = vadd.f32 %v2104, %v2320
      %v2322 = vpop.f32.mrb[0].mxu0
      %2323 = vmatprep.mubr.bf16.mxu0 0
      %2324 = vmatmul.mubr.bf16.gmra.mrb[0].mxu0 %v2191
      %v2325 = vpop.f32.mrb[0].mxu0
      %v2326 = vadd.f32 %v2109, %v2325
      %v2327 = vpop.f32.mrb[0].mxu0
      %v2328 = vpop.f32.mrb[0].mxu0
      %v2329 = vadd.f32 %v2112, %v2328
      %v2330 = vpop.f32.mrb[0].mxu0
      %2331 = vmatprep.mubr.bf16.mxu0 0
      %2332 = vmatmul.mubr.bf16.gmra.mrb[0].mxu0 %v2194
      %v2333 = vpop.f32.mrb[0].mxu0
      %v2334 = vadd.f32 %v2117, %v2333
      %v2335 = vpop.f32.mrb[0].mxu0
      %v2336 = vpop.f32.mrb[0].mxu0
      %v2337 = vadd.f32 %v2120, %v2336
      %v2338 = vpop.f32.mrb[0].mxu0
      %2339 = vmatprep.mubr.bf16.mxu0 0
      %2340 = vmatmul.mubr.bf16.gmra.mrb[0].mxu0 %v2197
      %v2341 = vpop.f32.mrb[0].mxu0
      %v2342 = vadd.f32 %v2125, %v2341
      %v2343 = vpop.f32.mrb[0].mxu0
      %v2344 = vpop.f32.mrb[0].mxu0
      %v2345 = vadd.f32 %v2128, %v2344
      %v2346 = vpop.f32.mrb[0].mxu0
      %2347 = vmatprep.mubr.bf16.mxu0 0
      %2348 = vmatmul.mubr.bf16.gmra.mrb[0].mxu0 %v2200
      %v2349 = vpop.f32.mrb[0].mxu0
      %v2350 = vadd.f32 %v2133, %v2349
      %v2351 = vpop.f32.mrb[0].mxu0
      %v2352 = vpop.f32.mrb[0].mxu0
      %v2353 = vadd.f32 %v2136, %v2352
      %v2354 = vpop.f32.mrb[0].mxu0
      %2355 = vmatprep.mubr.bf16.mxu0 0
      %2356 = vmatmul.mubr.bf16.gmra.mrb[0].mxu0 %v2203
      %v2357 = vpop.f32.mrb[0].mxu0
      %v2358 = vadd.f32 %v2141, %v2357
      %v2359 = vpop.f32.mrb[0].mxu0
      %v2360 = vpop.f32.mrb[0].mxu0
      %v2361 = vadd.f32 %v2144, %v2360
      %v2362 = vpop.f32.mrb[0].mxu0
      %2363 = vmatprep.mubr.bf16.mxu0 0
      %2364 = vmatmul.mubr.bf16.gmra.mrb[0].mxu0 %v2206
      %v2365 = vpop.f32.mrb[0].mxu0
      %v2366 = vadd.f32 %v2149, %v2365
      %v2367 = vpop.f32.mrb[0].mxu0
      %v2368 = vpop.f32.mrb[0].mxu0
      %v2369 = vadd.f32 %v2152, %v2368
      %v2370 = vpop.f32.mrb[0].mxu0
      %2371 = vdwg.mxu0
      %s2372 = scalar_lea.vmem [#allocation3], 16
      %v2373 = vld [vmem:[%s2372] sm:$0xff]
      %v2374 = vld [vmem:[%s2372 + $0x8] sm:$0xff]
      %v2375 = vld [vmem:[%s2372 + $0x10] sm:$0xff]
      %v2376 = vld [vmem:[%s2372 + $0x18] sm:$0xff]
      %v2377 = vld [vmem:[%s2372 + $0x20] sm:$0xff]
      %v2378 = vld [vmem:[%s2372 + $0x28] sm:$0xff]
      %v2379 = vld [vmem:[%s2372 + $0x30] sm:$0xff]
      %v2380 = vld [vmem:[%s2372 + $0x38] sm:$0xff]
      %v2381 = vld [vmem:[%s2372 + $0x40] sm:$0xff]
      %v2382 = vld [vmem:[%s2372 + $0x48] sm:$0xff]
      %v2383 = vld [vmem:[%s2372 + $0x50] sm:$0xff]
      %v2384 = vld [vmem:[%s2372 + $0x58] sm:$0xff]
      %v2385 = vld [vmem:[%s2372 + $0x60] sm:$0xff]
      %v2386 = vld [vmem:[%s2372 + $0x68] sm:$0xff]
      %v2387 = vld [vmem:[%s2372 + $0x70] sm:$0xff]
      %v2388 = vld [vmem:[%s2372 + $0x78] sm:$0xff]
      %s2389 = scalar_lea.vmem %s227, 16
      %v2390 = vld [vmem:[%s2389] sm:$0xf]
      %v2391 = vld [vmem:[%s2389 + $0x4] sm:$0x3]
      %v2394 = vunpack.c.l.b16 %v2390
      %v2395 = vunpack.c.l.b16 %v2391
      %v2396 = vpack.c.b16 %v2395, %v2394
      %v2398 = vsel %vm1941, %v2373, 0
      %v2401 = vsel %vm1941, %v2374, 0
      %v2404 = vsel %vm1941, %v2375, 0
      %v2407 = vsel %vm1941, %v2376, 0
      %v2410 = vsel %vm1941, %v2377, 0
      %v2413 = vsel %vm1941, %v2378, 0
      %v2416 = vsel %vm1941, %v2379, 0
      %v2419 = vsel %vm1941, %v2380, 0
      %v2422 = vsel %vm1941, %v2381, 0
      %v2425 = vsel %vm1941, %v2382, 0
      %v2428 = vsel %vm1941, %v2383, 0
      %v2431 = vsel %vm1941, %v2384, 0
      %v2434 = vsel %vm1941, %v2385, 0
      %v2437 = vsel %vm1941, %v2386, 0
      %v2440 = vsel %vm1941, %v2387, 0
      %v2443 = vsel %vm1941, %v2388, 0
      %v2446 = vsel %vm1990, %v2396, 0
      %2448 = vmatprep.subr.bf16.mxu0 0
      %2449 = vmatpush1.bf16.msra.mxu0 %v2446
      %2450 = vmatprep.subr.bf16.mxu0 0
      %2451 = vmatpush1.bf16.msra.mxu0 0
      %2452 = vmatprep.subr.bf16.mxu0 0
      %2453 = vmatpush1.bf16.msra.mxu0 0
      %2454 = vmatprep.subr.bf16.mxu0 0
      %2455 = vmatpush1.bf16.msra.mxu0 0
      %2456 = vmatprep.subr.bf16.mxu0 0
      %2457 = vmatpush1.bf16.msra.mxu0 0
      %2458 = vmatprep.subr.bf16.mxu0 0
      %2459 = vmatpush1.bf16.msra.mxu0 0
      %2460 = vmatprep.subr.bf16.mxu0 0
      %2461 = vmatpush1.bf16.msra.mxu0 0
      %2462 = vmatprep.subr.bf16.mxu0 0
      %2463 = vmatpush1.bf16.msra.mxu0 0
      %2464 = vmatprep.subr.bf16.mxu0 0
      %2465 = vmatpush1.bf16.msra.mxu0 0
      %2466 = vmatprep.subr.bf16.mxu0 0
      %2467 = vmatpush1.bf16.msra.mxu0 0
      %2468 = vmatprep.subr.bf16.mxu0 0
      %2469 = vmatpush1.bf16.msra.mxu0 0
      %2470 = vmatprep.subr.bf16.mxu0 0
      %2471 = vmatpush1.bf16.msra.mxu0 0
      %2472 = vmatprep.subr.bf16.mxu0 0
      %2473 = vmatpush1.bf16.msra.mxu0 0
      %2474 = vmatprep.subr.bf16.mxu0 0
      %2475 = vmatpush1.bf16.msra.mxu0 0
      %2476 = vmatprep.subr.bf16.mxu0 0
      %2477 = vmatpush1.bf16.msra.mxu0 0
      %2478 = vmatprep.subr.bf16.mxu0 0
      %2479 = vmatpush1.bf16.msra.mxu0 0
      %2480 = vmatprep.mubr.bf16.mxu0 0
      %2481 = vmatmul.mubr.bf16.gmra.mrb[0].mxu0 %v2398
      %v2482 = vpop.f32.mrb[0].mxu0
      %v2483 = vadd.f32 0.0, %v2482
      %v2484 = vpop.f32.mrb[0].mxu0
      %v2485 = vpop.f32.mrb[0].mxu0
      %v2486 = vadd.f32 0.0, %v2485
      %v2487 = vpop.f32.mrb[0].mxu0
      %2488 = vmatprep.mubr.bf16.mxu0 0
      %2489 = vmatmul.mubr.bf16.gmra.mrb[0].mxu0 %v2401
      %v2490 = vpop.f32.mrb[0].mxu0
      %v2491 = vadd.f32 0.0, %v2490
      %v2492 = vpop.f32.mrb[0].mxu0
      %v2493 = vpop.f32.mrb[0].mxu0
      %v2494 = vadd.f32 0.0, %v2493
      %v2495 = vpop.f32.mrb[0].mxu0
      %2496 = vmatprep.mubr.bf16.mxu0 0
      %2497 = vmatmul.mubr.bf16.gmra.mrb[0].mxu0 %v2404
      %v2498 = vpop.f32.mrb[0].mxu0
      %v2499 = vadd.f32 0.0, %v2498
      %v2500 = vpop.f32.mrb[0].mxu0
      %v2501 = vpop.f32.mrb[0].mxu0
      %v2502 = vadd.f32 0.0, %v2501
      %v2503 = vpop.f32.mrb[0].mxu0
      %2504 = vmatprep.mubr.bf16.mxu0 0
      %2505 = vmatmul.mubr.bf16.gmra.mrb[0].mxu0 %v2407
      %v2506 = vpop.f32.mrb[0].mxu0
      %v2507 = vadd.f32 0.0, %v2506
      %v2508 = vpop.f32.mrb[0].mxu0
      %v2509 = vpop.f32.mrb[0].mxu0
      %v2510 = vadd.f32 0.0, %v2509
      %v2511 = vpop.f32.mrb[0].mxu0
      %2512 = vmatprep.mubr.bf16.mxu0 0
      %2513 = vmatmul.mubr.bf16.gmra.mrb[0].mxu0 %v2410
      %v2514 = vpop.f32.mrb[0].mxu0
      %v2515 = vadd.f32 0.0, %v2514
      %v2516 = vpop.f32.mrb[0].mxu0
      %v2517 = vpop.f32.mrb[0].mxu0
      %v2518 = vadd.f32 0.0, %v2517
      %v2519 = vpop.f32.mrb[0].mxu0
      %2520 = vmatprep.mubr.bf16.mxu0 0
      %2521 = vmatmul.mubr.bf16.gmra.mrb[0].mxu0 %v2413
      %v2522 = vpop.f32.mrb[0].mxu0
      %v2523 = vadd.f32 0.0, %v2522
      %v2524 = vpop.f32.mrb[0].mxu0
      %v2525 = vpop.f32.mrb[0].mxu0
      %v2526 = vadd.f32 0.0, %v2525
      %v2527 = vpop.f32.mrb[0].mxu0
      %2528 = vmatprep.mubr.bf16.mxu0 0
      %2529 = vmatmul.mubr.bf16.gmra.mrb[0].mxu0 %v2416
      %v2530 = vpop.f32.mrb[0].mxu0
      %v2531 = vadd.f32 0.0, %v2530
      %v2532 = vpop.f32.mrb[0].mxu0
      %v2533 = vpop.f32.mrb[0].mxu0
      %v2534 = vadd.f32 0.0, %v2533
      %v2535 = vpop.f32.mrb[0].mxu0
      %2536 = vmatprep.mubr.bf16.mxu0 0
      %2537 = vmatmul.mubr.bf16.gmra.mrb[0].mxu0 %v2419
      %v2538 = vpop.f32.mrb[0].mxu0
      %v2539 = vadd.f32 0.0, %v2538
      %v2540 = vpop.f32.mrb[0].mxu0
      %v2541 = vpop.f32.mrb[0].mxu0
      %v2542 = vadd.f32 0.0, %v2541
      %v2543 = vpop.f32.mrb[0].mxu0
      %2544 = vmatprep.mubr.bf16.mxu0 0
      %2545 = vmatmul.mubr.bf16.gmra.mrb[0].mxu0 %v2422
      %v2546 = vpop.f32.mrb[0].mxu0
      %v2547 = vadd.f32 0.0, %v2546
      %v2548 = vpop.f32.mrb[0].mxu0
      %v2549 = vpop.f32.mrb[0].mxu0
      %v2550 = vadd.f32 0.0, %v2549
      %v2551 = vpop.f32.mrb[0].mxu0
      %2552 = vmatprep.mubr.bf16.mxu0 0
      %2553 = vmatmul.mubr.bf16.gmra.mrb[0].mxu0 %v2425
      %v2554 = vpop.f32.mrb[0].mxu0
      %v2555 = vadd.f32 0.0, %v2554
      %v2556 = vpop.f32.mrb[0].mxu0
      %v2557 = vpop.f32.mrb[0].mxu0
      %v2558 = vadd.f32 0.0, %v2557
      %v2559 = vpop.f32.mrb[0].mxu0
      %2560 = vmatprep.mubr.bf16.mxu0 0
      %2561 = vmatmul.mubr.bf16.gmra.mrb[0].mxu0 %v2428
      %v2562 = vpop.f32.mrb[0].mxu0
      %v2563 = vadd.f32 0.0, %v2562
      %v2564 = vpop.f32.mrb[0].mxu0
      %v2565 = vpop.f32.mrb[0].mxu0
      %v2566 = vadd.f32 0.0, %v2565
      %v2567 = vpop.f32.mrb[0].mxu0
      %2568 = vmatprep.mubr.bf16.mxu0 0
      %2569 = vmatmul.mubr.bf16.gmra.mrb[0].mxu0 %v2431
      %v2570 = vpop.f32.mrb[0].mxu0
      %v2571 = vadd.f32 0.0, %v2570
      %v2572 = vpop.f32.mrb[0].mxu0
      %v2573 = vpop.f32.mrb[0].mxu0
      %v2574 = vadd.f32 0.0, %v2573
      %v2575 = vpop.f32.mrb[0].mxu0
      %2576 = vmatprep.mubr.bf16.mxu0 0
      %2577 = vmatmul.mubr.bf16.gmra.mrb[0].mxu0 %v2434
      %v2578 = vpop.f32.mrb[0].mxu0
      %v2579 = vadd.f32 0.0, %v2578
      %v2580 = vpop.f32.mrb[0].mxu0
      %v2581 = vpop.f32.mrb[0].mxu0
      %v2582 = vadd.f32 0.0, %v2581
      %v2583 = vpop.f32.mrb[0].mxu0
      %2584 = vmatprep.mubr.bf16.mxu0 0
      %2585 = vmatmul.mubr.bf16.gmra.mrb[0].mxu0 %v2437
      %v2586 = vpop.f32.mrb[0].mxu0
      %v2587 = vadd.f32 0.0, %v2586
      %v2588 = vpop.f32.mrb[0].mxu0
      %v2589 = vpop.f32.mrb[0].mxu0
      %v2590 = vadd.f32 0.0, %v2589
      %v2591 = vpop.f32.mrb[0].mxu0
      %2592 = vmatprep.mubr.bf16.mxu0 0
      %2593 = vmatmul.mubr.bf16.gmra.mrb[0].mxu0 %v2440
      %v2594 = vpop.f32.mrb[0].mxu0
      %v2595 = vadd.f32 0.0, %v2594
      %v2596 = vpop.f32.mrb[0].mxu0
      %v2597 = vpop.f32.mrb[0].mxu0
      %v2598 = vadd.f32 0.0, %v2597
      %v2599 = vpop.f32.mrb[0].mxu0
      %2600 = vmatprep.mubr.bf16.mxu0 0
      %2601 = vmatmul.mubr.bf16.gmra.mrb[0].mxu0 %v2443
      %v2602 = vpop.f32.mrb[0].mxu0
      %v2603 = vadd.f32 0.0, %v2602
      %v2604 = vpop.f32.mrb[0].mxu0
      %v2605 = vpop.f32.mrb[0].mxu0
      %v2606 = vadd.f32 0.0, %v2605
      %v2607 = vpop.f32.mrb[0].mxu0
      %2608 = vdwg.mxu0
      %v2609 = vadd.f32 %v2246, %v2483
      %v2610 = vadd.f32 %v2249, %v2486
      %v2611 = vadd.f32 %v2254, %v2491
      %v2612 = vadd.f32 %v2257, %v2494
      %v2613 = vadd.f32 %v2262, %v2499
      %v2614 = vadd.f32 %v2265, %v2502
      %v2615 = vadd.f32 %v2270, %v2507
      %v2616 = vadd.f32 %v2273, %v2510
      %v2617 = vadd.f32 %v2278, %v2515
      %v2618 = vadd.f32 %v2281, %v2518
      %v2619 = vadd.f32 %v2286, %v2523
      %v2620 = vadd.f32 %v2289, %v2526
      %v2621 = vadd.f32 %v2294, %v2531
      %v2622 = vadd.f32 %v2297, %v2534
      %v2623 = vadd.f32 %v2302, %v2539
      %v2624 = vadd.f32 %v2305, %v2542
      %v2625 = vadd.f32 %v2310, %v2547
      %v2626 = vadd.f32 %v2313, %v2550
      %v2627 = vadd.f32 %v2318, %v2555
      %v2628 = vadd.f32 %v2321, %v2558
      %v2629 = vadd.f32 %v2326, %v2563
      %v2630 = vadd.f32 %v2329, %v2566
      %v2631 = vadd.f32 %v2334, %v2571
      %v2632 = vadd.f32 %v2337, %v2574
      %v2633 = vadd.f32 %v2342, %v2579
      %v2634 = vadd.f32 %v2345, %v2582
      %v2635 = vadd.f32 %v2350, %v2587
      %v2636 = vadd.f32 %v2353, %v2590
      %v2637 = vadd.f32 %v2358, %v2595
      %v2638 = vadd.f32 %v2361, %v2598
      %v2639 = vadd.f32 %v2366, %v2603
      %v2640 = vadd.f32 %v2369, %v2606
      %v2641 = vpack.c.bf16 %v2610, %v2609
      %v2642 = vpack.c.bf16 %v2612, %v2611
      %v2643 = vpack.c.bf16 %v2614, %v2613
      %v2644 = vpack.c.bf16 %v2616, %v2615
      %v2645 = vpack.c.bf16 %v2618, %v2617
      %v2646 = vpack.c.bf16 %v2620, %v2619
      %v2647 = vpack.c.bf16 %v2622, %v2621
      %v2648 = vpack.c.bf16 %v2624, %v2623
      %v2649 = vpack.c.bf16 %v2626, %v2625
      %v2650 = vpack.c.bf16 %v2628, %v2627
      %v2651 = vpack.c.bf16 %v2630, %v2629
      %v2652 = vpack.c.bf16 %v2632, %v2631
      %v2653 = vpack.c.bf16 %v2634, %v2633
      %v2654 = vpack.c.bf16 %v2636, %v2635
      %v2655 = vpack.c.bf16 %v2638, %v2637
      %v2656 = vpack.c.bf16 %v2640, %v2639
      %v2673 = vunpack.c.l.b16 %v2641
      %v2674 = vunpack.c.h.b16 %v2641
      %v2675 = vunpack.c.l.b16 %v2642
      %v2676 = vunpack.c.h.b16 %v2642
      %v2677 = vunpack.c.l.b16 %v2643
      %v2678 = vunpack.c.h.b16 %v2643
      %v2679 = vunpack.c.l.b16 %v2644
      %v2680 = vunpack.c.h.b16 %v2644
      %v2681 = vunpack.c.l.b16 %v2645
      %v2682 = vunpack.c.h.b16 %v2645
      %v2683 = vunpack.c.l.b16 %v2646
      %v2684 = vunpack.c.h.b16 %v2646
      %v2685 = vunpack.c.l.b16 %v2647
      %v2686 = vunpack.c.h.b16 %v2647
      %v2687 = vunpack.c.l.b16 %v2648
      %v2688 = vunpack.c.h.b16 %v2648
      %v2689 = vunpack.c.l.b16 %v2649
      %v2690 = vunpack.c.h.b16 %v2649
      %v2691 = vunpack.c.l.b16 %v2650
      %v2692 = vunpack.c.h.b16 %v2650
      %v2693 = vunpack.c.l.b16 %v2651
      %v2694 = vunpack.c.h.b16 %v2651
      %v2695 = vunpack.c.l.b16 %v2652
      %v2696 = vunpack.c.h.b16 %v2652
      %v2697 = vunpack.c.l.b16 %v2653
      %v2698 = vunpack.c.h.b16 %v2653
      %v2699 = vunpack.c.l.b16 %v2654
      %v2700 = vunpack.c.h.b16 %v2654
      %v2701 = vunpack.c.l.b16 %v2655
      %v2702 = vunpack.c.h.b16 %v2655
      %v2703 = vunpack.c.l.b16 %v2656
      %v2704 = vunpack.c.h.b16 %v2656
      %v2705 = vpack.c.b16 %v2673, %v2673
      %v2706 = vpack.c.b16 %v2674, %v2674
      %v2707 = vpack.c.b16 %v2675, %v2675
      %v2708 = vpack.c.b16 %v2676, %v2676
      %v2709 = vpack.c.b16 %v2677, %v2677
      %v2710 = vpack.c.b16 %v2678, %v2678
      %v2711 = vpack.c.b16 %v2679, %v2679
      %v2712 = vpack.c.b16 %v2680, %v2680
      %v2713 = vpack.c.b16 %v2681, %v2681
      %v2714 = vpack.c.b16 %v2682, %v2682
      %v2715 = vpack.c.b16 %v2683, %v2683
      %v2716 = vpack.c.b16 %v2684, %v2684
      %v2717 = vpack.c.b16 %v2685, %v2685
      %v2718 = vpack.c.b16 %v2686, %v2686
      %v2719 = vpack.c.b16 %v2687, %v2687
      %v2720 = vpack.c.b16 %v2688, %v2688
      %v2721 = vpack.c.b16 %v2689, %v2689
      %v2722 = vpack.c.b16 %v2690, %v2690
      %v2723 = vpack.c.b16 %v2691, %v2691
      %v2724 = vpack.c.b16 %v2692, %v2692
      %v2725 = vpack.c.b16 %v2693, %v2693
      %v2726 = vpack.c.b16 %v2694, %v2694
      %v2727 = vpack.c.b16 %v2695, %v2695
      %v2728 = vpack.c.b16 %v2696, %v2696
      %v2729 = vpack.c.b16 %v2697, %v2697
      %v2730 = vpack.c.b16 %v2698, %v2698
      %v2731 = vpack.c.b16 %v2699, %v2699
      %v2732 = vpack.c.b16 %v2700, %v2700
      %v2733 = vpack.c.b16 %v2701, %v2701
      %v2734 = vpack.c.b16 %v2702, %v2702
      %v2735 = vpack.c.b16 %v2703, %v2703
      %v2736 = vpack.c.b16 %v2704, %v2704
      %vm2769 = vcmask 60416
      %2770 = vst.msk [vmem:[%s239] sm:$0xf] %vm2769, %v2705
      %2771 = vst.msk [vmem:[%s239 + $0x4] sm:$0xf] %vm2769, %v2706
      %2772 = vst.msk [vmem:[%s239 + $0x8] sm:$0xf] %vm2769, %v2707
      %2773 = vst.msk [vmem:[%s239 + $0xc] sm:$0xf] %vm2769, %v2708
      %2774 = vst.msk [vmem:[%s239 + $0x10] sm:$0xf] %vm2769, %v2709
      %2775 = vst.msk [vmem:[%s239 + $0x14] sm:$0xf] %vm2769, %v2710
      %2776 = vst.msk [vmem:[%s239 + $0x18] sm:$0xf] %vm2769, %v2711
      %2777 = vst.msk [vmem:[%s239 + $0x1c] sm:$0xf] %vm2769, %v2712
      %2778 = vst.msk [vmem:[%s239 + $0x20] sm:$0xf] %vm2769, %v2713
      %2779 = vst.msk [vmem:[%s239 + $0x24] sm:$0xf] %vm2769, %v2714
      %2780 = vst.msk [vmem:[%s239 + $0x28] sm:$0xf] %vm2769, %v2715
      %2781 = vst.msk [vmem:[%s239 + $0x2c] sm:$0xf] %vm2769, %v2716
      %2782 = vst.msk [vmem:[%s239 + $0x30] sm:$0xf] %vm2769, %v2717
      %2783 = vst.msk [vmem:[%s239 + $0x34] sm:$0xf] %vm2769, %v2718
      %2784 = vst.msk [vmem:[%s239 + $0x38] sm:$0xf] %vm2769, %v2719
      %2785 = vst.msk [vmem:[%s239 + $0x3c] sm:$0xf] %vm2769, %v2720
      %2786 = vst.msk [vmem:[%s239 + $0x40] sm:$0xf] %vm2769, %v2721
      %2787 = vst.msk [vmem:[%s239 + $0x44] sm:$0xf] %vm2769, %v2722
      %2788 = vst.msk [vmem:[%s239 + $0x48] sm:$0xf] %vm2769, %v2723
      %2789 = vst.msk [vmem:[%s239 + $0x4c] sm:$0xf] %vm2769, %v2724
      %2790 = vst.msk [vmem:[%s239 + $0x50] sm:$0xf] %vm2769, %v2725
      %2791 = vst.msk [vmem:[%s239 + $0x54] sm:$0xf] %vm2769, %v2726
      %2792 = vst.msk [vmem:[%s239 + $0x58] sm:$0xf] %vm2769, %v2727
      %2793 = vst.msk [vmem:[%s239 + $0x5c] sm:$0xf] %vm2769, %v2728
      %2794 = vst.msk [vmem:[%s239 + $0x60] sm:$0xf] %vm2769, %v2729
      %2795 = vst.msk [vmem:[%s239 + $0x64] sm:$0xf] %vm2769, %v2730
      %2796 = vst.msk [vmem:[%s239 + $0x68] sm:$0xf] %vm2769, %v2731
      %2797 = vst.msk [vmem:[%s239 + $0x6c] sm:$0xf] %vm2769, %v2732
      %2798 = vst.msk [vmem:[%s239 + $0x70] sm:$0xf] %vm2769, %v2733
      %2799 = vst.msk [vmem:[%s239 + $0x74] sm:$0xf] %vm2769, %v2734
      %2800 = vst.msk [vmem:[%s239 + $0x78] sm:$0xf] %vm2769, %v2735
      %2801 = vst.msk [vmem:[%s239 + $0x7c] sm:$0xf] %vm2769, %v2736
      %vm2802 = vcmask 64512
      %v2803 = vsel %vm2802, %v2609, 0.0
      %v2804 = vsel %vm2802, %v2610, 0.0
      %v2805 = vadd.f32 %v2803, %v2804
      %v2806 = vsel %vm2802, %v2611, 0.0
      %v2807 = vadd.f32 %v2805, %v2806
      %v2808 = vsel %vm2802, %v2612, 0.0
      %v2809 = vadd.f32 %v2807, %v2808
      %v2810 = vsel %vm2802, %v2613, 0.0
      %v2811 = vadd.f32 %v2809, %v2810
      %v2812 = vsel %vm2802, %v2614, 0.0
      %v2813 = vadd.f32 %v2811, %v2812
      %v2814 = vsel %vm2802, %v2615, 0.0
      %v2815 = vadd.f32 %v2813, %v2814
      %v2816 = vsel %vm2802, %v2616, 0.0
      %v2817 = vadd.f32 %v2815, %v2816
      %v2818 = vsel %vm2802, %v2617, 0.0
      %v2819 = vadd.f32 %v2817, %v2818
      %v2820 = vsel %vm2802, %v2618, 0.0
      %v2821 = vadd.f32 %v2819, %v2820
      %v2822 = vsel %vm2802, %v2619, 0.0
      %v2823 = vadd.f32 %v2821, %v2822
      %v2824 = vsel %vm2802, %v2620, 0.0
      %v2825 = vadd.f32 %v2823, %v2824
      %v2826 = vsel %vm2802, %v2621, 0.0
      %v2827 = vadd.f32 %v2825, %v2826
      %v2828 = vsel %vm2802, %v2622, 0.0
      %v2829 = vadd.f32 %v2827, %v2828
      %v2830 = vsel %vm2802, %v2623, 0.0
      %v2831 = vadd.f32 %v2829, %v2830
      %v2832 = vsel %vm2802, %v2624, 0.0
      %v2833 = vadd.f32 %v2831, %v2832
      %v2834 = vsel %vm2802, %v2625, 0.0
      %v2835 = vadd.f32 %v2833, %v2834
      %v2836 = vsel %vm2802, %v2626, 0.0
      %v2837 = vadd.f32 %v2835, %v2836
      %v2838 = vsel %vm2802, %v2627, 0.0
      %v2839 = vadd.f32 %v2837, %v2838
      %v2840 = vsel %vm2802, %v2628, 0.0
      %v2841 = vadd.f32 %v2839, %v2840
      %v2842 = vsel %vm2802, %v2629, 0.0
      %v2843 = vadd.f32 %v2841, %v2842
      %v2844 = vsel %vm2802, %v2630, 0.0
      %v2845 = vadd.f32 %v2843, %v2844
      %v2846 = vsel %vm2802, %v2631, 0.0
      %v2847 = vadd.f32 %v2845, %v2846
      %v2848 = vsel %vm2802, %v2632, 0.0
      %v2849 = vadd.f32 %v2847, %v2848
      %v2850 = vsel %vm2802, %v2633, 0.0
      %v2851 = vadd.f32 %v2849, %v2850
      %v2852 = vsel %vm2802, %v2634, 0.0
      %v2853 = vadd.f32 %v2851, %v2852
      %v2854 = vsel %vm2802, %v2635, 0.0
      %v2855 = vadd.f32 %v2853, %v2854
      %v2856 = vsel %vm2802, %v2636, 0.0
      %v2857 = vadd.f32 %v2855, %v2856
      %v2858 = vsel %vm2802, %v2637, 0.0
      %v2859 = vadd.f32 %v2857, %v2858
      %v2860 = vsel %vm2802, %v2638, 0.0
      %v2861 = vadd.f32 %v2859, %v2860
      %v2862 = vsel %vm2802, %v2639, 0.0
      %v2863 = vadd.f32 %v2861, %v2862
      %v2864 = vsel %vm2802, %v2640, 0.0
      %v2865 = vadd.f32 %v2863, %v2864
      %v2866 = vrot.slane %v2865, 4
      %v2867 = vadd.f32 %v2865, %v2866
      %v2868 = vrot.slane %v2867, 2
      %v2869 = vadd.f32 %v2867, %v2868
      %v2870 = vrot.slane %v2869, 1
      %v2871 = vadd.f32 %v2869, %v2870
      %vm2872 = vcmask 57344
      %2873 = vst.msk [vmem:[%s248] sm:$0x1] %vm2872, %v2871
      %v2874 = vmul.f32 %v2609, %v2609
      %v2875 = vmul.f32 %v2610, %v2610
      %v2876 = vmul.f32 %v2611, %v2611
      %v2877 = vmul.f32 %v2612, %v2612
      %v2878 = vmul.f32 %v2613, %v2613
      %v2879 = vmul.f32 %v2614, %v2614
      %v2880 = vmul.f32 %v2615, %v2615
      %v2881 = vmul.f32 %v2616, %v2616
      %v2882 = vmul.f32 %v2617, %v2617
      %v2883 = vmul.f32 %v2618, %v2618
      %v2884 = vmul.f32 %v2619, %v2619
      %v2885 = vmul.f32 %v2620, %v2620
      %v2886 = vmul.f32 %v2621, %v2621
      %v2887 = vmul.f32 %v2622, %v2622
      %v2888 = vmul.f32 %v2623, %v2623
      %v2889 = vmul.f32 %v2624, %v2624
      %v2890 = vmul.f32 %v2625, %v2625
      %v2891 = vmul.f32 %v2626, %v2626
      %v2892 = vmul.f32 %v2627, %v2627
      %v2893 = vmul.f32 %v2628, %v2628
      %v2894 = vmul.f32 %v2629, %v2629
      %v2895 = vmul.f32 %v2630, %v2630
      %v2896 = vmul.f32 %v2631, %v2631
      %v2897 = vmul.f32 %v2632, %v2632
      %v2898 = vmul.f32 %v2633, %v2633
      %v2899 = vmul.f32 %v2634, %v2634
      %v2900 = vmul.f32 %v2635, %v2635
      %v2901 = vmul.f32 %v2636, %v2636
      %v2902 = vmul.f32 %v2637, %v2637
      %v2903 = vmul.f32 %v2638, %v2638
      %v2904 = vmul.f32 %v2639, %v2639
      %v2905 = vmul.f32 %v2640, %v2640
      %v2906 = vsel %vm2802, %v2874, 0.0
      %v2907 = vsel %vm2802, %v2875, 0.0
      %v2908 = vadd.f32 %v2906, %v2907
      %v2909 = vsel %vm2802, %v2876, 0.0
      %v2910 = vadd.f32 %v2908, %v2909
      %v2911 = vsel %vm2802, %v2877, 0.0
      %v2912 = vadd.f32 %v2910, %v2911
      %v2913 = vsel %vm2802, %v2878, 0.0
      %v2914 = vadd.f32 %v2912, %v2913
      %v2915 = vsel %vm2802, %v2879, 0.0
      %v2916 = vadd.f32 %v2914, %v2915
      %v2917 = vsel %vm2802, %v2880, 0.0
      %v2918 = vadd.f32 %v2916, %v2917
      %v2919 = vsel %vm2802, %v2881, 0.0
      %v2920 = vadd.f32 %v2918, %v2919
      %v2921 = vsel %vm2802, %v2882, 0.0
      %v2922 = vadd.f32 %v2920, %v2921
      %v2923 = vsel %vm2802, %v2883, 0.0
      %v2924 = vadd.f32 %v2922, %v2923
      %v2925 = vsel %vm2802, %v2884, 0.0
      %v2926 = vadd.f32 %v2924, %v2925
      %v2927 = vsel %vm2802, %v2885, 0.0
      %v2928 = vadd.f32 %v2926, %v2927
      %v2929 = vsel %vm2802, %v2886, 0.0
      %v2930 = vadd.f32 %v2928, %v2929
      %v2931 = vsel %vm2802, %v2887, 0.0
      %v2932 = vadd.f32 %v2930, %v2931
      %v2933 = vsel %vm2802, %v2888, 0.0
      %v2934 = vadd.f32 %v2932, %v2933
      %v2935 = vsel %vm2802, %v2889, 0.0
      %v2936 = vadd.f32 %v2934, %v2935
      %v2937 = vsel %vm2802, %v2890, 0.0
      %v2938 = vadd.f32 %v2936, %v2937
      %v2939 = vsel %vm2802, %v2891, 0.0
      %v2940 = vadd.f32 %v2938, %v2939
      %v2941 = vsel %vm2802, %v2892, 0.0
      %v2942 = vadd.f32 %v2940, %v2941
      %v2943 = vsel %vm2802, %v2893, 0.0
      %v2944 = vadd.f32 %v2942, %v2943
      %v2945 = vsel %vm2802, %v2894, 0.0
      %v2946 = vadd.f32 %v2944, %v2945
      %v2947 = vsel %vm2802, %v2895, 0.0
      %v2948 = vadd.f32 %v2946, %v2947
      %v2949 = vsel %vm2802, %v2896, 0.0
      %v2950 = vadd.f32 %v2948, %v2949
      %v2951 = vsel %vm2802, %v2897, 0.0
      %v2952 = vadd.f32 %v2950, %v2951
      %v2953 = vsel %vm2802, %v2898, 0.0
      %v2954 = vadd.f32 %v2952, %v2953
      %v2955 = vsel %vm2802, %v2899, 0.0
      %v2956 = vadd.f32 %v2954, %v2955
      %v2957 = vsel %vm2802, %v2900, 0.0
      %v2958 = vadd.f32 %v2956, %v2957
      %v2959 = vsel %vm2802, %v2901, 0.0
      %v2960 = vadd.f32 %v2958, %v2959
      %v2961 = vsel %vm2802, %v2902, 0.0
      %v2962 = vadd.f32 %v2960, %v2961
      %v2963 = vsel %vm2802, %v2903, 0.0
      %v2964 = vadd.f32 %v2962, %v2963
      %v2965 = vsel %vm2802, %v2904, 0.0
      %v2966 = vadd.f32 %v2964, %v2965
      %v2967 = vsel %vm2802, %v2905, 0.0
      %v2968 = vadd.f32 %v2966, %v2967
      %v2969 = vrot.slane %v2968, 4
      %v2970 = vadd.f32 %v2968, %v2969
      %v2971 = vrot.slane %v2970, 2
      %v2972 = vadd.f32 %v2970, %v2971
      %v2973 = vrot.slane %v2972, 1
      %v2974 = vadd.f32 %v2972, %v2973
      %2975 = vst.msk [vmem:[%s248 + $0x1] sm:$0x1] %vm2872, %v2974
      %s2976 = smul.u32 32, %s22
      %p2977 = scmp.lt.s32.totalorder %s20, 1
      %s2978 = scalar_select %p2977, %s20, 1
      %p2979 = scmp.lt.s32.totalorder %s2976, 31
      %s2980 = scalar_select %p2979, %s2976, 31
      %p2981 = scmp.lt.s32.totalorder %s21, 0
      %s2982 = scalar_select %p2981, %s21, 0
      %s2983 = sadd.s32 %s2982, %s2980
      %s2984 = smul.addr %s2978, 32
      %s2985 = sadd.s32 %s2983, %s2984
      %s2986 = smul.addr %s2985, 4
      %s2987 = scalar_lea.vmem %s2, %s2986
      %s2988 = sadd.s32 %s20, %s22
      %p2989 = scmp.lt.s32.totalorder %s2988, 1
      %s2990 = scalar_select %p2989, %s2988, 1
      %p2991 = scmp.lt.s32.totalorder %s21, 0
      %s2992 = scalar_select %p2991, %s21, 0
      %s2993 = sadd.s32 %s2992, %s2990
      %s2994 = smul.addr %s2993, 2
      %s2995 = scalar_lea.vmem %s3, %s2994
      // Predicated region
      $region29: #{conv_bn_relu.2} parent=27 // pred_check
        %p2996 = pneg %p108
      $region30: #{conv_bn_relu.2} parent=27 // pred_check_branch
        %2998 = sbr.rel (%p2996) target = $region32
      $region31: #{conv_bn_relu.2} parent=27 // pred_region
        %s2999 = smul.u32 32, %s22
      $region32: #{conv_bn_relu.2} parent=27 // pred_fallthru
        _
      // Predicated region
      $region33: #{conv_bn_relu.2} parent=27 // pred_check
        %p3000 = pneg %p138
      $region34: #{conv_bn_relu.2} parent=27 // pred_check_branch
        %3002 = sbr.rel (%p3000) target = $region36
      $region35: #{conv_bn_relu.2} parent=27 // pred_region
        %s3003 = sadd.s32 %s20, %s22
      $region36: #{conv_bn_relu.2} parent=27 // pred_fallthru
        _
    $region28: #{conv_bn_relu.2} parent=5 // pred_fallthru
      _
    %p3004 = scmp.le.s32.totalorder 2, %s10
    // Predicated region
    $region37: #{conv_bn_relu.2} parent=5 // pred_check
      %p3005 = pneg %p3004
    $region38: #{conv_bn_relu.2} parent=5 // pred_check_branch
      %3007 = sbr.rel (%p3005) target = $region40
    $region39: #{conv_bn_relu.2} parent=5 // pred_region
      %s3008 = ssub.s32 %s10, 2
      // Predicated region
      $region41: #{conv_bn_relu.2} parent=39 // pred_check
        %p3009 = pneg %p114
      $region42: #{conv_bn_relu.2} parent=39 // pred_check_branch
        %3011 = sbr.rel (%p3009) target = $region44
      $region43: #{conv_bn_relu.2} parent=39 // pred_region
        %s3012 = smul.u32 32, %s25
        %p3013 = scmp.lt.s32.totalorder %s23, 1
        %s3014 = scalar_select %p3013, %s23, 1
        %p3015 = scmp.lt.s32.totalorder %s3012, 31
        %s3016 = scalar_select %p3015, %s3012, 31
        %p3017 = scmp.lt.s32.totalorder %s24, 0
        %s3018 = scalar_select %p3017, %s24, 0
        %s3019 = sadd.s32 %s3018, %s3016
        %s3020 = smul.addr %s3014, 32
        %s3021 = sadd.s32 %s3019, %s3020
        %s3022 = smul.addr %s3021, 4
        %s3023 = scalar_lea.vmem %s2, %s3022
      $region44: #{conv_bn_relu.2} parent=39 // pred_fallthru
        _
      // Predicated region
      $region45: #{conv_bn_relu.2} parent=39 // pred_check
        %p3024 = pneg %p144
      $region46: #{conv_bn_relu.2} parent=39 // pred_check_branch
        %3026 = sbr.rel (%p3024) target = $region48
      $region47: #{conv_bn_relu.2} parent=39 // pred_region
        %s3027 = sadd.s32 %s23, %s25
        %p3028 = scmp.lt.s32.totalorder %s3027, 1
        %s3029 = scalar_select %p3028, %s3027, 1
        %p3030 = scmp.lt.s32.totalorder %s24, 0
        %s3031 = scalar_select %p3030, %s24, 0
        %s3032 = sadd.s32 %s3031, %s3029
        %s3033 = smul.addr %s3032, 2
        %s3034 = scalar_lea.vmem %s3, %s3033
      $region48: #{conv_bn_relu.2} parent=39 // pred_fallthru
        _
    $region40: #{conv_bn_relu.2} parent=5 // pred_fallthru
      _
  $region6: #{conv_bn_relu.2} parent=0 // loop_footer
    %s14 = sadd.s32 1, %s10
  $region7: #{conv_bn_relu.2} parent=0 // loop_footer_branch
    %9 = sbr.rel target = $region3
  $region8: #{conv_bn_relu.2} parent=0 // loop_exit
    _

</llo_original>
